<compile_context>
chip_gen: v7x
topology: tpu7x:2x2x1
jax: 0.10.0
libtpu: 0.0.40
codegen_flags: <defaults>
</compile_context>

<pallas_src>
import jax
import jax.numpy as jnp
from jax import lax
from jax.experimental import pallas as pl
from jax.experimental.pallas import tpu as pltpu

INPUT_DIM = 9
IN_PAD = 16        # lane padding for the 9-wide input (was 128)
HIDDEN = 128
OUT_DIM = 5
OUT_PAD = 128      # lane-dense output padding for the 5-wide logits
EPS = 1e-5
NEG_BIG = -1e30
MAX_UNROLL = 8     # cap on the recurrence unroll factor


def _bn_train(x, gamma, beta):
    """BatchNorm1d in training mode: per-column batch stats, biased variance."""
    mean = jnp.mean(x, axis=0, keepdims=True)
    var = jnp.mean((x - mean) ** 2, axis=0, keepdims=True)
    return (x - mean) * lax.rsqrt(var + EPS) * gamma + beta


def _split_hi_lo(x):
    """f32 -> (bf16 hi, bf16 lo) with x ~= hi + lo (~16-bit effective mantissa)."""
    hi = x.astype(jnp.bfloat16)
    lo = (x - hi.astype(jnp.float32)).astype(jnp.bfloat16)
    return hi, lo


def net_kernel(x_ref, g1_ref, b1_ref, wih_ref, bg_ref,
               whh_hi_ref, whh_lo_ref, g2_ref, b2_ref, wout_ref, bout_ref,
               o_ref,
               xw_ref, hs_ref):
    T = x_ref.shape[0]

    # ---- in_norm: BatchNorm1d(9) on padded (T, 16) input ---------------------
    xn = _bn_train(x_ref[...], g1_ref[...], b1_ref[...])

    # ---- LSTM input projection for all timesteps: (T,16)@(16,512) + b --------
    # Off the serial path and tiny; plain f32 dot (same as the known-good run).
    xw_ref[...] = jnp.dot(xn, wih_ref[...],
                          preferred_element_type=jnp.float32) + bg_ref[...]

    # ---- LSTM recurrence (batch=1, gate column order i, f, o, g) -------------
    # h and c stay in vregs as loop-carried values.  Per step the recurrent
    # matmul is exactly 3 bf16 MXU passes with f32 accumulation (hi/lo split
    # of both W_hh and h) -- bf16 operand width, f32-level accuracy.
    def step(t, carry):
        h, c = carry
        h_hi, h_lo = _split_hi_lo(h)
        rec = jnp.dot(h_hi, whh_hi_ref[...], preferred_element_type=jnp.float32)
        rec += jnp.dot(h_hi, whh_lo_ref[...], preferred_element_type=jnp.float32)
        rec += jnp.dot(h_lo, whh_hi_ref[...], preferred_element_type=jnp.float32)
        gates = xw_ref[pl.ds(t, 1), :] + rec
        ifo = jax.nn.sigmoid(gates[:, :3 * HIDDEN])    # one contiguous sigmoid
        g = jnp.tanh(gates[:, 3 * HIDDEN:])
        i = ifo[:, 0 * HIDDEN:1 * HIDDEN]
        f = ifo[:, 1 * HIDDEN:2 * HIDDEN]
        o = ifo[:, 2 * HIDDEN:3 * HIDDEN]
        c_new = f * c + i * g
        h_new = o * jnp.tanh(c_new)
        hs_ref[pl.ds(t, 1), :] = h_new
        return (h_new, c_new)

    zero = jnp.zeros((1, HIDDEN), jnp.float32)
    lax.fori_loop(0, T, step, (zero, zero), unroll=min(T, MAX_UNROLL))

    # ---- relu -> lstm_norm -> Linear(128, 5 padded) -> log_softmax -----------
    hrelu = jnp.maximum(hs_ref[...], 0.0)
    hn = _bn_train(hrelu, g2_ref[...], b2_ref[...])
    logits = jnp.dot(hn, wout_ref[...],
                     preferred_element_type=jnp.float32) + bout_ref[...]
    m = jnp.max(logits, axis=-1, keepdims=True)
    shifted = logits - m
    lse = jnp.log(jnp.sum(jnp.exp(shifted), axis=-1, keepdims=True))
    o_ref[...] = shifted - lse


def make_params(key):
    """Fresh PyTorch-style parameters (LSTM/Linear uniform init, BN ones/zeros)."""
    k = 1.0 / jnp.sqrt(jnp.float32(HIDDEN))
    ks = jax.random.split(key, 6)
    u = lambda kk, shape: jax.random.uniform(kk, shape, jnp.float32, -k, k)
    return dict(
        w_ih=u(ks[0], (4 * HIDDEN, INPUT_DIM)),
        w_hh=u(ks[1], (4 * HIDDEN, HIDDEN)),
        b_ih=u(ks[2], (4 * HIDDEN,)),
        b_hh=u(ks[3], (4 * HIDDEN,)),
        w_out=u(ks[4], (OUT_DIM, HIDDEN)),
        b_out=u(ks[5], (OUT_DIM,)),
        g1=jnp.ones((INPUT_DIM,), jnp.float32),
        be1=jnp.zeros((INPUT_DIM,), jnp.float32),
        g2=jnp.ones((HIDDEN,), jnp.float32),
        be2=jnp.zeros((HIDDEN,), jnp.float32),
    )


def prepare_params(p):
    """One-time glue (hoisted out of the forward): reorder LSTM gates from
    PyTorch's (i, f, g, o) to (i, f, o, g), transpose, bf16 hi/lo split of
    W_hh, and pad everything to the lane layouts expected by the kernel."""
    perm = jnp.concatenate([
        jnp.arange(0 * HIDDEN, 1 * HIDDEN),   # i
        jnp.arange(1 * HIDDEN, 2 * HIDDEN),   # f
        jnp.arange(3 * HIDDEN, 4 * HIDDEN),   # o
        jnp.arange(2 * HIDDEN, 3 * HIDDEN),   # g
    ])
    w_ih = p["w_ih"][perm, :]                  # (512, 9), gate-reordered
    w_hh = p["w_hh"][perm, :]                  # (512, 128)
    bg = (p["b_ih"] + p["b_hh"])[perm]         # (512,)
    whh_t = w_hh.T                             # (128, 512)
    whh_hi, whh_lo = _split_hi_lo(whh_t)       # 2x bf16 (128, 512)
    return dict(
        # padded in_norm gamma lanes are 0 (not 1) -- defensive: garbage in
        # padded input lanes can never propagate through BN / W_ih.
        g1=jnp.zeros((1, IN_PAD), jnp.float32).at[0, :INPUT_DIM].set(p["g1"]),
        b1=jnp.zeros((1, IN_PAD), jnp.float32).at[0, :INPUT_DIM].set(p["be1"]),
        wih_t=jnp.zeros((IN_PAD, 4 * HIDDEN), jnp.float32)
              .at[:INPUT_DIM, :].set(w_ih.T),
        bg=bg.reshape(1, 4 * HIDDEN),
        whh_hi=whh_hi,
        whh_lo=whh_lo,
        g2=p["g2"].reshape(1, HIDDEN),
        b2=p["be2"].reshape(1, HIDDEN),
        wout_t=jnp.zeros((HIDDEN, OUT_PAD), jnp.float32)
               .at[:, :OUT_DIM].set(p["w_out"].T),
        bout=jnp.full((1, OUT_PAD), NEG_BIG, jnp.float32)
             .at[0, :OUT_DIM].set(p["b_out"]),
    )


@jax.jit
def net_forward(x, prep):
    x2 = x.reshape(-1, INPUT_DIM).astype(jnp.float32)      # x.view(-1, 9)
    T = x2.shape[0]
    x_pad = jnp.zeros((T, IN_PAD), jnp.float32).at[:, :INPUT_DIM].set(x2)

    full = lambda shape: pl.BlockSpec(shape, lambda i: (0, 0))
    out = pl.pallas_call(
        net_kernel,
        out_shape=jax.ShapeDtypeStruct((T, OUT_PAD), jnp.float32),
        grid=(1,),
        in_specs=[
            full((T, IN_PAD)),              # x (padded to 16 lanes)
            full((1, IN_PAD)),              # in_norm gamma (pads = 0)
            full((1, IN_PAD)),              # in_norm beta
            full((IN_PAD, 4 * HIDDEN)),     # W_ih^T (padded rows, gates i,f,o,g)
            full((1, 4 * HIDDEN)),          # b_ih + b_hh (gates i,f,o,g)
            full((HIDDEN, 4 * HIDDEN)),     # W_hh^T hi (bf16)
            full((HIDDEN, 4 * HIDDEN)),     # W_hh^T lo (bf16)
            full((1, HIDDEN)),              # lstm_norm gamma
            full((1, HIDDEN)),              # lstm_norm beta
            full((HIDDEN, OUT_PAD)),        # W_out^T (padded cols)
            full((1, OUT_PAD)),             # b_out (padded with -1e30)
        ],
        out_specs=full((T, OUT_PAD)),
        scratch_shapes=[
            pltpu.VMEM((T, 4 * HIDDEN), jnp.float32),  # x @ W_ih^T + b
            pltpu.VMEM((T, HIDDEN), jnp.float32),      # LSTM hidden states
        ],
        compiler_params=pltpu.CompilerParams(
            dimension_semantics=("arbitrary",),
            vmem_limit_bytes=32 * 1024 * 1024),
    )(x_pad, prep["g1"], prep["b1"], prep["wih_t"], prep["bg"],
      prep["whh_hi"], prep["whh_lo"], prep["g2"], prep["b2"],
      prep["wout_t"], prep["bout"])

    return out[:, :OUT_DIM]


def ref_forward(x, p):
    """Pure-JAX reference matching the PyTorch forward (original gate order)."""
    x2 = x.reshape(-1, INPUT_DIM).astype(jnp.float32)
    xn = _bn_train(x2, p["g1"][None, :], p["be1"][None, :])

    def step(carry, xt):
        h, c = carry
        gates = xt @ p["w_ih"].T + p["b_ih"] + h @ p["w_hh"].T + p["b_hh"]
        i = jax.nn.sigmoid(gates[0 * HIDDEN:1 * HIDDEN])
        f = jax.nn.sigmoid(gates[1 * HIDDEN:2 * HIDDEN])
        g = jnp.tanh(gates[2 * HIDDEN:3 * HIDDEN])
        o = jax.nn.sigmoid(gates[3 * HIDDEN:4 * HIDDEN])
        c = f * c + i * g
        h = o * jnp.tanh(c)
        return (h, c), h

    (_, _), hs = lax.scan(step, (jnp.zeros(HIDDEN), jnp.zeros(HIDDEN)), xn)
    hn = _bn_train(jnp.maximum(hs, 0.0), p["g2"][None, :], p["be2"][None, :])
    logits = hn @ p["w_out"].T + p["b_out"]
    return jax.nn.log_softmax(logits, axis=1)


if __name__ == "__main__":
    key = jax.random.PRNGKey(0)
    kx, kp = jax.random.split(key)
    x = jax.random.normal(kx, (2, 4, 9), jnp.float32)   # view(-1, 9) -> T = 8
    params = make_params(kp)
    prep = prepare_params(params)                       # one-time padded weights

    out = jax.block_until_ready(net_forward(x, prep))
    ref = ref_forward(x, params)

    assert out.shape == (8, OUT_DIM), out.shape
    assert bool(jnp.all(jnp.isfinite(out)))
    assert bool(jnp.allclose(out, ref, atol=5e-3, rtol=5e-3)), \
        f"max err {jnp.max(jnp.abs(out - ref))}"
    print("KERNEL_OK")
</pallas_src>

<mosaic_0001>
module attributes {stable_mosaic.version = 11 : i64} {
  func.func @net_kernel(%arg0: i32, %arg1: memref<8x16xf32, #tpu.memory_space<vmem>>, %arg2: memref<1x16xf32, #tpu.memory_space<vmem>>, %arg3: memref<1x16xf32, #tpu.memory_space<vmem>>, %arg4: memref<16x512xf32, #tpu.memory_space<vmem>>, %arg5: memref<1x512xf32, #tpu.memory_space<vmem>>, %arg6: memref<128x512xbf16, #tpu.memory_space<vmem>>, %arg7: memref<128x512xbf16, #tpu.memory_space<vmem>>, %arg8: memref<1x128xf32, #tpu.memory_space<vmem>>, %arg9: memref<1x128xf32, #tpu.memory_space<vmem>>, %arg10: memref<128x128xf32, #tpu.memory_space<vmem>>, %arg11: memref<1x128xf32, #tpu.memory_space<vmem>>, %arg12: memref<8x128xf32, #tpu.memory_space<vmem>>, %arg13: memref<8x512xf32, #tpu.memory_space<vmem>>, %arg14: memref<8x128xf32, #tpu.memory_space<vmem>>) attributes {dimension_semantics = [#tpu.dimension_semantics<arbitrary>], iteration_bounds = array<i64: 1>, scalar_prefetch = 0 : i64, scratch_operands = 2 : i64, tpu.core_type = #tpu.core_type<tc>, window_params = [{pipeline_mode = #tpu.pipeline_mode<synchronous>, transform_indices = @transform_0, window_bounds = array<i64: 8, 16>}, {pipeline_mode = #tpu.pipeline_mode<synchronous>, transform_indices = @transform_1, window_bounds = array<i64: 1, 16>}, {pipeline_mode = #tpu.pipeline_mode<synchronous>, transform_indices = @transform_2, window_bounds = array<i64: 1, 16>}, {pipeline_mode = #tpu.pipeline_mode<synchronous>, transform_indices = @transform_3, window_bounds = array<i64: 16, 512>}, {pipeline_mode = #tpu.pipeline_mode<synchronous>, transform_indices = @transform_4, window_bounds = array<i64: 1, 512>}, {pipeline_mode = #tpu.pipeline_mode<synchronous>, transform_indices = @transform_5, window_bounds = array<i64: 128, 512>}, {pipeline_mode = #tpu.pipeline_mode<synchronous>, transform_indices = @transform_6, window_bounds = array<i64: 128, 512>}, {pipeline_mode = #tpu.pipeline_mode<synchronous>, transform_indices = @transform_7, window_bounds = array<i64: 1, 128>}, {pipeline_mode = #tpu.pipeline_mode<synchronous>, transform_indices = @transform_8, window_bounds = array<i64: 1, 128>}, {pipeline_mode = #tpu.pipeline_mode<synchronous>, transform_indices = @transform_9, window_bounds = array<i64: 128, 128>}, {pipeline_mode = #tpu.pipeline_mode<synchronous>, transform_indices = @transform_10, window_bounds = array<i64: 1, 128>}, {pipeline_mode = #tpu.pipeline_mode<synchronous>, transform_indices = @transform_11, window_bounds = array<i64: 8, 128>}]} {
    %c0 = arith.constant 0 : index
    %c0_0 = arith.constant 0 : index
    %0 = vector.load %arg1[%c0, %c0_0] : memref<8x16xf32, #tpu.memory_space<vmem>>, vector<8x16xf32>
    %c0_1 = arith.constant 0 : index
    %c0_2 = arith.constant 0 : index
    %1 = vector.load %arg2[%c0_1, %c0_2] : memref<1x16xf32, #tpu.memory_space<vmem>>, vector<1x16xf32>
    %c0_3 = arith.constant 0 : index
    %c0_4 = arith.constant 0 : index
    %2 = vector.load %arg3[%c0_3, %c0_4] : memref<1x16xf32, #tpu.memory_space<vmem>>, vector<1x16xf32>
    %cst = arith.constant dense<0.000000e+00> : vector<16xf32>
    %3 = vector.multi_reduction <add>, %0, %cst [0] : vector<8x16xf32> to vector<16xf32>
    %4 = vector.shape_cast %3 : vector<16xf32> to vector<1x16xf32>
    %cst_5 = arith.constant 8.000000e+00 : f32
    %5 = vector.broadcast %cst_5 : f32 to vector<1x16xf32>
    %6 = arith.divf %4, %5 : vector<1x16xf32>
    %7 = vector.broadcast %6 : vector<1x16xf32> to vector<8x16xf32>
    %8 = arith.subf %0, %7 : vector<8x16xf32>
    %9 = arith.mulf %8, %8 : vector<8x16xf32>
    %cst_6 = arith.constant dense<0.000000e+00> : vector<16xf32>
    %10 = vector.multi_reduction <add>, %9, %cst_6 [0] : vector<8x16xf32> to vector<16xf32>
    %11 = vector.shape_cast %10 : vector<16xf32> to vector<1x16xf32>
    %cst_7 = arith.constant 8.000000e+00 : f32
    %12 = vector.broadcast %cst_7 : f32 to vector<1x16xf32>
    %13 = arith.divf %11, %12 : vector<1x16xf32>
    %14 = vector.broadcast %6 : vector<1x16xf32> to vector<8x16xf32>
    %15 = arith.subf %0, %14 : vector<8x16xf32>
    %cst_8 = arith.constant 9.99999974E-6 : f32
    %16 = vector.broadcast %cst_8 : f32 to vector<1x16xf32>
    %17 = arith.addf %13, %16 : vector<1x16xf32>
    %18 = math.rsqrt %17 : vector<1x16xf32>
    %19 = vector.broadcast %18 : vector<1x16xf32> to vector<8x16xf32>
    %20 = arith.mulf %15, %19 : vector<8x16xf32>
    %21 = vector.broadcast %1 : vector<1x16xf32> to vector<8x16xf32>
    %22 = arith.mulf %20, %21 : vector<8x16xf32>
    %23 = vector.broadcast %2 : vector<1x16xf32> to vector<8x16xf32>
    %24 = arith.addf %22, %23 : vector<8x16xf32>
    %c0_9 = arith.constant 0 : index
    %c0_10 = arith.constant 0 : index
    %25 = vector.load %arg4[%c0_9, %c0_10] : memref<16x512xf32, #tpu.memory_space<vmem>>, vector<16x512xf32>
    %cst_11 = arith.constant dense<0.000000e+00> : vector<8x512xf32>
    %26 = tpu.matmul %24, %25, %cst_11 {dimension_numbers = #tpu.dot_dimension_numbers<[1], [0], [0], [1], [0, 0, 1, 1], [], []>} : vector<8x16xf32>, vector<16x512xf32>, vector<8x512xf32> -> vector<8x512xf32>
    %c0_12 = arith.constant 0 : index
    %c0_13 = arith.constant 0 : index
    %27 = vector.load %arg5[%c0_12, %c0_13] : memref<1x512xf32, #tpu.memory_space<vmem>>, vector<1x512xf32>
    %28 = vector.broadcast %27 : vector<1x512xf32> to vector<8x512xf32>
    %29 = arith.addf %26, %28 : vector<8x512xf32>
    %c0_14 = arith.constant 0 : index
    %c0_15 = arith.constant 0 : index
    %30 = vector.load %arg13[%c0_14, %c0_15] : memref<8x512xf32, #tpu.memory_space<vmem>>, vector<8x512xf32>
    tpu.vector_store %arg13[%c0_14, %c0_15], %29 {strides = array<i32>} : memref<8x512xf32, #tpu.memory_space<vmem>>, vector<8x512xf32>,
    %cst_16 = arith.constant 0.000000e+00 : f32
    %31 = vector.broadcast %cst_16 : f32 to vector<1x128xf32>
    %c0_i32 = arith.constant 0 : i32
    %32 = arith.truncf %31 : vector<1x128xf32> to vector<1x128xbf16>
    %33 = arith.extf %32 : vector<1x128xbf16> to vector<1x128xf32>
    %34 = arith.subf %31, %33 : vector<1x128xf32>
    %35 = arith.truncf %34 : vector<1x128xf32> to vector<1x128xbf16>
    %c0_17 = arith.constant 0 : index
    %c0_18 = arith.constant 0 : index
    %36 = vector.load %arg6[%c0_17, %c0_18] : memref<128x512xbf16, #tpu.memory_space<vmem>>, vector<128x512xbf16>
    %cst_19 = arith.constant dense<0.000000e+00> : vector<1x512xf32>
    %37 = tpu.matmul %32, %36, %cst_19 {dimension_numbers = #tpu.dot_dimension_numbers<[1], [0], [0], [1], [0, 0, 1, 1], [], []>} : vector<1x128xbf16>, vector<128x512xbf16>, vector<1x512xf32> -> vector<1x512xf32>
    %c0_20 = arith.constant 0 : index
    %c0_21 = arith.constant 0 : index
    %38 = vector.load %arg7[%c0_20, %c0_21] : memref<128x512xbf16, #tpu.memory_space<vmem>>, vector<128x512xbf16>
    %cst_22 = arith.constant dense<0.000000e+00> : vector<1x512xf32>
    %39 = tpu.matmul %32, %38, %cst_22 {dimension_numbers = #tpu.dot_dimension_numbers<[1], [0], [0], [1], [0, 0, 1, 1], [], []>} : vector<1x128xbf16>, vector<128x512xbf16>, vector<1x512xf32> -> vector<1x512xf32>
    %40 = arith.addf %37, %39 : vector<1x512xf32>
    %c0_23 = arith.constant 0 : index
    %c0_24 = arith.constant 0 : index
    %41 = vector.load %arg6[%c0_23, %c0_24] : memref<128x512xbf16, #tpu.memory_space<vmem>>, vector<128x512xbf16>
    %cst_25 = arith.constant dense<0.000000e+00> : vector<1x512xf32>
    %42 = tpu.matmul %35, %41, %cst_25 {dimension_numbers = #tpu.dot_dimension_numbers<[1], [0], [0], [1], [0, 0, 1, 1], [], []>} : vector<1x128xbf16>, vector<128x512xbf16>, vector<1x512xf32> -> vector<1x512xf32>
    %43 = arith.addf %40, %42 : vector<1x512xf32>
    %44 = arith.index_cast %c0_i32 : i32 to index
    %c0_26 = arith.constant 0 : index
    %45 = vector.load %arg13[%44, %c0_26] : memref<8x512xf32, #tpu.memory_space<vmem>>, vector<1x512xf32>
    %46 = arith.addf %45, %43 : vector<1x512xf32>
    %47 = vector.extract_strided_slice %46 {offsets = [0, 0], sizes = [1, 384], strides = [1, 1]} : vector<1x512xf32> to vector<1x384xf32>
    %48 = arith.negf %47 : vector<1x384xf32>
    %49 = math.exp %48 : vector<1x384xf32>
    %cst_27 = arith.constant 1.000000e+00 : f32
    %50 = vector.broadcast %cst_27 : f32 to vector<1x384xf32>
    %51 = arith.addf %50, %49 : vector<1x384xf32>
    %52 = arith.divf %50, %51 : vector<1x384xf32>
    %53 = vector.extract_strided_slice %46 {offsets = [0, 384], sizes = [1, 128], strides = [1, 1]} : vector<1x512xf32> to vector<1x128xf32>
    %54 = math.tanh %53 : vector<1x128xf32>
    %55 = vector.extract_strided_slice %52 {offsets = [0, 0], sizes = [1, 128], strides = [1, 1]} : vector<1x384xf32> to vector<1x128xf32>
    %56 = vector.extract_strided_slice %52 {offsets = [0, 128], sizes = [1, 128], strides = [1, 1]} : vector<1x384xf32> to vector<1x128xf32>
    %57 = vector.extract_strided_slice %52 {offsets = [0, 256], sizes = [1, 128], strides = [1, 1]} : vector<1x384xf32> to vector<1x128xf32>
    %58 = arith.mulf %56, %31 : vector<1x128xf32>
    %59 = arith.mulf %55, %54 : vector<1x128xf32>
    %60 = arith.addf %58, %59 : vector<1x128xf32>
    %61 = math.tanh %60 : vector<1x128xf32>
    %62 = arith.mulf %57, %61 : vector<1x128xf32>
    %63 = arith.index_cast %c0_i32 : i32 to index
    %c0_28 = arith.constant 0 : index
    %64 = vector.load %arg14[%63, %c0_28] : memref<8x128xf32, #tpu.memory_space<vmem>>, vector<1x128xf32>
    tpu.vector_store %arg14[%63, %c0_28], %62 {strides = array<i32>} : memref<8x128xf32, #tpu.memory_space<vmem>>, vector<1x128xf32>,
    %c1_i32 = arith.constant 1 : i32
    %65 = arith.truncf %62 : vector<1x128xf32> to vector<1x128xbf16>
    %66 = arith.extf %65 : vector<1x128xbf16> to vector<1x128xf32>
    %67 = arith.subf %62, %66 : vector<1x128xf32>
    %68 = arith.truncf %67 : vector<1x128xf32> to vector<1x128xbf16>
    %c0_29 = arith.constant 0 : index
    %c0_30 = arith.constant 0 : index
    %69 = vector.load %arg6[%c0_29, %c0_30] : memref<128x512xbf16, #tpu.memory_space<vmem>>, vector<128x512xbf16>
    %cst_31 = arith.constant dense<0.000000e+00> : vector<1x512xf32>
    %70 = tpu.matmul %65, %69, %cst_31 {dimension_numbers = #tpu.dot_dimension_numbers<[1], [0], [0], [1], [0, 0, 1, 1], [], []>} : vector<1x128xbf16>, vector<128x512xbf16>, vector<1x512xf32> -> vector<1x512xf32>
    %c0_32 = arith.constant 0 : index
    %c0_33 = arith.constant 0 : index
    %71 = vector.load %arg7[%c0_32, %c0_33] : memref<128x512xbf16, #tpu.memory_space<vmem>>, vector<128x512xbf16>
    %cst_34 = arith.constant dense<0.000000e+00> : vector<1x512xf32>
    %72 = tpu.matmul %65, %71, %cst_34 {dimension_numbers = #tpu.dot_dimension_numbers<[1], [0], [0], [1], [0, 0, 1, 1], [], []>} : vector<1x128xbf16>, vector<128x512xbf16>, vector<1x512xf32> -> vector<1x512xf32>
    %73 = arith.addf %70, %72 : vector<1x512xf32>
    %c0_35 = arith.constant 0 : index
    %c0_36 = arith.constant 0 : index
    %74 = vector.load %arg6[%c0_35, %c0_36] : memref<128x512xbf16, #tpu.memory_space<vmem>>, vector<128x512xbf16>
    %cst_37 = arith.constant dense<0.000000e+00> : vector<1x512xf32>
    %75 = tpu.matmul %68, %74, %cst_37 {dimension_numbers = #tpu.dot_dimension_numbers<[1], [0], [0], [1], [0, 0, 1, 1], [], []>} : vector<1x128xbf16>, vector<128x512xbf16>, vector<1x512xf32> -> vector<1x512xf32>
    %76 = arith.addf %73, %75 : vector<1x512xf32>
    %77 = arith.index_cast %c1_i32 : i32 to index
    %c0_38 = arith.constant 0 : index
    %78 = vector.load %arg13[%77, %c0_38] : memref<8x512xf32, #tpu.memory_space<vmem>>, vector<1x512xf32>
    %79 = arith.addf %78, %76 : vector<1x512xf32>
    %80 = vector.extract_strided_slice %79 {offsets = [0, 0], sizes = [1, 384], strides = [1, 1]} : vector<1x512xf32> to vector<1x384xf32>
    %81 = arith.negf %80 : vector<1x384xf32>
    %82 = math.exp %81 : vector<1x384xf32>
    %cst_39 = arith.constant 1.000000e+00 : f32
    %83 = vector.broadcast %cst_39 : f32 to vector<1x384xf32>
    %84 = arith.addf %83, %82 : vector<1x384xf32>
    %85 = arith.divf %83, %84 : vector<1x384xf32>
    %86 = vector.extract_strided_slice %79 {offsets = [0, 384], sizes = [1, 128], strides = [1, 1]} : vector<1x512xf32> to vector<1x128xf32>
    %87 = math.tanh %86 : vector<1x128xf32>
    %88 = vector.extract_strided_slice %85 {offsets = [0, 0], sizes = [1, 128], strides = [1, 1]} : vector<1x384xf32> to vector<1x128xf32>
    %89 = vector.extract_strided_slice %85 {offsets = [0, 128], sizes = [1, 128], strides = [1, 1]} : vector<1x384xf32> to vector<1x128xf32>
    %90 = vector.extract_strided_slice %85 {offsets = [0, 256], sizes = [1, 128], strides = [1, 1]} : vector<1x384xf32> to vector<1x128xf32>
    %91 = arith.mulf %89, %60 : vector<1x128xf32>
    %92 = arith.mulf %88, %87 : vector<1x128xf32>
    %93 = arith.addf %91, %92 : vector<1x128xf32>
    %94 = math.tanh %93 : vector<1x128xf32>
    %95 = arith.mulf %90, %94 : vector<1x128xf32>
    %96 = arith.index_cast %c1_i32 : i32 to index
    %c0_40 = arith.constant 0 : index
    %97 = vector.load %arg14[%96, %c0_40] : memref<8x128xf32, #tpu.memory_space<vmem>>, vector<1x128xf32>
    tpu.vector_store %arg14[%96, %c0_40], %95 {strides = array<i32>} : memref<8x128xf32, #tpu.memory_space<vmem>>, vector<1x128xf32>,
    %c2_i32 = arith.constant 2 : i32
    %98 = arith.truncf %95 : vector<1x128xf32> to vector<1x128xbf16>
    %99 = arith.extf %98 : vector<1x128xbf16> to vector<1x128xf32>
    %100 = arith.subf %95, %99 : vector<1x128xf32>
    %101 = arith.truncf %100 : vector<1x128xf32> to vector<1x128xbf16>
    %c0_41 = arith.constant 0 : index
    %c0_42 = arith.constant 0 : index
    %102 = vector.load %arg6[%c0_41, %c0_42] : memref<128x512xbf16, #tpu.memory_space<vmem>>, vector<128x512xbf16>
    %cst_43 = arith.constant dense<0.000000e+00> : vector<1x512xf32>
    %103 = tpu.matmul %98, %102, %cst_43 {dimension_numbers = #tpu.dot_dimension_numbers<[1], [0], [0], [1], [0, 0, 1, 1], [], []>} : vector<1x128xbf16>, vector<128x512xbf16>, vector<1x512xf32> -> vector<1x512xf32>
    %c0_44 = arith.constant 0 : index
    %c0_45 = arith.constant 0 : index
    %104 = vector.load %arg7[%c0_44, %c0_45] : memref<128x512xbf16, #tpu.memory_space<vmem>>, vector<128x512xbf16>
    %cst_46 = arith.constant dense<0.000000e+00> : vector<1x512xf32>
    %105 = tpu.matmul %98, %104, %cst_46 {dimension_numbers = #tpu.dot_dimension_numbers<[1], [0], [0], [1], [0, 0, 1, 1], [], []>} : vector<1x128xbf16>, vector<128x512xbf16>, vector<1x512xf32> -> vector<1x512xf32>
    %106 = arith.addf %103, %105 : vector<1x512xf32>
    %c0_47 = arith.constant 0 : index
    %c0_48 = arith.constant 0 : index
    %107 = vector.load %arg6[%c0_47, %c0_48] : memref<128x512xbf16, #tpu.memory_space<vmem>>, vector<128x512xbf16>
    %cst_49 = arith.constant dense<0.000000e+00> : vector<1x512xf32>
    %108 = tpu.matmul %101, %107, %cst_49 {dimension_numbers = #tpu.dot_dimension_numbers<[1], [0], [0], [1], [0, 0, 1, 1], [], []>} : vector<1x128xbf16>, vector<128x512xbf16>, vector<1x512xf32> -> vector<1x512xf32>
    %109 = arith.addf %106, %108 : vector<1x512xf32>
    %110 = arith.index_cast %c2_i32 : i32 to index
    %c0_50 = arith.constant 0 : index
    %111 = vector.load %arg13[%110, %c0_50] : memref<8x512xf32, #tpu.memory_space<vmem>>, vector<1x512xf32>
    %112 = arith.addf %111, %109 : vector<1x512xf32>
    %113 = vector.extract_strided_slice %112 {offsets = [0, 0], sizes = [1, 384], strides = [1, 1]} : vector<1x512xf32> to vector<1x384xf32>
    %114 = arith.negf %113 : vector<1x384xf32>
    %115 = math.exp %114 : vector<1x384xf32>
    %cst_51 = arith.constant 1.000000e+00 : f32
    %116 = vector.broadcast %cst_51 : f32 to vector<1x384xf32>
    %117 = arith.addf %116, %115 : vector<1x384xf32>
    %118 = arith.divf %116, %117 : vector<1x384xf32>
    %119 = vector.extract_strided_slice %112 {offsets = [0, 384], sizes = [1, 128], strides = [1, 1]} : vector<1x512xf32> to vector<1x128xf32>
    %120 = math.tanh %119 : vector<1x128xf32>
    %121 = vector.extract_strided_slice %118 {offsets = [0, 0], sizes = [1, 128], strides = [1, 1]} : vector<1x384xf32> to vector<1x128xf32>
    %122 = vector.extract_strided_slice %118 {offsets = [0, 128], sizes = [1, 128], strides = [1, 1]} : vector<1x384xf32> to vector<1x128xf32>
    %123 = vector.extract_strided_slice %118 {offsets = [0, 256], sizes = [1, 128], strides = [1, 1]} : vector<1x384xf32> to vector<1x128xf32>
    %124 = arith.mulf %122, %93 : vector<1x128xf32>
    %125 = arith.mulf %121, %120 : vector<1x128xf32>
    %126 = arith.addf %124, %125 : vector<1x128xf32>
    %127 = math.tanh %126 : vector<1x128xf32>
    %128 = arith.mulf %123, %127 : vector<1x128xf32>
    %129 = arith.index_cast %c2_i32 : i32 to index
    %c0_52 = arith.constant 0 : index
    %130 = vector.load %arg14[%129, %c0_52] : memref<8x128xf32, #tpu.memory_space<vmem>>, vector<1x128xf32>
    tpu.vector_store %arg14[%129, %c0_52], %128 {strides = array<i32>} : memref<8x128xf32, #tpu.memory_space<vmem>>, vector<1x128xf32>,
    %c3_i32 = arith.constant 3 : i32
    %131 = arith.truncf %128 : vector<1x128xf32> to vector<1x128xbf16>
    %132 = arith.extf %131 : vector<1x128xbf16> to vector<1x128xf32>
    %133 = arith.subf %128, %132 : vector<1x128xf32>
    %134 = arith.truncf %133 : vector<1x128xf32> to vector<1x128xbf16>
    %c0_53 = arith.constant 0 : index
    %c0_54 = arith.constant 0 : index
    %135 = vector.load %arg6[%c0_53, %c0_54] : memref<128x512xbf16, #tpu.memory_space<vmem>>, vector<128x512xbf16>
    %cst_55 = arith.constant dense<0.000000e+00> : vector<1x512xf32>
    %136 = tpu.matmul %131, %135, %cst_55 {dimension_numbers = #tpu.dot_dimension_numbers<[1], [0], [0], [1], [0, 0, 1, 1], [], []>} : vector<1x128xbf16>, vector<128x512xbf16>, vector<1x512xf32> -> vector<1x512xf32>
    %c0_56 = arith.constant 0 : index
    %c0_57 = arith.constant 0 : index
    %137 = vector.load %arg7[%c0_56, %c0_57] : memref<128x512xbf16, #tpu.memory_space<vmem>>, vector<128x512xbf16>
    %cst_58 = arith.constant dense<0.000000e+00> : vector<1x512xf32>
    %138 = tpu.matmul %131, %137, %cst_58 {dimension_numbers = #tpu.dot_dimension_numbers<[1], [0], [0], [1], [0, 0, 1, 1], [], []>} : vector<1x128xbf16>, vector<128x512xbf16>, vector<1x512xf32> -> vector<1x512xf32>
    %139 = arith.addf %136, %138 : vector<1x512xf32>
    %c0_59 = arith.constant 0 : index
    %c0_60 = arith.constant 0 : index
    %140 = vector.load %arg6[%c0_59, %c0_60] : memref<128x512xbf16, #tpu.memory_space<vmem>>, vector<128x512xbf16>
    %cst_61 = arith.constant dense<0.000000e+00> : vector<1x512xf32>
    %141 = tpu.matmul %134, %140, %cst_61 {dimension_numbers = #tpu.dot_dimension_numbers<[1], [0], [0], [1], [0, 0, 1, 1], [], []>} : vector<1x128xbf16>, vector<128x512xbf16>, vector<1x512xf32> -> vector<1x512xf32>
    %142 = arith.addf %139, %141 : vector<1x512xf32>
    %143 = arith.index_cast %c3_i32 : i32 to index
    %c0_62 = arith.constant 0 : index
    %144 = vector.load %arg13[%143, %c0_62] : memref<8x512xf32, #tpu.memory_space<vmem>>, vector<1x512xf32>
    %145 = arith.addf %144, %142 : vector<1x512xf32>
    %146 = vector.extract_strided_slice %145 {offsets = [0, 0], sizes = [1, 384], strides = [1, 1]} : vector<1x512xf32> to vector<1x384xf32>
    %147 = arith.negf %146 : vector<1x384xf32>
    %148 = math.exp %147 : vector<1x384xf32>
    %cst_63 = arith.constant 1.000000e+00 : f32
    %149 = vector.broadcast %cst_63 : f32 to vector<1x384xf32>
    %150 = arith.addf %149, %148 : vector<1x384xf32>
    %151 = arith.divf %149, %150 : vector<1x384xf32>
    %152 = vector.extract_strided_slice %145 {offsets = [0, 384], sizes = [1, 128], strides = [1, 1]} : vector<1x512xf32> to vector<1x128xf32>
    %153 = math.tanh %152 : vector<1x128xf32>
    %154 = vector.extract_strided_slice %151 {offsets = [0, 0], sizes = [1, 128], strides = [1, 1]} : vector<1x384xf32> to vector<1x128xf32>
    %155 = vector.extract_strided_slice %151 {offsets = [0, 128], sizes = [1, 128], strides = [1, 1]} : vector<1x384xf32> to vector<1x128xf32>
    %156 = vector.extract_strided_slice %151 {offsets = [0, 256], sizes = [1, 128], strides = [1, 1]} : vector<1x384xf32> to vector<1x128xf32>
    %157 = arith.mulf %155, %126 : vector<1x128xf32>
    %158 = arith.mulf %154, %153 : vector<1x128xf32>
    %159 = arith.addf %157, %158 : vector<1x128xf32>
    %160 = math.tanh %159 : vector<1x128xf32>
    %161 = arith.mulf %156, %160 : vector<1x128xf32>
    %162 = arith.index_cast %c3_i32 : i32 to index
    %c0_64 = arith.constant 0 : index
    %163 = vector.load %arg14[%162, %c0_64] : memref<8x128xf32, #tpu.memory_space<vmem>>, vector<1x128xf32>
    tpu.vector_store %arg14[%162, %c0_64], %161 {strides = array<i32>} : memref<8x128xf32, #tpu.memory_space<vmem>>, vector<1x128xf32>,
    %c4_i32 = arith.constant 4 : i32
    %164 = arith.truncf %161 : vector<1x128xf32> to vector<1x128xbf16>
    %165 = arith.extf %164 : vector<1x128xbf16> to vector<1x128xf32>
    %166 = arith.subf %161, %165 : vector<1x128xf32>
    %167 = arith.truncf %166 : vector<1x128xf32> to vector<1x128xbf16>
    %c0_65 = arith.constant 0 : index
    %c0_66 = arith.constant 0 : index
    %168 = vector.load %arg6[%c0_65, %c0_66] : memref<128x512xbf16, #tpu.memory_space<vmem>>, vector<128x512xbf16>
    %cst_67 = arith.constant dense<0.000000e+00> : vector<1x512xf32>
    %169 = tpu.matmul %164, %168, %cst_67 {dimension_numbers = #tpu.dot_dimension_numbers<[1], [0], [0], [1], [0, 0, 1, 1], [], []>} : vector<1x128xbf16>, vector<128x512xbf16>, vector<1x512xf32> -> vector<1x512xf32>
    %c0_68 = arith.constant 0 : index
    %c0_69 = arith.constant 0 : index
    %170 = vector.load %arg7[%c0_68, %c0_69] : memref<128x512xbf16, #tpu.memory_space<vmem>>, vector<128x512xbf16>
    %cst_70 = arith.constant dense<0.000000e+00> : vector<1x512xf32>
    %171 = tpu.matmul %164, %170, %cst_70 {dimension_numbers = #tpu.dot_dimension_numbers<[1], [0], [0], [1], [0, 0, 1, 1], [], []>} : vector<1x128xbf16>, vector<128x512xbf16>, vector<1x512xf32> -> vector<1x512xf32>
    %172 = arith.addf %169, %171 : vector<1x512xf32>
    %c0_71 = arith.constant 0 : index
    %c0_72 = arith.constant 0 : index
    %173 = vector.load %arg6[%c0_71, %c0_72] : memref<128x512xbf16, #tpu.memory_space<vmem>>, vector<128x512xbf16>
    %cst_73 = arith.constant dense<0.000000e+00> : vector<1x512xf32>
    %174 = tpu.matmul %167, %173, %cst_73 {dimension_numbers = #tpu.dot_dimension_numbers<[1], [0], [0], [1], [0, 0, 1, 1], [], []>} : vector<1x128xbf16>, vector<128x512xbf16>, vector<1x512xf32> -> vector<1x512xf32>
    %175 = arith.addf %172, %174 : vector<1x512xf32>
    %176 = arith.index_cast %c4_i32 : i32 to index
    %c0_74 = arith.constant 0 : index
    %177 = vector.load %arg13[%176, %c0_74] : memref<8x512xf32, #tpu.memory_space<vmem>>, vector<1x512xf32>
    %178 = arith.addf %177, %175 : vector<1x512xf32>
    %179 = vector.extract_strided_slice %178 {offsets = [0, 0], sizes = [1, 384], strides = [1, 1]} : vector<1x512xf32> to vector<1x384xf32>
    %180 = arith.negf %179 : vector<1x384xf32>
    %181 = math.exp %180 : vector<1x384xf32>
    %cst_75 = arith.constant 1.000000e+00 : f32
    %182 = vector.broadcast %cst_75 : f32 to vector<1x384xf32>
    %183 = arith.addf %182, %181 : vector<1x384xf32>
    %184 = arith.divf %182, %183 : vector<1x384xf32>
    %185 = vector.extract_strided_slice %178 {offsets = [0, 384], sizes = [1, 128], strides = [1, 1]} : vector<1x512xf32> to vector<1x128xf32>
    %186 = math.tanh %185 : vector<1x128xf32>
    %187 = vector.extract_strided_slice %184 {offsets = [0, 0], sizes = [1, 128], strides = [1, 1]} : vector<1x384xf32> to vector<1x128xf32>
    %188 = vector.extract_strided_slice %184 {offsets = [0, 128], sizes = [1, 128], strides = [1, 1]} : vector<1x384xf32> to vector<1x128xf32>
    %189 = vector.extract_strided_slice %184 {offsets = [0, 256], sizes = [1, 128], strides = [1, 1]} : vector<1x384xf32> to vector<1x128xf32>
    %190 = arith.mulf %188, %159 : vector<1x128xf32>
    %191 = arith.mulf %187, %186 : vector<1x128xf32>
    %192 = arith.addf %190, %191 : vector<1x128xf32>
    %193 = math.tanh %192 : vector<1x128xf32>
    %194 = arith.mulf %189, %193 : vector<1x128xf32>
    %195 = arith.index_cast %c4_i32 : i32 to index
    %c0_76 = arith.constant 0 : index
    %196 = vector.load %arg14[%195, %c0_76] : memref<8x128xf32, #tpu.memory_space<vmem>>, vector<1x128xf32>
    tpu.vector_store %arg14[%195, %c0_76], %194 {strides = array<i32>} : memref<8x128xf32, #tpu.memory_space<vmem>>, vector<1x128xf32>,
    %c5_i32 = arith.constant 5 : i32
    %197 = arith.truncf %194 : vector<1x128xf32> to vector<1x128xbf16>
    %198 = arith.extf %197 : vector<1x128xbf16> to vector<1x128xf32>
    %199 = arith.subf %194, %198 : vector<1x128xf32>
    %200 = arith.truncf %199 : vector<1x128xf32> to vector<1x128xbf16>
    %c0_77 = arith.constant 0 : index
    %c0_78 = arith.constant 0 : index
    %201 = vector.load %arg6[%c0_77, %c0_78] : memref<128x512xbf16, #tpu.memory_space<vmem>>, vector<128x512xbf16>
    %cst_79 = arith.constant dense<0.000000e+00> : vector<1x512xf32>
    %202 = tpu.matmul %197, %201, %cst_79 {dimension_numbers = #tpu.dot_dimension_numbers<[1], [0], [0], [1], [0, 0, 1, 1], [], []>} : vector<1x128xbf16>, vector<128x512xbf16>, vector<1x512xf32> -> vector<1x512xf32>
    %c0_80 = arith.constant 0 : index
    %c0_81 = arith.constant 0 : index
    %203 = vector.load %arg7[%c0_80, %c0_81] : memref<128x512xbf16, #tpu.memory_space<vmem>>, vector<128x512xbf16>
    %cst_82 = arith.constant dense<0.000000e+00> : vector<1x512xf32>
    %204 = tpu.matmul %197, %203, %cst_82 {dimension_numbers = #tpu.dot_dimension_numbers<[1], [0], [0], [1], [0, 0, 1, 1], [], []>} : vector<1x128xbf16>, vector<128x512xbf16>, vector<1x512xf32> -> vector<1x512xf32>
    %205 = arith.addf %202, %204 : vector<1x512xf32>
    %c0_83 = arith.constant 0 : index
    %c0_84 = arith.constant 0 : index
    %206 = vector.load %arg6[%c0_83, %c0_84] : memref<128x512xbf16, #tpu.memory_space<vmem>>, vector<128x512xbf16>
    %cst_85 = arith.constant dense<0.000000e+00> : vector<1x512xf32>
    %207 = tpu.matmul %200, %206, %cst_85 {dimension_numbers = #tpu.dot_dimension_numbers<[1], [0], [0], [1], [0, 0, 1, 1], [], []>} : vector<1x128xbf16>, vector<128x512xbf16>, vector<1x512xf32> -> vector<1x512xf32>
    %208 = arith.addf %205, %207 : vector<1x512xf32>
    %209 = arith.index_cast %c5_i32 : i32 to index
    %c0_86 = arith.constant 0 : index
    %210 = vector.load %arg13[%209, %c0_86] : memref<8x512xf32, #tpu.memory_space<vmem>>, vector<1x512xf32>
    %211 = arith.addf %210, %208 : vector<1x512xf32>
    %212 = vector.extract_strided_slice %211 {offsets = [0, 0], sizes = [1, 384], strides = [1, 1]} : vector<1x512xf32> to vector<1x384xf32>
    %213 = arith.negf %212 : vector<1x384xf32>
    %214 = math.exp %213 : vector<1x384xf32>
    %cst_87 = arith.constant 1.000000e+00 : f32
    %215 = vector.broadcast %cst_87 : f32 to vector<1x384xf32>
    %216 = arith.addf %215, %214 : vector<1x384xf32>
    %217 = arith.divf %215, %216 : vector<1x384xf32>
    %218 = vector.extract_strided_slice %211 {offsets = [0, 384], sizes = [1, 128], strides = [1, 1]} : vector<1x512xf32> to vector<1x128xf32>
    %219 = math.tanh %218 : vector<1x128xf32>
    %220 = vector.extract_strided_slice %217 {offsets = [0, 0], sizes = [1, 128], strides = [1, 1]} : vector<1x384xf32> to vector<1x128xf32>
    %221 = vector.extract_strided_slice %217 {offsets = [0, 128], sizes = [1, 128], strides = [1, 1]} : vector<1x384xf32> to vector<1x128xf32>
    %222 = vector.extract_strided_slice %217 {offsets = [0, 256], sizes = [1, 128], strides = [1, 1]} : vector<1x384xf32> to vector<1x128xf32>
    %223 = arith.mulf %221, %192 : vector<1x128xf32>
    %224 = arith.mulf %220, %219 : vector<1x128xf32>
    %225 = arith.addf %223, %224 : vector<1x128xf32>
    %226 = math.tanh %225 : vector<1x128xf32>
    %227 = arith.mulf %222, %226 : vector<1x128xf32>
    %228 = arith.index_cast %c5_i32 : i32 to index
    %c0_88 = arith.constant 0 : index
    %229 = vector.load %arg14[%228, %c0_88] : memref<8x128xf32, #tpu.memory_space<vmem>>, vector<1x128xf32>
    tpu.vector_store %arg14[%228, %c0_88], %227 {strides = array<i32>} : memref<8x128xf32, #tpu.memory_space<vmem>>, vector<1x128xf32>,
    %c6_i32 = arith.constant 6 : i32
    %230 = arith.truncf %227 : vector<1x128xf32> to vector<1x128xbf16>
    %231 = arith.extf %230 : vector<1x128xbf16> to vector<1x128xf32>
    %232 = arith.subf %227, %231 : vector<1x128xf32>
    %233 = arith.truncf %232 : vector<1x128xf32> to vector<1x128xbf16>
    %c0_89 = arith.constant 0 : index
    %c0_90 = arith.constant 0 : index
    %234 = vector.load %arg6[%c0_89, %c0_90] : memref<128x512xbf16, #tpu.memory_space<vmem>>, vector<128x512xbf16>
    %cst_91 = arith.constant dense<0.000000e+00> : vector<1x512xf32>
    %235 = tpu.matmul %230, %234, %cst_91 {dimension_numbers = #tpu.dot_dimension_numbers<[1], [0], [0], [1], [0, 0, 1, 1], [], []>} : vector<1x128xbf16>, vector<128x512xbf16>, vector<1x512xf32> -> vector<1x512xf32>
    %c0_92 = arith.constant 0 : index
    %c0_93 = arith.constant 0 : index
    %236 = vector.load %arg7[%c0_92, %c0_93] : memref<128x512xbf16, #tpu.memory_space<vmem>>, vector<128x512xbf16>
    %cst_94 = arith.constant dense<0.000000e+00> : vector<1x512xf32>
    %237 = tpu.matmul %230, %236, %cst_94 {dimension_numbers = #tpu.dot_dimension_numbers<[1], [0], [0], [1], [0, 0, 1, 1], [], []>} : vector<1x128xbf16>, vector<128x512xbf16>, vector<1x512xf32> -> vector<1x512xf32>
    %238 = arith.addf %235, %237 : vector<1x512xf32>
    %c0_95 = arith.constant 0 : index
    %c0_96 = arith.constant 0 : index
    %239 = vector.load %arg6[%c0_95, %c0_96] : memref<128x512xbf16, #tpu.memory_space<vmem>>, vector<128x512xbf16>
    %cst_97 = arith.constant dense<0.000000e+00> : vector<1x512xf32>
    %240 = tpu.matmul %233, %239, %cst_97 {dimension_numbers = #tpu.dot_dimension_numbers<[1], [0], [0], [1], [0, 0, 1, 1], [], []>} : vector<1x128xbf16>, vector<128x512xbf16>, vector<1x512xf32> -> vector<1x512xf32>
    %241 = arith.addf %238, %240 : vector<1x512xf32>
    %242 = arith.index_cast %c6_i32 : i32 to index
    %c0_98 = arith.constant 0 : index
    %243 = vector.load %arg13[%242, %c0_98] : memref<8x512xf32, #tpu.memory_space<vmem>>, vector<1x512xf32>
    %244 = arith.addf %243, %241 : vector<1x512xf32>
    %245 = vector.extract_strided_slice %244 {offsets = [0, 0], sizes = [1, 384], strides = [1, 1]} : vector<1x512xf32> to vector<1x384xf32>
    %246 = arith.negf %245 : vector<1x384xf32>
    %247 = math.exp %246 : vector<1x384xf32>
    %cst_99 = arith.constant 1.000000e+00 : f32
    %248 = vector.broadcast %cst_99 : f32 to vector<1x384xf32>
    %249 = arith.addf %248, %247 : vector<1x384xf32>
    %250 = arith.divf %248, %249 : vector<1x384xf32>
    %251 = vector.extract_strided_slice %244 {offsets = [0, 384], sizes = [1, 128], strides = [1, 1]} : vector<1x512xf32> to vector<1x128xf32>
    %252 = math.tanh %251 : vector<1x128xf32>
    %253 = vector.extract_strided_slice %250 {offsets = [0, 0], sizes = [1, 128], strides = [1, 1]} : vector<1x384xf32> to vector<1x128xf32>
    %254 = vector.extract_strided_slice %250 {offsets = [0, 128], sizes = [1, 128], strides = [1, 1]} : vector<1x384xf32> to vector<1x128xf32>
    %255 = vector.extract_strided_slice %250 {offsets = [0, 256], sizes = [1, 128], strides = [1, 1]} : vector<1x384xf32> to vector<1x128xf32>
    %256 = arith.mulf %254, %225 : vector<1x128xf32>
    %257 = arith.mulf %253, %252 : vector<1x128xf32>
    %258 = arith.addf %256, %257 : vector<1x128xf32>
    %259 = math.tanh %258 : vector<1x128xf32>
    %260 = arith.mulf %255, %259 : vector<1x128xf32>
    %261 = arith.index_cast %c6_i32 : i32 to index
    %c0_100 = arith.constant 0 : index
    %262 = vector.load %arg14[%261, %c0_100] : memref<8x128xf32, #tpu.memory_space<vmem>>, vector<1x128xf32>
    tpu.vector_store %arg14[%261, %c0_100], %260 {strides = array<i32>} : memref<8x128xf32, #tpu.memory_space<vmem>>, vector<1x128xf32>,
    %c7_i32 = arith.constant 7 : i32
    %263 = arith.truncf %260 : vector<1x128xf32> to vector<1x128xbf16>
    %264 = arith.extf %263 : vector<1x128xbf16> to vector<1x128xf32>
    %265 = arith.subf %260, %264 : vector<1x128xf32>
    %266 = arith.truncf %265 : vector<1x128xf32> to vector<1x128xbf16>
    %c0_101 = arith.constant 0 : index
    %c0_102 = arith.constant 0 : index
    %267 = vector.load %arg6[%c0_101, %c0_102] : memref<128x512xbf16, #tpu.memory_space<vmem>>, vector<128x512xbf16>
    %cst_103 = arith.constant dense<0.000000e+00> : vector<1x512xf32>
    %268 = tpu.matmul %263, %267, %cst_103 {dimension_numbers = #tpu.dot_dimension_numbers<[1], [0], [0], [1], [0, 0, 1, 1], [], []>} : vector<1x128xbf16>, vector<128x512xbf16>, vector<1x512xf32> -> vector<1x512xf32>
    %c0_104 = arith.constant 0 : index
    %c0_105 = arith.constant 0 : index
    %269 = vector.load %arg7[%c0_104, %c0_105] : memref<128x512xbf16, #tpu.memory_space<vmem>>, vector<128x512xbf16>
    %cst_106 = arith.constant dense<0.000000e+00> : vector<1x512xf32>
    %270 = tpu.matmul %263, %269, %cst_106 {dimension_numbers = #tpu.dot_dimension_numbers<[1], [0], [0], [1], [0, 0, 1, 1], [], []>} : vector<1x128xbf16>, vector<128x512xbf16>, vector<1x512xf32> -> vector<1x512xf32>
    %271 = arith.addf %268, %270 : vector<1x512xf32>
    %c0_107 = arith.constant 0 : index
    %c0_108 = arith.constant 0 : index
    %272 = vector.load %arg6[%c0_107, %c0_108] : memref<128x512xbf16, #tpu.memory_space<vmem>>, vector<128x512xbf16>
    %cst_109 = arith.constant dense<0.000000e+00> : vector<1x512xf32>
    %273 = tpu.matmul %266, %272, %cst_109 {dimension_numbers = #tpu.dot_dimension_numbers<[1], [0], [0], [1], [0, 0, 1, 1], [], []>} : vector<1x128xbf16>, vector<128x512xbf16>, vector<1x512xf32> -> vector<1x512xf32>
    %274 = arith.addf %271, %273 : vector<1x512xf32>
    %275 = arith.index_cast %c7_i32 : i32 to index
    %c0_110 = arith.constant 0 : index
    %276 = vector.load %arg13[%275, %c0_110] : memref<8x512xf32, #tpu.memory_space<vmem>>, vector<1x512xf32>
    %277 = arith.addf %276, %274 : vector<1x512xf32>
    %278 = vector.extract_strided_slice %277 {offsets = [0, 0], sizes = [1, 384], strides = [1, 1]} : vector<1x512xf32> to vector<1x384xf32>
    %279 = arith.negf %278 : vector<1x384xf32>
    %280 = math.exp %279 : vector<1x384xf32>
    %cst_111 = arith.constant 1.000000e+00 : f32
    %281 = vector.broadcast %cst_111 : f32 to vector<1x384xf32>
    %282 = arith.addf %281, %280 : vector<1x384xf32>
    %283 = arith.divf %281, %282 : vector<1x384xf32>
    %284 = vector.extract_strided_slice %277 {offsets = [0, 384], sizes = [1, 128], strides = [1, 1]} : vector<1x512xf32> to vector<1x128xf32>
    %285 = math.tanh %284 : vector<1x128xf32>
    %286 = vector.extract_strided_slice %283 {offsets = [0, 0], sizes = [1, 128], strides = [1, 1]} : vector<1x384xf32> to vector<1x128xf32>
    %287 = vector.extract_strided_slice %283 {offsets = [0, 128], sizes = [1, 128], strides = [1, 1]} : vector<1x384xf32> to vector<1x128xf32>
    %288 = vector.extract_strided_slice %283 {offsets = [0, 256], sizes = [1, 128], strides = [1, 1]} : vector<1x384xf32> to vector<1x128xf32>
    %289 = arith.mulf %287, %258 : vector<1x128xf32>
    %290 = arith.mulf %286, %285 : vector<1x128xf32>
    %291 = arith.addf %289, %290 : vector<1x128xf32>
    %292 = math.tanh %291 : vector<1x128xf32>
    %293 = arith.mulf %288, %292 : vector<1x128xf32>
    %294 = arith.index_cast %c7_i32 : i32 to index
    %c0_112 = arith.constant 0 : index
    %295 = vector.load %arg14[%294, %c0_112] : memref<8x128xf32, #tpu.memory_space<vmem>>, vector<1x128xf32>
    tpu.vector_store %arg14[%294, %c0_112], %293 {strides = array<i32>} : memref<8x128xf32, #tpu.memory_space<vmem>>, vector<1x128xf32>,
    %c8_i32 = arith.constant 8 : i32
    %c0_113 = arith.constant 0 : index
    %c0_114 = arith.constant 0 : index
    %296 = vector.load %arg14[%c0_113, %c0_114] : memref<8x128xf32, #tpu.memory_space<vmem>>, vector<8x128xf32>
    %cst_115 = arith.constant 0.000000e+00 : f32
    %297 = vector.broadcast %cst_115 : f32 to vector<8x128xf32>
    %298 = arith.maximumf %296, %297 : vector<8x128xf32>
    %c0_116 = arith.constant 0 : index
    %c0_117 = arith.constant 0 : index
    %299 = vector.load %arg8[%c0_116, %c0_117] : memref<1x128xf32, #tpu.memory_space<vmem>>, vector<1x128xf32>
    %c0_118 = arith.constant 0 : index
    %c0_119 = arith.constant 0 : index
    %300 = vector.load %arg9[%c0_118, %c0_119] : memref<1x128xf32, #tpu.memory_space<vmem>>, vector<1x128xf32>
    %cst_120 = arith.constant dense<0.000000e+00> : vector<128xf32>
    %301 = vector.multi_reduction <add>, %298, %cst_120 [0] : vector<8x128xf32> to vector<128xf32>
    %302 = vector.shape_cast %301 : vector<128xf32> to vector<1x128xf32>
    %cst_121 = arith.constant 8.000000e+00 : f32
    %303 = vector.broadcast %cst_121 : f32 to vector<1x128xf32>
    %304 = arith.divf %302, %303 : vector<1x128xf32>
    %305 = vector.broadcast %304 : vector<1x128xf32> to vector<8x128xf32>
    %306 = arith.subf %298, %305 : vector<8x128xf32>
    %307 = arith.mulf %306, %306 : vector<8x128xf32>
    %cst_122 = arith.constant dense<0.000000e+00> : vector<128xf32>
    %308 = vector.multi_reduction <add>, %307, %cst_122 [0] : vector<8x128xf32> to vector<128xf32>
    %309 = vector.shape_cast %308 : vector<128xf32> to vector<1x128xf32>
    %cst_123 = arith.constant 8.000000e+00 : f32
    %310 = vector.broadcast %cst_123 : f32 to vector<1x128xf32>
    %311 = arith.divf %309, %310 : vector<1x128xf32>
    %312 = vector.broadcast %304 : vector<1x128xf32> to vector<8x128xf32>
    %313 = arith.subf %298, %312 : vector<8x128xf32>
    %cst_124 = arith.constant 9.99999974E-6 : f32
    %314 = vector.broadcast %cst_124 : f32 to vector<1x128xf32>
    %315 = arith.addf %311, %314 : vector<1x128xf32>
    %316 = math.rsqrt %315 : vector<1x128xf32>
    %317 = vector.broadcast %316 : vector<1x128xf32> to vector<8x128xf32>
    %318 = arith.mulf %313, %317 : vector<8x128xf32>
    %319 = vector.broadcast %299 : vector<1x128xf32> to vector<8x128xf32>
    %320 = arith.mulf %318, %319 : vector<8x128xf32>
    %321 = vector.broadcast %300 : vector<1x128xf32> to vector<8x128xf32>
    %322 = arith.addf %320, %321 : vector<8x128xf32>
    %c0_125 = arith.constant 0 : index
    %c0_126 = arith.constant 0 : index
    %323 = vector.load %arg10[%c0_125, %c0_126] : memref<128x128xf32, #tpu.memory_space<vmem>>, vector<128x128xf32>
    %cst_127 = arith.constant dense<0.000000e+00> : vector<8x128xf32>
    %324 = tpu.matmul %322, %323, %cst_127 {dimension_numbers = #tpu.dot_dimension_numbers<[1], [0], [0], [1], [0, 0, 1, 1], [], []>} : vector<8x128xf32>, vector<128x128xf32>, vector<8x128xf32> -> vector<8x128xf32>
    %c0_128 = arith.constant 0 : index
    %c0_129 = arith.constant 0 : index
    %325 = vector.load %arg11[%c0_128, %c0_129] : memref<1x128xf32, #tpu.memory_space<vmem>>, vector<1x128xf32>
    %326 = vector.broadcast %325 : vector<1x128xf32> to vector<8x128xf32>
    %327 = arith.addf %324, %326 : vector<8x128xf32>
    %cst_130 = arith.constant dense<0xFF800000> : vector<8xf32>
    %328 = vector.multi_reduction <maximumf>, %327, %cst_130 [1] : vector<8x128xf32> to vector<8xf32>
    %329 = vector.shape_cast %328 : vector<8xf32> to vector<8x1xf32>
    %330 = vector.broadcast %329 : vector<8x1xf32> to vector<8x128xf32>
    %331 = arith.subf %327, %330 : vector<8x128xf32>
    %332 = math.exp %331 : vector<8x128xf32>
    %cst_131 = arith.constant dense<0.000000e+00> : vector<8xf32>
    %333 = vector.multi_reduction <add>, %332, %cst_131 [1] : vector<8x128xf32> to vector<8xf32>
    %334 = vector.shape_cast %333 : vector<8xf32> to vector<8x1xf32>
    %335 = math.log %334 : vector<8x1xf32>
    %336 = vector.broadcast %335 : vector<8x1xf32> to vector<8x128xf32>
    %337 = arith.subf %331, %336 : vector<8x128xf32>
    %c0_132 = arith.constant 0 : index
    %c0_133 = arith.constant 0 : index
    %338 = vector.load %arg12[%c0_132, %c0_133] : memref<8x128xf32, #tpu.memory_space<vmem>>, vector<8x128xf32>
    tpu.vector_store %arg12[%c0_132, %c0_133], %337 {strides = array<i32>} : memref<8x128xf32, #tpu.memory_space<vmem>>, vector<8x128xf32>,
    return
  }
  func.func @transform_0(%arg0: i32) -> (i32, i32) {
    %c0_i32 = arith.constant 0 : i32
    %c0_i32_0 = arith.constant 0 : i32
    %c0_i32_1 = arith.constant 0 : i32
    return %c0_i32, %c0_i32_0 : i32, i32
  }
  func.func @transform_1(%arg0: i32) -> (i32, i32) {
    %c0_i32 = arith.constant 0 : i32
    %c0_i32_0 = arith.constant 0 : i32
    %c0_i32_1 = arith.constant 0 : i32
    return %c0_i32, %c0_i32_0 : i32, i32
  }
  func.func @transform_2(%arg0: i32) -> (i32, i32) {
    %c0_i32 = arith.constant 0 : i32
    %c0_i32_0 = arith.constant 0 : i32
    %c0_i32_1 = arith.constant 0 : i32
    return %c0_i32, %c0_i32_0 : i32, i32
  }
  func.func @transform_3(%arg0: i32) -> (i32, i32) {
    %c0_i32 = arith.constant 0 : i32
    %c0_i32_0 = arith.constant 0 : i32
    %c0_i32_1 = arith.constant 0 : i32
    return %c0_i32, %c0_i32_0 : i32, i32
  }
  func.func @transform_4(%arg0: i32) -> (i32, i32) {
    %c0_i32 = arith.constant 0 : i32
    %c0_i32_0 = arith.constant 0 : i32
    %c0_i32_1 = arith.constant 0 : i32
    return %c0_i32, %c0_i32_0 : i32, i32
  }
  func.func @transform_5(%arg0: i32) -> (i32, i32) {
    %c0_i32 = arith.constant 0 : i32
    %c0_i32_0 = arith.constant 0 : i32
    %c0_i32_1 = arith.constant 0 : i32
    return %c0_i32, %c0_i32_0 : i32, i32
  }
  func.func @transform_6(%arg0: i32) -> (i32, i32) {
    %c0_i32 = arith.constant 0 : i32
    %c0_i32_0 = arith.constant 0 : i32
    %c0_i32_1 = arith.constant 0 : i32
    return %c0_i32, %c0_i32_0 : i32, i32
  }
  func.func @transform_7(%arg0: i32) -> (i32, i32) {
    %c0_i32 = arith.constant 0 : i32
    %c0_i32_0 = arith.constant 0 : i32
    %c0_i32_1 = arith.constant 0 : i32
    return %c0_i32, %c0_i32_0 : i32, i32
  }
  func.func @transform_8(%arg0: i32) -> (i32, i32) {
    %c0_i32 = arith.constant 0 : i32
    %c0_i32_0 = arith.constant 0 : i32
    %c0_i32_1 = arith.constant 0 : i32
    return %c0_i32, %c0_i32_0 : i32, i32
  }
  func.func @transform_9(%arg0: i32) -> (i32, i32) {
    %c0_i32 = arith.constant 0 : i32
    %c0_i32_0 = arith.constant 0 : i32
    %c0_i32_1 = arith.constant 0 : i32
    return %c0_i32, %c0_i32_0 : i32, i32
  }
  func.func @transform_10(%arg0: i32) -> (i32, i32) {
    %c0_i32 = arith.constant 0 : i32
    %c0_i32_0 = arith.constant 0 : i32
    %c0_i32_1 = arith.constant 0 : i32
    return %c0_i32, %c0_i32_0 : i32, i32
  }
  func.func @transform_11(%arg0: i32) -> (i32, i32) {
    %c0_i32 = arith.constant 0 : i32
    %c0_i32_0 = arith.constant 0 : i32
    %c0_i32_1 = arith.constant 0 : i32
    return %c0_i32, %c0_i32_0 : i32, i32
  }
}

</mosaic_0001>

<llo_original>
// kernel: net_forward.1
$region0: #{net_forward.1}
  #allocation0 [shape = 'u32[]', space=smem, size = 0x4, offset = 0x4, fixed_abs, tag = 'smem constant byte address 0x4 - core index']
  #allocation1 [shape = 'u32[144,128]{1,0:T(1,128)}', space=vmem, size = 0x12000, scoped, tag = 'internal scratch']
  #allocation2 [shape = 'f32[8,512]{1,0:T(8,128)}', space=vmem, size = 0x4000, scoped, tag = 'scratch operand']
  #allocation3 [shape = 'f32[8,128]{1,0:T(8,128)}', space=vmem, size = 0x1000, scoped, tag = 'scratch operand']
  %s0 = inlined_call_operand.vmem [shape: f32[8,16], index: 0, kind: input, shape index: {}]
  %s1 = inlined_call_operand.vmem [shape: f32[1,16], index: 1, kind: input, shape index: {}]
  %s2 = inlined_call_operand.vmem [shape: f32[1,16], index: 2, kind: input, shape index: {}]
  %s3 = inlined_call_operand.vmem [shape: f32[16,512], index: 3, kind: input, shape index: {}]
  %s4 = inlined_call_operand.vmem [shape: f32[1,512], index: 4, kind: input, shape index: {}]
  %s5 = inlined_call_operand.hbm [shape: bf16[128,512], index: 5, kind: input, shape index: {}]
  %s6 = inlined_call_operand.hbm [shape: bf16[128,512], index: 6, kind: input, shape index: {}]
  %s7 = inlined_call_operand.vmem [shape: f32[1,128], index: 7, kind: input, shape index: {}]
  %s8 = inlined_call_operand.vmem [shape: f32[1,128], index: 8, kind: input, shape index: {}]
  %s9 = inlined_call_operand.hbm [shape: f32[128,128], index: 9, kind: input, shape index: {}]
  %s10 = inlined_call_operand.vmem [shape: f32[1,128], index: 10, kind: input, shape index: {}]
  %s11 = inlined_call_operand.hbm [shape: f32[8,128], index: 11, kind: output, shape index: {}]
  %s12 = sld [smem:[#allocation0]]
  $region66: #{net_forward.1} parent=0
    _
  %s14 = ssub.s32 1, %s12
  %s15 = scalar_select 0, %s14, %s12
  $region1: #{net_forward.1} parent=0
    #allocation4 [shape = 'u8[131072]{0}', space=vmem, size = 0x20000, scoped, tag = 'input window, operand 5, single buffered']
    #allocation5 [shape = 's32[1]{0}', space=sflag, size = 0x4, scoped, tag = 'scoped memory for net_forward.1']
    #allocation6 [shape = 's32[1]{0}', space=sflag, size = 0x4, scoped, tag = 'scoped memory for net_forward.1']
    #allocation7 [shape = 'u8[131072]{0}', space=vmem, size = 0x20000, scoped, tag = 'input window, operand 6, single buffered']
    #allocation8 [shape = 's32[1]{0}', space=sflag, size = 0x4, scoped, tag = 'scoped memory for net_forward.1']
    #allocation9 [shape = 'u8[65536]{0}', space=vmem, size = 0x10000, scoped, tag = 'input window, operand 9, single buffered']
    #allocation10 [shape = 'u8[4096]{0}', space=vmem, size = 0x1000, scoped, tag = 'output window, operand 0, single buffered']
    %16 = vsyncpa [#allocation5], 0
    %17 = vsyncpa [#allocation8], 0
    %18 = vsyncpa [#allocation6], 0
    // Predicated region
    $region2: #{net_forward.1} parent=1 // pred_check
      _
    $region3: #{net_forward.1} parent=1 // pred_check_branch
      %20 = sbr.rel (0) target = $region5
    $region4: #{net_forward.1} parent=1 // pred_region
      _
    $region5: #{net_forward.1} parent=1 // pred_fallthru
      _
    // Predicated region
    $region6: #{net_forward.1} parent=1 // pred_check
      _
    $region7: #{net_forward.1} parent=1 // pred_check_branch
      %22 = sbr.rel (0) target = $region9
    $region8: #{net_forward.1} parent=1 // pred_region
      _
    $region9: #{net_forward.1} parent=1 // pred_fallthru
      _
    // Predicated region
    $region10: #{net_forward.1} parent=1 // pred_check
      _
    $region11: #{net_forward.1} parent=1 // pred_check_branch
      %24 = sbr.rel (0) target = $region13
    $region12: #{net_forward.1} parent=1 // pred_region
      _
    $region13: #{net_forward.1} parent=1 // pred_fallthru
      _
    // Predicated region
    $region14: #{net_forward.1} parent=1 // pred_check
      _
    $region15: #{net_forward.1} parent=1 // pred_check_branch
      %26 = sbr.rel (0) target = $region17
    $region16: #{net_forward.1} parent=1 // pred_region
      _
    $region17: #{net_forward.1} parent=1 // pred_fallthru
      _
    // Predicated region
    $region18: #{net_forward.1} parent=1 // pred_check
      _
    $region19: #{net_forward.1} parent=1 // pred_check_branch
      %28 = sbr.rel (0) target = $region21
    $region20: #{net_forward.1} parent=1 // pred_region
      _
    $region21: #{net_forward.1} parent=1 // pred_fallthru
      _
    // Predicated region
    $region22: #{net_forward.1} parent=1 // pred_check
      _
    $region23: #{net_forward.1} parent=1 // pred_check_branch
      %30 = sbr.rel (0) target = $region25
    $region24: #{net_forward.1} parent=1 // pred_region
      %s32 = ssub.s32 4096, 4096
      %33 = vsyncadd [#allocation5], %s32
      %s34 = sshll.u32 [#allocation4], 4
      %s35 = int_to_ptr.vmem [resolvable:$true] %s34
      %40 = dma.hbm_to_vmem [thread:$0]  %s5, 4096, %s35, [#allocation5], 256, 256, 16
    $region25: #{net_forward.1} parent=1 // pred_fallthru
      _
    // Predicated region
    $region26: #{net_forward.1} parent=1 // pred_check
      _
    $region27: #{net_forward.1} parent=1 // pred_check_branch
      %42 = sbr.rel (0) target = $region29
    $region28: #{net_forward.1} parent=1 // pred_region
      %s44 = ssub.s32 4096, 4096
      %45 = vsyncadd [#allocation8], %s44
      %s46 = sshll.u32 [#allocation7], 4
      %s47 = int_to_ptr.vmem [resolvable:$true] %s46
      %52 = dma.hbm_to_vmem [thread:$0]  %s6, 4096, %s47, [#allocation8], 256, 256, 16
    $region29: #{net_forward.1} parent=1 // pred_fallthru
      _
    // Predicated region
    $region30: #{net_forward.1} parent=1 // pred_check
      _
    $region31: #{net_forward.1} parent=1 // pred_check_branch
      %54 = sbr.rel (0) target = $region33
    $region32: #{net_forward.1} parent=1 // pred_region
      _
    $region33: #{net_forward.1} parent=1 // pred_fallthru
      _
    // Predicated region
    $region34: #{net_forward.1} parent=1 // pred_check
      _
    $region35: #{net_forward.1} parent=1 // pred_check_branch
      %56 = sbr.rel (0) target = $region37
    $region36: #{net_forward.1} parent=1 // pred_region
      _
    $region37: #{net_forward.1} parent=1 // pred_fallthru
      _
    // Predicated region
    $region38: #{net_forward.1} parent=1 // pred_check
      _
    $region39: #{net_forward.1} parent=1 // pred_check_branch
      %58 = sbr.rel (0) target = $region41
    $region40: #{net_forward.1} parent=1 // pred_region
      %s60 = ssub.s32 2048, 2048
      %61 = vsyncadd [#allocation8], %s60
      %s62 = sshll.u32 [#allocation9], 4
      %s63 = int_to_ptr.vmem [resolvable:$true] %s62
      %68 = dma.hbm_to_vmem [thread:$0]  %s9, 2048, %s63, [#allocation8], 128, 128, 8
    $region41: #{net_forward.1} parent=1 // pred_fallthru
      _
    // Predicated region
    $region42: #{net_forward.1} parent=1 // pred_check
      _
    $region43: #{net_forward.1} parent=1 // pred_check_branch
      %70 = sbr.rel (0) target = $region45
    $region44: #{net_forward.1} parent=1 // pred_region
      _
    $region45: #{net_forward.1} parent=1 // pred_fallthru
      _
    // Predicated region
    $region46: #{net_forward.1} parent=1 // pred_check
      _
    $region47: #{net_forward.1} parent=1 // pred_check_branch
      %72 = sbr.rel (0) target = $region49
    $region48: #{net_forward.1} parent=1 // pred_region
      %73 = dma.done [#allocation5], 4096
    $region49: #{net_forward.1} parent=1 // pred_fallthru
      _
    // Predicated region
    $region50: #{net_forward.1} parent=1 // pred_check
      _
    $region51: #{net_forward.1} parent=1 // pred_check_branch
      %75 = sbr.rel (0) target = $region53
    $region52: #{net_forward.1} parent=1 // pred_region
      %76 = dma.done [#allocation8], 4096
    $region53: #{net_forward.1} parent=1 // pred_fallthru
      _
    // Predicated region
    $region54: #{net_forward.1} parent=1 // pred_check
      _
    $region55: #{net_forward.1} parent=1 // pred_check_branch
      %78 = sbr.rel (0) target = $region57
    $region56: #{net_forward.1} parent=1 // pred_region
      %79 = dma.done [#allocation8], 2048
    $region57: #{net_forward.1} parent=1 // pred_fallthru
      _
    %v81 = vld [vmem:[%s0] sm:$0xff]
    %v82 = vld [vmem:[%s1] sm:$0x1]
    %v83 = vld [vmem:[%s2] sm:$0x1]
    %vm84 = vcmask 130048
    %v85 = vsel %vm84, %v81, 0.0
    %v86 = vrot.slane %v85, 4
    %v87 = vadd.f32 %v85, %v86
    %v88 = vrot.slane %v87, 2
    %v89 = vadd.f32 %v87, %v88
    %v90 = vrot.slane %v89, 1
    %v91 = vadd.f32 %v89, %v90
    %v92 = vrcp.pop 8.0
    %v93 = vmul.f32 %v91, %v92
    %v94 = vsub.f32 %v81, %v93
    %v95 = vmul.f32 %v94, %v94
    %v96 = vsel %vm84, %v95, 0.0
    %v97 = vrot.slane %v96, 4
    %v98 = vadd.f32 %v96, %v97
    %v99 = vrot.slane %v98, 2
    %v100 = vadd.f32 %v98, %v99
    %v101 = vrot.slane %v100, 1
    %v102 = vadd.f32 %v100, %v101
    %v103 = vmul.f32 %v102, %v92
    %v104 = vadd.f32 %v103, 1e-05
    %v105 = vrsqrt.pop %v104
    %v106 = vmul.f32 %v94, %v105
    %v108 = vlaneseq
    %v109 = vshrl.u32 %v108, 7
    %v110 = vsub.s32 0, %v109
    %v111 = vrot.slane %v82, %v110
    %v113 = vmul.f32 %v106, %v111
    %v115 = vlaneseq
    %v116 = vshrl.u32 %v115, 7
    %v117 = vsub.s32 0, %v116
    %v118 = vrot.slane %v83, %v117
    %v120 = vadd.f32 %v113, %v118
    %v121 = vld [vmem:[%s3] sm:$0xff]
    %v122 = vld [vmem:[%s3 + $0x8] sm:$0xff]
    %v123 = vld [vmem:[%s3 + $0x10] sm:$0xff]
    %v124 = vld [vmem:[%s3 + $0x18] sm:$0xff]
    %v125 = vld [vmem:[%s3 + $0x20] sm:$0xff]
    %v126 = vld [vmem:[%s3 + $0x28] sm:$0xff]
    %v127 = vld [vmem:[%s3 + $0x30] sm:$0xff]
    %v128 = vld [vmem:[%s3 + $0x38] sm:$0xff]
    %v129 = vld [vmem:[%s4] sm:$0xf]
    %v131 = vlaneseq
    %v132 = vshrl.u32 %v131, 7
    %v133 = vsub.s32 0, %v132
    %v134 = vrot.slane %v129, %v133
    %v135 = vlaneseq
    %v136 = vshrl.u32 %v135, 7
    %v137 = vsub.s32 1, %v136
    %v138 = vrot.slane %v129, %v137
    %v139 = vlaneseq
    %v140 = vshrl.u32 %v139, 7
    %v141 = vsub.s32 2, %v140
    %v142 = vrot.slane %v129, %v141
    %v143 = vlaneseq
    %v144 = vshrl.u32 %v143, 7
    %v145 = vsub.s32 3, %v144
    %v146 = vrot.slane %v129, %v145
    %v152 = vsel %vm84, %v120, 0
    %154 = vmatprep.subr.mxu0 %v122
    %155 = vmatpush1.msra.mxu0 %v121
    %156 = vmatprep.subr.mxu0 %v126
    %157 = vmatpush1.msra.mxu0 %v125
    %158 = vmatprep.subr.mxu0 0.0
    %159 = vmatpush1.msra.mxu0 0.0
    %160 = vmatprep.subr.mxu0 0.0
    %161 = vmatpush1.msra.mxu0 0.0
    %162 = vmatprep.subr.mxu0 0.0
    %163 = vmatpush1.msra.mxu0 0.0
    %164 = vmatprep.subr.mxu0 0.0
    %165 = vmatpush1.msra.mxu0 0.0
    %166 = vmatprep.subr.mxu0 0.0
    %167 = vmatpush1.msra.mxu0 0.0
    %168 = vmatprep.subr.mxu0 0.0
    %169 = vmatpush1.msra.mxu0 0.0
    %170 = vmatprep.subr.mxu0 0.0
    %171 = vmatpush1.msra.mxu0 0.0
    %172 = vmatprep.subr.mxu0 0.0
    %173 = vmatpush1.msra.mxu0 0.0
    %174 = vmatprep.subr.mxu0 0.0
    %175 = vmatpush1.msra.mxu0 0.0
    %176 = vmatprep.subr.mxu0 0.0
    %177 = vmatpush1.msra.mxu0 0.0
    %178 = vmatprep.subr.mxu0 0.0
    %179 = vmatpush1.msra.mxu0 0.0
    %180 = vmatprep.subr.mxu0 0.0
    %181 = vmatpush1.msra.mxu0 0.0
    %182 = vmatprep.subr.mxu0 0.0
    %183 = vmatpush1.msra.mxu0 0.0
    %184 = vmatprep.subr.mxu0 0.0
    %185 = vmatpush1.msra.mxu0 0.0
    %186 = vmatprep.subr.mxu0 0.0
    %187 = vmatpush1.msra.mxu0 0.0
    %188 = vmatprep.subr.mxu0 0.0
    %189 = vmatpush1.msra.mxu0 0.0
    %190 = vmatprep.subr.mxu0 0.0
    %191 = vmatpush1.msra.mxu0 0.0
    %192 = vmatprep.subr.mxu0 0.0
    %193 = vmatpush1.msra.mxu0 0.0
    %194 = vmatprep.subr.mxu0 0.0
    %195 = vmatpush1.msra.mxu0 0.0
    %196 = vmatprep.subr.mxu0 0.0
    %197 = vmatpush1.msra.mxu0 0.0
    %198 = vmatprep.subr.mxu0 0.0
    %199 = vmatpush1.msra.mxu0 0.0
    %200 = vmatprep.subr.mxu0 0.0
    %201 = vmatpush1.msra.mxu0 0.0
    %202 = vmatprep.subr.mxu0 0.0
    %203 = vmatpush1.msra.mxu0 0.0
    %204 = vmatprep.subr.mxu0 0.0
    %205 = vmatpush1.msra.mxu0 0.0
    %206 = vmatprep.subr.mxu0 0.0
    %207 = vmatpush1.msra.mxu0 0.0
    %208 = vmatprep.subr.mxu0 0.0
    %209 = vmatpush1.msra.mxu0 0.0
    %210 = vmatprep.subr.mxu0 0.0
    %211 = vmatpush1.msra.mxu0 0.0
    %212 = vmatprep.subr.mxu0 0.0
    %213 = vmatpush1.msra.mxu0 0.0
    %214 = vmatprep.subr.mxu0 0.0
    %215 = vmatpush1.msra.mxu0 0.0
    %216 = vmatprep.subr.mxu0 0.0
    %217 = vmatpush1.msra.mxu0 0.0
    %218 = vmatprep.mubr.f32.mxu0 0.0
    %219 = vmatmul.mubr.f32.gmra.mrb[0].mxu0 %v152
    %v220 = vpop.f32.mrb[0].mxu0
    %v221 = vadd.f32 %v134, %v220
    %v222 = vpop.f32.mrb[0].mxu0
    %v223 = vadd.f32 %v138, %v222
    %224 = vdwg.mxu0
    %225 = vmatprep.subr.mxu0 %v124
    %226 = vmatpush1.msra.mxu0 %v123
    %227 = vmatprep.subr.mxu0 %v128
    %228 = vmatpush1.msra.mxu0 %v127
    %229 = vmatprep.subr.mxu0 0.0
    %230 = vmatpush1.msra.mxu0 0.0
    %231 = vmatprep.subr.mxu0 0.0
    %232 = vmatpush1.msra.mxu0 0.0
    %233 = vmatprep.subr.mxu0 0.0
    %234 = vmatpush1.msra.mxu0 0.0
    %235 = vmatprep.subr.mxu0 0.0
    %236 = vmatpush1.msra.mxu0 0.0
    %237 = vmatprep.subr.mxu0 0.0
    %238 = vmatpush1.msra.mxu0 0.0
    %239 = vmatprep.subr.mxu0 0.0
    %240 = vmatpush1.msra.mxu0 0.0
    %241 = vmatprep.subr.mxu0 0.0
    %242 = vmatpush1.msra.mxu0 0.0
    %243 = vmatprep.subr.mxu0 0.0
    %244 = vmatpush1.msra.mxu0 0.0
    %245 = vmatprep.subr.mxu0 0.0
    %246 = vmatpush1.msra.mxu0 0.0
    %247 = vmatprep.subr.mxu0 0.0
    %248 = vmatpush1.msra.mxu0 0.0
    %249 = vmatprep.subr.mxu0 0.0
    %250 = vmatpush1.msra.mxu0 0.0
    %251 = vmatprep.subr.mxu0 0.0
    %252 = vmatpush1.msra.mxu0 0.0
    %253 = vmatprep.subr.mxu0 0.0
    %254 = vmatpush1.msra.mxu0 0.0
    %255 = vmatprep.subr.mxu0 0.0
    %256 = vmatpush1.msra.mxu0 0.0
    %257 = vmatprep.subr.mxu0 0.0
    %258 = vmatpush1.msra.mxu0 0.0
    %259 = vmatprep.subr.mxu0 0.0
    %260 = vmatpush1.msra.mxu0 0.0
    %261 = vmatprep.subr.mxu0 0.0
    %262 = vmatpush1.msra.mxu0 0.0
    %263 = vmatprep.subr.mxu0 0.0
    %264 = vmatpush1.msra.mxu0 0.0
    %265 = vmatprep.subr.mxu0 0.0
    %266 = vmatpush1.msra.mxu0 0.0
    %267 = vmatprep.subr.mxu0 0.0
    %268 = vmatpush1.msra.mxu0 0.0
    %269 = vmatprep.subr.mxu0 0.0
    %270 = vmatpush1.msra.mxu0 0.0
    %271 = vmatprep.subr.mxu0 0.0
    %272 = vmatpush1.msra.mxu0 0.0
    %273 = vmatprep.subr.mxu0 0.0
    %274 = vmatpush1.msra.mxu0 0.0
    %275 = vmatprep.subr.mxu0 0.0
    %276 = vmatpush1.msra.mxu0 0.0
    %277 = vmatprep.subr.mxu0 0.0
    %278 = vmatpush1.msra.mxu0 0.0
    %279 = vmatprep.subr.mxu0 0.0
    %280 = vmatpush1.msra.mxu0 0.0
    %281 = vmatprep.subr.mxu0 0.0
    %282 = vmatpush1.msra.mxu0 0.0
    %283 = vmatprep.subr.mxu0 0.0
    %284 = vmatpush1.msra.mxu0 0.0
    %285 = vmatprep.subr.mxu0 0.0
    %286 = vmatpush1.msra.mxu0 0.0
    %287 = vmatprep.subr.mxu0 0.0
    %288 = vmatpush1.msra.mxu0 0.0
    %289 = vmatprep.mubr.f32.mxu0 0.0
    %290 = vmatmul.mubr.f32.gmra.mrb[0].mxu0 %v152
    %v291 = vpop.f32.mrb[0].mxu0
    %v292 = vadd.f32 %v142, %v291
    %v293 = vpop.f32.mrb[0].mxu0
    %v294 = vadd.f32 %v146, %v293
    %295 = vdwg.mxu0
    %296 = vst [vmem:[#allocation2] sm:$0xff] %v221
    %297 = vst [vmem:[#allocation2 + $0x8] sm:$0xff] %v223
    %298 = vst [vmem:[#allocation2 + $0x10] sm:$0xff] %v292
    %299 = vst [vmem:[#allocation2 + $0x18] sm:$0xff] %v294
    %v300 = vld [vmem:[#allocation4] sm:$0xff]
    %v301 = vld [vmem:[#allocation4 + $0x8] sm:$0xff]
    %v302 = vld [vmem:[#allocation4 + $0x10] sm:$0xff]
    %v303 = vld [vmem:[#allocation4 + $0x18] sm:$0xff]
    %v304 = vld [vmem:[#allocation4 + $0x20] sm:$0xff]
    %v305 = vld [vmem:[#allocation4 + $0x28] sm:$0xff]
    %v306 = vld [vmem:[#allocation4 + $0x30] sm:$0xff]
    %v307 = vld [vmem:[#allocation4 + $0x38] sm:$0xff]
    %v308 = vld [vmem:[#allocation4 + $0x40] sm:$0xff]
    %v309 = vld [vmem:[#allocation4 + $0x48] sm:$0xff]
    %v310 = vld [vmem:[#allocation4 + $0x50] sm:$0xff]
    %v311 = vld [vmem:[#allocation4 + $0x58] sm:$0xff]
    %v312 = vld [vmem:[#allocation4 + $0x60] sm:$0xff]
    %v313 = vld [vmem:[#allocation4 + $0x68] sm:$0xff]
    %v314 = vld [vmem:[#allocation4 + $0x70] sm:$0xff]
    %v315 = vld [vmem:[#allocation4 + $0x78] sm:$0xff]
    %v316 = vld [vmem:[#allocation4 + $0x80] sm:$0xff]
    %v317 = vld [vmem:[#allocation4 + $0x88] sm:$0xff]
    %v318 = vld [vmem:[#allocation4 + $0x90] sm:$0xff]
    %v319 = vld [vmem:[#allocation4 + $0x98] sm:$0xff]
    %v320 = vld [vmem:[#allocation4 + $0xa0] sm:$0xff]
    %v321 = vld [vmem:[#allocation4 + $0xa8] sm:$0xff]
    %v322 = vld [vmem:[#allocation4 + $0xb0] sm:$0xff]
    %v323 = vld [vmem:[#allocation4 + $0xb8] sm:$0xff]
    %v324 = vld [vmem:[#allocation4 + $0xc0] sm:$0xff]
    %v325 = vld [vmem:[#allocation4 + $0xc8] sm:$0xff]
    %v326 = vld [vmem:[#allocation4 + $0xd0] sm:$0xff]
    %v327 = vld [vmem:[#allocation4 + $0xd8] sm:$0xff]
    %v328 = vld [vmem:[#allocation4 + $0xe0] sm:$0xff]
    %v329 = vld [vmem:[#allocation4 + $0xe8] sm:$0xff]
    %v330 = vld [vmem:[#allocation4 + $0xf0] sm:$0xff]
    %v331 = vld [vmem:[#allocation4 + $0xf8] sm:$0xff]
    %v332 = vld [vmem:[#allocation7] sm:$0xff]
    %v333 = vld [vmem:[#allocation7 + $0x8] sm:$0xff]
    %v334 = vld [vmem:[#allocation7 + $0x10] sm:$0xff]
    %v335 = vld [vmem:[#allocation7 + $0x18] sm:$0xff]
    %v336 = vld [vmem:[#allocation7 + $0x20] sm:$0xff]
    %v337 = vld [vmem:[#allocation7 + $0x28] sm:$0xff]
    %v338 = vld [vmem:[#allocation7 + $0x30] sm:$0xff]
    %v339 = vld [vmem:[#allocation7 + $0x38] sm:$0xff]
    %v340 = vld [vmem:[#allocation7 + $0x40] sm:$0xff]
    %v341 = vld [vmem:[#allocation7 + $0x48] sm:$0xff]
    %v342 = vld [vmem:[#allocation7 + $0x50] sm:$0xff]
    %v343 = vld [vmem:[#allocation7 + $0x58] sm:$0xff]
    %v344 = vld [vmem:[#allocation7 + $0x60] sm:$0xff]
    %v345 = vld [vmem:[#allocation7 + $0x68] sm:$0xff]
    %v346 = vld [vmem:[#allocation7 + $0x70] sm:$0xff]
    %v347 = vld [vmem:[#allocation7 + $0x78] sm:$0xff]
    %v348 = vld [vmem:[#allocation7 + $0x80] sm:$0xff]
    %v349 = vld [vmem:[#allocation7 + $0x88] sm:$0xff]
    %v350 = vld [vmem:[#allocation7 + $0x90] sm:$0xff]
    %v351 = vld [vmem:[#allocation7 + $0x98] sm:$0xff]
    %v352 = vld [vmem:[#allocation7 + $0xa0] sm:$0xff]
    %v353 = vld [vmem:[#allocation7 + $0xa8] sm:$0xff]
    %v354 = vld [vmem:[#allocation7 + $0xb0] sm:$0xff]
    %v355 = vld [vmem:[#allocation7 + $0xb8] sm:$0xff]
    %v356 = vld [vmem:[#allocation7 + $0xc0] sm:$0xff]
    %v357 = vld [vmem:[#allocation7 + $0xc8] sm:$0xff]
    %v358 = vld [vmem:[#allocation7 + $0xd0] sm:$0xff]
    %v359 = vld [vmem:[#allocation7 + $0xd8] sm:$0xff]
    %v360 = vld [vmem:[#allocation7 + $0xe0] sm:$0xff]
    %v361 = vld [vmem:[#allocation7 + $0xe8] sm:$0xff]
    %v362 = vld [vmem:[#allocation7 + $0xf0] sm:$0xff]
    %v363 = vld [vmem:[#allocation7 + $0xf8] sm:$0xff]
    %v396 = vunpack.c.l.b16 %v332
    %v397 = vunpack.c.h.b16 %v332
    %v398 = vunpack.c.l.b16 %v333
    %v399 = vunpack.c.h.b16 %v333
    %v400 = vunpack.c.l.b16 %v334
    %v401 = vunpack.c.h.b16 %v334
    %v402 = vunpack.c.l.b16 %v335
    %v403 = vunpack.c.h.b16 %v335
    %v404 = vunpack.c.l.b16 %v336
    %v405 = vunpack.c.h.b16 %v336
    %v406 = vunpack.c.l.b16 %v337
    %v407 = vunpack.c.h.b16 %v337
    %v408 = vunpack.c.l.b16 %v338
    %v409 = vunpack.c.h.b16 %v338
    %v410 = vunpack.c.l.b16 %v339
    %v411 = vunpack.c.h.b16 %v339
    %v412 = vunpack.c.l.b16 %v340
    %v413 = vunpack.c.h.b16 %v340
    %v414 = vunpack.c.l.b16 %v341
    %v415 = vunpack.c.h.b16 %v341
    %v416 = vunpack.c.l.b16 %v342
    %v417 = vunpack.c.h.b16 %v342
    %v418 = vunpack.c.l.b16 %v343
    %v419 = vunpack.c.h.b16 %v343
    %v420 = vunpack.c.l.b16 %v344
    %v421 = vunpack.c.h.b16 %v344
    %v422 = vunpack.c.l.b16 %v345
    %v423 = vunpack.c.h.b16 %v345
    %v424 = vunpack.c.l.b16 %v346
    %v425 = vunpack.c.h.b16 %v346
    %v426 = vunpack.c.l.b16 %v347
    %v427 = vunpack.c.h.b16 %v347
    %v428 = vunpack.c.l.b16 %v348
    %v429 = vunpack.c.h.b16 %v348
    %v430 = vunpack.c.l.b16 %v349
    %v431 = vunpack.c.h.b16 %v349
    %v432 = vunpack.c.l.b16 %v350
    %v433 = vunpack.c.h.b16 %v350
    %v434 = vunpack.c.l.b16 %v351
    %v435 = vunpack.c.h.b16 %v351
    %v436 = vunpack.c.l.b16 %v352
    %v437 = vunpack.c.h.b16 %v352
    %v438 = vunpack.c.l.b16 %v353
    %v439 = vunpack.c.h.b16 %v353
    %v440 = vunpack.c.l.b16 %v354
    %v441 = vunpack.c.h.b16 %v354
    %v442 = vunpack.c.l.b16 %v355
    %v443 = vunpack.c.h.b16 %v355
    %v444 = vunpack.c.l.b16 %v356
    %v445 = vunpack.c.h.b16 %v356
    %v446 = vunpack.c.l.b16 %v357
    %v447 = vunpack.c.h.b16 %v357
    %v448 = vunpack.c.l.b16 %v358
    %v449 = vunpack.c.h.b16 %v358
    %v450 = vunpack.c.l.b16 %v359
    %v451 = vunpack.c.h.b16 %v359
    %v452 = vunpack.c.l.b16 %v360
    %v453 = vunpack.c.h.b16 %v360
    %v454 = vunpack.c.l.b16 %v361
    %v455 = vunpack.c.h.b16 %v361
    %v456 = vunpack.c.l.b16 %v362
    %v457 = vunpack.c.h.b16 %v362
    %v458 = vunpack.c.l.b16 %v363
    %v459 = vunpack.c.h.b16 %v363
    %v460 = vpack.c.b16 %v400, %v396
    %v461 = vpack.c.b16 %v401, %v397
    %v462 = vpack.c.b16 %v402, %v398
    %v463 = vpack.c.b16 %v403, %v399
    %v464 = vpack.c.b16 %v408, %v404
    %v465 = vpack.c.b16 %v409, %v405
    %v466 = vpack.c.b16 %v410, %v406
    %v467 = vpack.c.b16 %v411, %v407
    %v468 = vpack.c.b16 %v416, %v412
    %v469 = vpack.c.b16 %v417, %v413
    %v470 = vpack.c.b16 %v418, %v414
    %v471 = vpack.c.b16 %v419, %v415
    %v472 = vpack.c.b16 %v424, %v420
    %v473 = vpack.c.b16 %v425, %v421
    %v474 = vpack.c.b16 %v426, %v422
    %v475 = vpack.c.b16 %v427, %v423
    %v476 = vpack.c.b16 %v432, %v428
    %v477 = vpack.c.b16 %v433, %v429
    %v478 = vpack.c.b16 %v434, %v430
    %v479 = vpack.c.b16 %v435, %v431
    %v480 = vpack.c.b16 %v440, %v436
    %v481 = vpack.c.b16 %v441, %v437
    %v482 = vpack.c.b16 %v442, %v438
    %v483 = vpack.c.b16 %v443, %v439
    %v484 = vpack.c.b16 %v448, %v444
    %v485 = vpack.c.b16 %v449, %v445
    %v486 = vpack.c.b16 %v450, %v446
    %v487 = vpack.c.b16 %v451, %v447
    %v488 = vpack.c.b16 %v456, %v452
    %v489 = vpack.c.b16 %v457, %v453
    %v490 = vpack.c.b16 %v458, %v454
    %v491 = vpack.c.b16 %v459, %v455
    %524 = vmatprep.subr.bf16.mxu0 %v461
    %525 = vmatpush1.bf16.msra.mxu0 %v460
    %526 = vmatprep.subr.bf16.mxu0 %v465
    %527 = vmatpush1.bf16.msra.mxu0 %v464
    %528 = vmatprep.subr.bf16.mxu0 %v469
    %529 = vmatpush1.bf16.msra.mxu0 %v468
    %530 = vmatprep.subr.bf16.mxu0 %v473
    %531 = vmatpush1.bf16.msra.mxu0 %v472
    %532 = vmatprep.subr.bf16.mxu0 %v477
    %533 = vmatpush1.bf16.msra.mxu0 %v476
    %534 = vmatprep.subr.bf16.mxu0 %v481
    %535 = vmatpush1.bf16.msra.mxu0 %v480
    %536 = vmatprep.subr.bf16.mxu0 %v485
    %537 = vmatpush1.bf16.msra.mxu0 %v484
    %538 = vmatprep.subr.bf16.mxu0 %v489
    %539 = vmatpush1.bf16.msra.mxu0 %v488
    %540 = vmatprep.subr.bf16.mxu0 0
    %541 = vmatpush1.bf16.msra.mxu0 0
    %542 = vmatprep.subr.bf16.mxu0 0
    %543 = vmatpush1.bf16.msra.mxu0 0
    %544 = vmatprep.subr.bf16.mxu0 0
    %545 = vmatpush1.bf16.msra.mxu0 0
    %546 = vmatprep.subr.bf16.mxu0 0
    %547 = vmatpush1.bf16.msra.mxu0 0
    %548 = vmatprep.subr.bf16.mxu0 0
    %549 = vmatpush1.bf16.msra.mxu0 0
    %550 = vmatprep.subr.bf16.mxu0 0
    %551 = vmatpush1.bf16.msra.mxu0 0
    %552 = vmatprep.subr.bf16.mxu0 0
    %553 = vmatpush1.bf16.msra.mxu0 0
    %554 = vmatprep.subr.bf16.mxu0 0
    %555 = vmatpush1.bf16.msra.mxu0 0
    %556 = vmatprep.mubr.bf16.mxu0 0
    %557 = vmatmul.mubr.bf16.gmra.mrb[0].mxu0 0
    %v558 = vpop.f32.mrb[0].mxu0
    %v559 = vadd.f32 0.0, %v558
    %v560 = vpop.f32.mrb[0].mxu0
    %v561 = vadd.f32 0.0, %v560
    %v562 = vpop.f32.mrb[0].mxu0
    %v563 = vpop.f32.mrb[0].mxu0
    %564 = vdwg.mxu0
    %565 = vmatprep.subr.bf16.mxu0 %v463
    %566 = vmatpush1.bf16.msra.mxu0 %v462
    %567 = vmatprep.subr.bf16.mxu0 %v467
    %568 = vmatpush1.bf16.msra.mxu0 %v466
    %569 = vmatprep.subr.bf16.mxu0 %v471
    %570 = vmatpush1.bf16.msra.mxu0 %v470
    %571 = vmatprep.subr.bf16.mxu0 %v475
    %572 = vmatpush1.bf16.msra.mxu0 %v474
    %573 = vmatprep.subr.bf16.mxu0 %v479
    %574 = vmatpush1.bf16.msra.mxu0 %v478
    %575 = vmatprep.subr.bf16.mxu0 %v483
    %576 = vmatpush1.bf16.msra.mxu0 %v482
    %577 = vmatprep.subr.bf16.mxu0 %v487
    %578 = vmatpush1.bf16.msra.mxu0 %v486
    %579 = vmatprep.subr.bf16.mxu0 %v491
    %580 = vmatpush1.bf16.msra.mxu0 %v490
    %581 = vmatprep.subr.bf16.mxu0 0
    %582 = vmatpush1.bf16.msra.mxu0 0
    %583 = vmatprep.subr.bf16.mxu0 0
    %584 = vmatpush1.bf16.msra.mxu0 0
    %585 = vmatprep.subr.bf16.mxu0 0
    %586 = vmatpush1.bf16.msra.mxu0 0
    %587 = vmatprep.subr.bf16.mxu0 0
    %588 = vmatpush1.bf16.msra.mxu0 0
    %589 = vmatprep.subr.bf16.mxu0 0
    %590 = vmatpush1.bf16.msra.mxu0 0
    %591 = vmatprep.subr.bf16.mxu0 0
    %592 = vmatpush1.bf16.msra.mxu0 0
    %593 = vmatprep.subr.bf16.mxu0 0
    %594 = vmatpush1.bf16.msra.mxu0 0
    %595 = vmatprep.subr.bf16.mxu0 0
    %596 = vmatpush1.bf16.msra.mxu0 0
    %597 = vmatprep.mubr.bf16.mxu0 0
    %598 = vmatmul.mubr.bf16.gmra.mrb[0].mxu0 0
    %v599 = vpop.f32.mrb[0].mxu0
    %v600 = vadd.f32 0.0, %v599
    %v601 = vpop.f32.mrb[0].mxu0
    %v602 = vadd.f32 0.0, %v601
    %v603 = vpop.f32.mrb[0].mxu0
    %v604 = vpop.f32.mrb[0].mxu0
    %605 = vdwg.mxu0
    %v638 = vunpack.c.l.b16 %v300
    %v639 = vunpack.c.h.b16 %v300
    %v640 = vunpack.c.l.b16 %v301
    %v641 = vunpack.c.h.b16 %v301
    %v642 = vunpack.c.l.b16 %v302
    %v643 = vunpack.c.h.b16 %v302
    %v644 = vunpack.c.l.b16 %v303
    %v645 = vunpack.c.h.b16 %v303
    %v646 = vunpack.c.l.b16 %v304
    %v647 = vunpack.c.h.b16 %v304
    %v648 = vunpack.c.l.b16 %v305
    %v649 = vunpack.c.h.b16 %v305
    %v650 = vunpack.c.l.b16 %v306
    %v651 = vunpack.c.h.b16 %v306
    %v652 = vunpack.c.l.b16 %v307
    %v653 = vunpack.c.h.b16 %v307
    %v654 = vunpack.c.l.b16 %v308
    %v655 = vunpack.c.h.b16 %v308
    %v656 = vunpack.c.l.b16 %v309
    %v657 = vunpack.c.h.b16 %v309
    %v658 = vunpack.c.l.b16 %v310
    %v659 = vunpack.c.h.b16 %v310
    %v660 = vunpack.c.l.b16 %v311
    %v661 = vunpack.c.h.b16 %v311
    %v662 = vunpack.c.l.b16 %v312
    %v663 = vunpack.c.h.b16 %v312
    %v664 = vunpack.c.l.b16 %v313
    %v665 = vunpack.c.h.b16 %v313
    %v666 = vunpack.c.l.b16 %v314
    %v667 = vunpack.c.h.b16 %v314
    %v668 = vunpack.c.l.b16 %v315
    %v669 = vunpack.c.h.b16 %v315
    %v670 = vunpack.c.l.b16 %v316
    %v671 = vunpack.c.h.b16 %v316
    %v672 = vunpack.c.l.b16 %v317
    %v673 = vunpack.c.h.b16 %v317
    %v674 = vunpack.c.l.b16 %v318
    %v675 = vunpack.c.h.b16 %v318
    %v676 = vunpack.c.l.b16 %v319
    %v677 = vunpack.c.h.b16 %v319
    %v678 = vunpack.c.l.b16 %v320
    %v679 = vunpack.c.h.b16 %v320
    %v680 = vunpack.c.l.b16 %v321
    %v681 = vunpack.c.h.b16 %v321
    %v682 = vunpack.c.l.b16 %v322
    %v683 = vunpack.c.h.b16 %v322
    %v684 = vunpack.c.l.b16 %v323
    %v685 = vunpack.c.h.b16 %v323
    %v686 = vunpack.c.l.b16 %v324
    %v687 = vunpack.c.h.b16 %v324
    %v688 = vunpack.c.l.b16 %v325
    %v689 = vunpack.c.h.b16 %v325
    %v690 = vunpack.c.l.b16 %v326
    %v691 = vunpack.c.h.b16 %v326
    %v692 = vunpack.c.l.b16 %v327
    %v693 = vunpack.c.h.b16 %v327
    %v694 = vunpack.c.l.b16 %v328
    %v695 = vunpack.c.h.b16 %v328
    %v696 = vunpack.c.l.b16 %v329
    %v697 = vunpack.c.h.b16 %v329
    %v698 = vunpack.c.l.b16 %v330
    %v699 = vunpack.c.h.b16 %v330
    %v700 = vunpack.c.l.b16 %v331
    %v701 = vunpack.c.h.b16 %v331
    %v702 = vpack.c.b16 %v642, %v638
    %v703 = vpack.c.b16 %v643, %v639
    %v704 = vpack.c.b16 %v644, %v640
    %v705 = vpack.c.b16 %v645, %v641
    %v706 = vpack.c.b16 %v650, %v646
    %v707 = vpack.c.b16 %v651, %v647
    %v708 = vpack.c.b16 %v652, %v648
    %v709 = vpack.c.b16 %v653, %v649
    %v710 = vpack.c.b16 %v658, %v654
    %v711 = vpack.c.b16 %v659, %v655
    %v712 = vpack.c.b16 %v660, %v656
    %v713 = vpack.c.b16 %v661, %v657
    %v714 = vpack.c.b16 %v666, %v662
    %v715 = vpack.c.b16 %v667, %v663
    %v716 = vpack.c.b16 %v668, %v664
    %v717 = vpack.c.b16 %v669, %v665
    %v718 = vpack.c.b16 %v674, %v670
    %v719 = vpack.c.b16 %v675, %v671
    %v720 = vpack.c.b16 %v676, %v672
    %v721 = vpack.c.b16 %v677, %v673
    %v722 = vpack.c.b16 %v682, %v678
    %v723 = vpack.c.b16 %v683, %v679
    %v724 = vpack.c.b16 %v684, %v680
    %v725 = vpack.c.b16 %v685, %v681
    %v726 = vpack.c.b16 %v690, %v686
    %v727 = vpack.c.b16 %v691, %v687
    %v728 = vpack.c.b16 %v692, %v688
    %v729 = vpack.c.b16 %v693, %v689
    %v730 = vpack.c.b16 %v698, %v694
    %v731 = vpack.c.b16 %v699, %v695
    %v732 = vpack.c.b16 %v700, %v696
    %v733 = vpack.c.b16 %v701, %v697
    %766 = vmatprep.subr.bf16.mxu0 %v703
    %767 = vmatpush1.bf16.msra.mxu0 %v702
    %768 = vmatprep.subr.bf16.mxu0 %v707
    %769 = vmatpush1.bf16.msra.mxu0 %v706
    %770 = vmatprep.subr.bf16.mxu0 %v711
    %771 = vmatpush1.bf16.msra.mxu0 %v710
    %772 = vmatprep.subr.bf16.mxu0 %v715
    %773 = vmatpush1.bf16.msra.mxu0 %v714
    %774 = vmatprep.subr.bf16.mxu0 %v719
    %775 = vmatpush1.bf16.msra.mxu0 %v718
    %776 = vmatprep.subr.bf16.mxu0 %v723
    %777 = vmatpush1.bf16.msra.mxu0 %v722
    %778 = vmatprep.subr.bf16.mxu0 %v727
    %779 = vmatpush1.bf16.msra.mxu0 %v726
    %780 = vmatprep.subr.bf16.mxu0 %v731
    %781 = vmatpush1.bf16.msra.mxu0 %v730
    %782 = vmatprep.subr.bf16.mxu0 0
    %783 = vmatpush1.bf16.msra.mxu0 0
    %784 = vmatprep.subr.bf16.mxu0 0
    %785 = vmatpush1.bf16.msra.mxu0 0
    %786 = vmatprep.subr.bf16.mxu0 0
    %787 = vmatpush1.bf16.msra.mxu0 0
    %788 = vmatprep.subr.bf16.mxu0 0
    %789 = vmatpush1.bf16.msra.mxu0 0
    %790 = vmatprep.subr.bf16.mxu0 0
    %791 = vmatpush1.bf16.msra.mxu0 0
    %792 = vmatprep.subr.bf16.mxu0 0
    %793 = vmatpush1.bf16.msra.mxu0 0
    %794 = vmatprep.subr.bf16.mxu0 0
    %795 = vmatpush1.bf16.msra.mxu0 0
    %796 = vmatprep.subr.bf16.mxu0 0
    %797 = vmatpush1.bf16.msra.mxu0 0
    %798 = vmatprep.mubr.bf16.mxu0 0
    %799 = vmatmul.mubr.bf16.gmra.mrb[0].mxu0 0
    %v800 = vpop.f32.mrb[0].mxu0
    %v801 = vadd.f32 %v559, %v800
    %v802 = vpop.f32.mrb[0].mxu0
    %v803 = vadd.f32 %v561, %v802
    %v804 = vpop.f32.mrb[0].mxu0
    %v805 = vpop.f32.mrb[0].mxu0
    %806 = vdwg.mxu0
    %807 = vmatprep.subr.bf16.mxu0 %v705
    %808 = vmatpush1.bf16.msra.mxu0 %v704
    %809 = vmatprep.subr.bf16.mxu0 %v709
    %810 = vmatpush1.bf16.msra.mxu0 %v708
    %811 = vmatprep.subr.bf16.mxu0 %v713
    %812 = vmatpush1.bf16.msra.mxu0 %v712
    %813 = vmatprep.subr.bf16.mxu0 %v717
    %814 = vmatpush1.bf16.msra.mxu0 %v716
    %815 = vmatprep.subr.bf16.mxu0 %v721
    %816 = vmatpush1.bf16.msra.mxu0 %v720
    %817 = vmatprep.subr.bf16.mxu0 %v725
    %818 = vmatpush1.bf16.msra.mxu0 %v724
    %819 = vmatprep.subr.bf16.mxu0 %v729
    %820 = vmatpush1.bf16.msra.mxu0 %v728
    %821 = vmatprep.subr.bf16.mxu0 %v733
    %822 = vmatpush1.bf16.msra.mxu0 %v732
    %823 = vmatprep.subr.bf16.mxu0 0
    %824 = vmatpush1.bf16.msra.mxu0 0
    %825 = vmatprep.subr.bf16.mxu0 0
    %826 = vmatpush1.bf16.msra.mxu0 0
    %827 = vmatprep.subr.bf16.mxu0 0
    %828 = vmatpush1.bf16.msra.mxu0 0
    %829 = vmatprep.subr.bf16.mxu0 0
    %830 = vmatpush1.bf16.msra.mxu0 0
    %831 = vmatprep.subr.bf16.mxu0 0
    %832 = vmatpush1.bf16.msra.mxu0 0
    %833 = vmatprep.subr.bf16.mxu0 0
    %834 = vmatpush1.bf16.msra.mxu0 0
    %835 = vmatprep.subr.bf16.mxu0 0
    %836 = vmatpush1.bf16.msra.mxu0 0
    %837 = vmatprep.subr.bf16.mxu0 0
    %838 = vmatpush1.bf16.msra.mxu0 0
    %839 = vmatprep.mubr.bf16.mxu0 0
    %840 = vmatmul.mubr.bf16.gmra.mrb[0].mxu0 0
    %v841 = vpop.f32.mrb[0].mxu0
    %v842 = vadd.f32 %v600, %v841
    %v843 = vpop.f32.mrb[0].mxu0
    %v844 = vadd.f32 %v602, %v843
    %v845 = vpop.f32.mrb[0].mxu0
    %v846 = vpop.f32.mrb[0].mxu0
    %847 = vdwg.mxu0
    %848 = vmatprep.subr.bf16.mxu0 %v703
    %849 = vmatpush1.bf16.msra.mxu0 %v702
    %850 = vmatprep.subr.bf16.mxu0 %v707
    %851 = vmatpush1.bf16.msra.mxu0 %v706
    %852 = vmatprep.subr.bf16.mxu0 %v711
    %853 = vmatpush1.bf16.msra.mxu0 %v710
    %854 = vmatprep.subr.bf16.mxu0 %v715
    %855 = vmatpush1.bf16.msra.mxu0 %v714
    %856 = vmatprep.subr.bf16.mxu0 %v719
    %857 = vmatpush1.bf16.msra.mxu0 %v718
    %858 = vmatprep.subr.bf16.mxu0 %v723
    %859 = vmatpush1.bf16.msra.mxu0 %v722
    %860 = vmatprep.subr.bf16.mxu0 %v727
    %861 = vmatpush1.bf16.msra.mxu0 %v726
    %862 = vmatprep.subr.bf16.mxu0 %v731
    %863 = vmatpush1.bf16.msra.mxu0 %v730
    %864 = vmatprep.subr.bf16.mxu0 0
    %865 = vmatpush1.bf16.msra.mxu0 0
    %866 = vmatprep.subr.bf16.mxu0 0
    %867 = vmatpush1.bf16.msra.mxu0 0
    %868 = vmatprep.subr.bf16.mxu0 0
    %869 = vmatpush1.bf16.msra.mxu0 0
    %870 = vmatprep.subr.bf16.mxu0 0
    %871 = vmatpush1.bf16.msra.mxu0 0
    %872 = vmatprep.subr.bf16.mxu0 0
    %873 = vmatpush1.bf16.msra.mxu0 0
    %874 = vmatprep.subr.bf16.mxu0 0
    %875 = vmatpush1.bf16.msra.mxu0 0
    %876 = vmatprep.subr.bf16.mxu0 0
    %877 = vmatpush1.bf16.msra.mxu0 0
    %878 = vmatprep.subr.bf16.mxu0 0
    %879 = vmatpush1.bf16.msra.mxu0 0
    %880 = vmatprep.mubr.bf16.mxu0 0
    %881 = vmatmul.mubr.bf16.gmra.mrb[0].mxu0 0
    %v882 = vpop.f32.mrb[0].mxu0
    %v883 = vadd.f32 0.0, %v882
    %v884 = vpop.f32.mrb[0].mxu0
    %v885 = vadd.f32 0.0, %v884
    %v886 = vpop.f32.mrb[0].mxu0
    %v887 = vpop.f32.mrb[0].mxu0
    %888 = vdwg.mxu0
    %889 = vmatprep.subr.bf16.mxu0 %v705
    %890 = vmatpush1.bf16.msra.mxu0 %v704
    %891 = vmatprep.subr.bf16.mxu0 %v709
    %892 = vmatpush1.bf16.msra.mxu0 %v708
    %893 = vmatprep.subr.bf16.mxu0 %v713
    %894 = vmatpush1.bf16.msra.mxu0 %v712
    %895 = vmatprep.subr.bf16.mxu0 %v717
    %896 = vmatpush1.bf16.msra.mxu0 %v716
    %897 = vmatprep.subr.bf16.mxu0 %v721
    %898 = vmatpush1.bf16.msra.mxu0 %v720
    %899 = vmatprep.subr.bf16.mxu0 %v725
    %900 = vmatpush1.bf16.msra.mxu0 %v724
    %901 = vmatprep.subr.bf16.mxu0 %v729
    %902 = vmatpush1.bf16.msra.mxu0 %v728
    %903 = vmatprep.subr.bf16.mxu0 %v733
    %904 = vmatpush1.bf16.msra.mxu0 %v732
    %905 = vmatprep.subr.bf16.mxu0 0
    %906 = vmatpush1.bf16.msra.mxu0 0
    %907 = vmatprep.subr.bf16.mxu0 0
    %908 = vmatpush1.bf16.msra.mxu0 0
    %909 = vmatprep.subr.bf16.mxu0 0
    %910 = vmatpush1.bf16.msra.mxu0 0
    %911 = vmatprep.subr.bf16.mxu0 0
    %912 = vmatpush1.bf16.msra.mxu0 0
    %913 = vmatprep.subr.bf16.mxu0 0
    %914 = vmatpush1.bf16.msra.mxu0 0
    %915 = vmatprep.subr.bf16.mxu0 0
    %916 = vmatpush1.bf16.msra.mxu0 0
    %917 = vmatprep.subr.bf16.mxu0 0
    %918 = vmatpush1.bf16.msra.mxu0 0
    %919 = vmatprep.subr.bf16.mxu0 0
    %920 = vmatpush1.bf16.msra.mxu0 0
    %921 = vmatprep.mubr.bf16.mxu0 0
    %922 = vmatmul.mubr.bf16.gmra.mrb[0].mxu0 0
    %v923 = vpop.f32.mrb[0].mxu0
    %v924 = vadd.f32 0.0, %v923
    %v925 = vpop.f32.mrb[0].mxu0
    %v926 = vadd.f32 0.0, %v925
    %v927 = vpop.f32.mrb[0].mxu0
    %v928 = vpop.f32.mrb[0].mxu0
    %929 = vdwg.mxu0
    %v930 = vadd.f32 %v801, %v883
    %v931 = vadd.f32 %v803, %v885
    %v932 = vadd.f32 %v842, %v924
    %v933 = vadd.f32 %v844, %v926
    %v934 = vld [vmem:[#allocation2] ss:$8 sm:$0xf]
    %v939 = vcombine.low %v930, %v931
    %v940 = vcombine.low %v932, %v933
    %v942 = vunpack.c.l.s4 1966171168
    %v943 = vunpack.c.0.s8 %v942
    %v944 = vlaneseq
    %v945 = vshrl.u32 %v944, 7
    %v946 = vsub.s32 %v943, %v945
    %v947 = vrot.slane %v939, %v946
    %v949 = vunpack.c.l.s4 1966171168
    %v950 = vunpack.c.0.s8 %v949
    %v951 = vlaneseq
    %v952 = vshrl.u32 %v951, 7
    %v953 = vsub.s32 %v950, %v952
    %v954 = vrot.slane %v940, %v953
    %v955 = vcombine.low %v947, %v954
    %v957 = vunpack.c.l.s4 1966171168
    %v958 = vunpack.c.0.s8 %v957
    %v959 = vlaneseq
    %v960 = vshrl.u32 %v959, 7
    %v961 = vsub.s32 %v958, %v960
    %v962 = vrot.slane %v955, %v961
    %v964 = vadd.f32 %v934, %v962
    %v965 = vxor.u32 %v964, 2147483648
    %v966 = vmul.f32 %v965, 1.442695
    %v967 = vpow.pop %v966
    %v968 = vadd.f32 %v967, 1.0
    %v969 = vrcp.pop %v968
    %v970 = vmul.f32 1.0, %v969
    %v972 = vrot.slane %v964, 3
    %v974 = vtanh.pop %v972
    %v976 = vrot.slane %v970, 1
    %v978 = vmul.f32 %v976, 0.0
    %v979 = vmul.f32 %v970, %v974
    %v980 = vadd.f32 %v978, %v979
    %v981 = vtanh.pop %v980
    %v982 = vrot.slane %v970, 2
    %v984 = vmul.f32 %v982, %v981
    %985 = vst [vmem:[#allocation3] sm:$0x1] %v984
    %v986 = vpack.c.bf16 %v984, %v984
    %v987 = vunpack.c.l.bf16 %v986
    %v988 = vsub.f32 %v984, %v987
    %v989 = vpack.c.bf16 %v988, %v988
    %v990 = vld [vmem:[#allocation4] sm:$0xff]
    %v991 = vld [vmem:[#allocation4 + $0x8] sm:$0xff]
    %v992 = vld [vmem:[#allocation4 + $0x10] sm:$0xff]
    %v993 = vld [vmem:[#allocation4 + $0x18] sm:$0xff]
    %v994 = vld [vmem:[#allocation4 + $0x20] sm:$0xff]
    %v995 = vld [vmem:[#allocation4 + $0x28] sm:$0xff]
    %v996 = vld [vmem:[#allocation4 + $0x30] sm:$0xff]
    %v997 = vld [vmem:[#allocation4 + $0x38] sm:$0xff]
    %v998 = vld [vmem:[#allocation4 + $0x40] sm:$0xff]
    %v999 = vld [vmem:[#allocation4 + $0x48] sm:$0xff]
    %v1000 = vld [vmem:[#allocation4 + $0x50] sm:$0xff]
    %v1001 = vld [vmem:[#allocation4 + $0x58] sm:$0xff]
    %v1002 = vld [vmem:[#allocation4 + $0x60] sm:$0xff]
    %v1003 = vld [vmem:[#allocation4 + $0x68] sm:$0xff]
    %v1004 = vld [vmem:[#allocation4 + $0x70] sm:$0xff]
    %v1005 = vld [vmem:[#allocation4 + $0x78] sm:$0xff]
    %v1006 = vld [vmem:[#allocation4 + $0x80] sm:$0xff]
    %v1007 = vld [vmem:[#allocation4 + $0x88] sm:$0xff]
    %v1008 = vld [vmem:[#allocation4 + $0x90] sm:$0xff]
    %v1009 = vld [vmem:[#allocation4 + $0x98] sm:$0xff]
    %v1010 = vld [vmem:[#allocation4 + $0xa0] sm:$0xff]
    %v1011 = vld [vmem:[#allocation4 + $0xa8] sm:$0xff]
    %v1012 = vld [vmem:[#allocation4 + $0xb0] sm:$0xff]
    %v1013 = vld [vmem:[#allocation4 + $0xb8] sm:$0xff]
    %v1014 = vld [vmem:[#allocation4 + $0xc0] sm:$0xff]
    %v1015 = vld [vmem:[#allocation4 + $0xc8] sm:$0xff]
    %v1016 = vld [vmem:[#allocation4 + $0xd0] sm:$0xff]
    %v1017 = vld [vmem:[#allocation4 + $0xd8] sm:$0xff]
    %v1018 = vld [vmem:[#allocation4 + $0xe0] sm:$0xff]
    %v1019 = vld [vmem:[#allocation4 + $0xe8] sm:$0xff]
    %v1020 = vld [vmem:[#allocation4 + $0xf0] sm:$0xff]
    %v1021 = vld [vmem:[#allocation4 + $0xf8] sm:$0xff]
    %v1022 = vld [vmem:[#allocation7] sm:$0xff]
    %v1023 = vld [vmem:[#allocation7 + $0x8] sm:$0xff]
    %v1024 = vld [vmem:[#allocation7 + $0x10] sm:$0xff]
    %v1025 = vld [vmem:[#allocation7 + $0x18] sm:$0xff]
    %v1026 = vld [vmem:[#allocation7 + $0x20] sm:$0xff]
    %v1027 = vld [vmem:[#allocation7 + $0x28] sm:$0xff]
    %v1028 = vld [vmem:[#allocation7 + $0x30] sm:$0xff]
    %v1029 = vld [vmem:[#allocation7 + $0x38] sm:$0xff]
    %v1030 = vld [vmem:[#allocation7 + $0x40] sm:$0xff]
    %v1031 = vld [vmem:[#allocation7 + $0x48] sm:$0xff]
    %v1032 = vld [vmem:[#allocation7 + $0x50] sm:$0xff]
    %v1033 = vld [vmem:[#allocation7 + $0x58] sm:$0xff]
    %v1034 = vld [vmem:[#allocation7 + $0x60] sm:$0xff]
    %v1035 = vld [vmem:[#allocation7 + $0x68] sm:$0xff]
    %v1036 = vld [vmem:[#allocation7 + $0x70] sm:$0xff]
    %v1037 = vld [vmem:[#allocation7 + $0x78] sm:$0xff]
    %v1038 = vld [vmem:[#allocation7 + $0x80] sm:$0xff]
    %v1039 = vld [vmem:[#allocation7 + $0x88] sm:$0xff]
    %v1040 = vld [vmem:[#allocation7 + $0x90] sm:$0xff]
    %v1041 = vld [vmem:[#allocation7 + $0x98] sm:$0xff]
    %v1042 = vld [vmem:[#allocation7 + $0xa0] sm:$0xff]
    %v1043 = vld [vmem:[#allocation7 + $0xa8] sm:$0xff]
    %v1044 = vld [vmem:[#allocation7 + $0xb0] sm:$0xff]
    %v1045 = vld [vmem:[#allocation7 + $0xb8] sm:$0xff]
    %v1046 = vld [vmem:[#allocation7 + $0xc0] sm:$0xff]
    %v1047 = vld [vmem:[#allocation7 + $0xc8] sm:$0xff]
    %v1048 = vld [vmem:[#allocation7 + $0xd0] sm:$0xff]
    %v1049 = vld [vmem:[#allocation7 + $0xd8] sm:$0xff]
    %v1050 = vld [vmem:[#allocation7 + $0xe0] sm:$0xff]
    %v1051 = vld [vmem:[#allocation7 + $0xe8] sm:$0xff]
    %v1052 = vld [vmem:[#allocation7 + $0xf0] sm:$0xff]
    %v1053 = vld [vmem:[#allocation7 + $0xf8] sm:$0xff]
    %v1086 = vunpack.c.l.b16 %v1022
    %v1087 = vunpack.c.h.b16 %v1022
    %v1088 = vunpack.c.l.b16 %v1023
    %v1089 = vunpack.c.h.b16 %v1023
    %v1090 = vunpack.c.l.b16 %v1024
    %v1091 = vunpack.c.h.b16 %v1024
    %v1092 = vunpack.c.l.b16 %v1025
    %v1093 = vunpack.c.h.b16 %v1025
    %v1094 = vunpack.c.l.b16 %v1026
    %v1095 = vunpack.c.h.b16 %v1026
    %v1096 = vunpack.c.l.b16 %v1027
    %v1097 = vunpack.c.h.b16 %v1027
    %v1098 = vunpack.c.l.b16 %v1028
    %v1099 = vunpack.c.h.b16 %v1028
    %v1100 = vunpack.c.l.b16 %v1029
    %v1101 = vunpack.c.h.b16 %v1029
    %v1102 = vunpack.c.l.b16 %v1030
    %v1103 = vunpack.c.h.b16 %v1030
    %v1104 = vunpack.c.l.b16 %v1031
    %v1105 = vunpack.c.h.b16 %v1031
    %v1106 = vunpack.c.l.b16 %v1032
    %v1107 = vunpack.c.h.b16 %v1032
    %v1108 = vunpack.c.l.b16 %v1033
    %v1109 = vunpack.c.h.b16 %v1033
    %v1110 = vunpack.c.l.b16 %v1034
    %v1111 = vunpack.c.h.b16 %v1034
    %v1112 = vunpack.c.l.b16 %v1035
    %v1113 = vunpack.c.h.b16 %v1035
    %v1114 = vunpack.c.l.b16 %v1036
    %v1115 = vunpack.c.h.b16 %v1036
    %v1116 = vunpack.c.l.b16 %v1037
    %v1117 = vunpack.c.h.b16 %v1037
    %v1118 = vunpack.c.l.b16 %v1038
    %v1119 = vunpack.c.h.b16 %v1038
    %v1120 = vunpack.c.l.b16 %v1039
    %v1121 = vunpack.c.h.b16 %v1039
    %v1122 = vunpack.c.l.b16 %v1040
    %v1123 = vunpack.c.h.b16 %v1040
    %v1124 = vunpack.c.l.b16 %v1041
    %v1125 = vunpack.c.h.b16 %v1041
    %v1126 = vunpack.c.l.b16 %v1042
    %v1127 = vunpack.c.h.b16 %v1042
    %v1128 = vunpack.c.l.b16 %v1043
    %v1129 = vunpack.c.h.b16 %v1043
    %v1130 = vunpack.c.l.b16 %v1044
    %v1131 = vunpack.c.h.b16 %v1044
    %v1132 = vunpack.c.l.b16 %v1045
    %v1133 = vunpack.c.h.b16 %v1045
    %v1134 = vunpack.c.l.b16 %v1046
    %v1135 = vunpack.c.h.b16 %v1046
    %v1136 = vunpack.c.l.b16 %v1047
    %v1137 = vunpack.c.h.b16 %v1047
    %v1138 = vunpack.c.l.b16 %v1048
    %v1139 = vunpack.c.h.b16 %v1048
    %v1140 = vunpack.c.l.b16 %v1049
    %v1141 = vunpack.c.h.b16 %v1049
    %v1142 = vunpack.c.l.b16 %v1050
    %v1143 = vunpack.c.h.b16 %v1050
    %v1144 = vunpack.c.l.b16 %v1051
    %v1145 = vunpack.c.h.b16 %v1051
    %v1146 = vunpack.c.l.b16 %v1052
    %v1147 = vunpack.c.h.b16 %v1052
    %v1148 = vunpack.c.l.b16 %v1053
    %v1149 = vunpack.c.h.b16 %v1053
    %v1150 = vpack.c.b16 %v1090, %v1086
    %v1151 = vpack.c.b16 %v1091, %v1087
    %v1152 = vpack.c.b16 %v1092, %v1088
    %v1153 = vpack.c.b16 %v1093, %v1089
    %v1154 = vpack.c.b16 %v1098, %v1094
    %v1155 = vpack.c.b16 %v1099, %v1095
    %v1156 = vpack.c.b16 %v1100, %v1096
    %v1157 = vpack.c.b16 %v1101, %v1097
    %v1158 = vpack.c.b16 %v1106, %v1102
    %v1159 = vpack.c.b16 %v1107, %v1103
    %v1160 = vpack.c.b16 %v1108, %v1104
    %v1161 = vpack.c.b16 %v1109, %v1105
    %v1162 = vpack.c.b16 %v1114, %v1110
    %v1163 = vpack.c.b16 %v1115, %v1111
    %v1164 = vpack.c.b16 %v1116, %v1112
    %v1165 = vpack.c.b16 %v1117, %v1113
    %v1166 = vpack.c.b16 %v1122, %v1118
    %v1167 = vpack.c.b16 %v1123, %v1119
    %v1168 = vpack.c.b16 %v1124, %v1120
    %v1169 = vpack.c.b16 %v1125, %v1121
    %v1170 = vpack.c.b16 %v1130, %v1126
    %v1171 = vpack.c.b16 %v1131, %v1127
    %v1172 = vpack.c.b16 %v1132, %v1128
    %v1173 = vpack.c.b16 %v1133, %v1129
    %v1174 = vpack.c.b16 %v1138, %v1134
    %v1175 = vpack.c.b16 %v1139, %v1135
    %v1176 = vpack.c.b16 %v1140, %v1136
    %v1177 = vpack.c.b16 %v1141, %v1137
    %v1178 = vpack.c.b16 %v1146, %v1142
    %v1179 = vpack.c.b16 %v1147, %v1143
    %v1180 = vpack.c.b16 %v1148, %v1144
    %v1181 = vpack.c.b16 %v1149, %v1145
    %1214 = vmatprep.subr.bf16.mxu0 %v1151
    %1215 = vmatpush1.bf16.msra.mxu0 %v1150
    %1216 = vmatprep.subr.bf16.mxu0 %v1155
    %1217 = vmatpush1.bf16.msra.mxu0 %v1154
    %1218 = vmatprep.subr.bf16.mxu0 %v1159
    %1219 = vmatpush1.bf16.msra.mxu0 %v1158
    %1220 = vmatprep.subr.bf16.mxu0 %v1163
    %1221 = vmatpush1.bf16.msra.mxu0 %v1162
    %1222 = vmatprep.subr.bf16.mxu0 %v1167
    %1223 = vmatpush1.bf16.msra.mxu0 %v1166
    %1224 = vmatprep.subr.bf16.mxu0 %v1171
    %1225 = vmatpush1.bf16.msra.mxu0 %v1170
    %1226 = vmatprep.subr.bf16.mxu0 %v1175
    %1227 = vmatpush1.bf16.msra.mxu0 %v1174
    %1228 = vmatprep.subr.bf16.mxu0 %v1179
    %1229 = vmatpush1.bf16.msra.mxu0 %v1178
    %1230 = vmatprep.subr.bf16.mxu0 0
    %1231 = vmatpush1.bf16.msra.mxu0 0
    %1232 = vmatprep.subr.bf16.mxu0 0
    %1233 = vmatpush1.bf16.msra.mxu0 0
    %1234 = vmatprep.subr.bf16.mxu0 0
    %1235 = vmatpush1.bf16.msra.mxu0 0
    %1236 = vmatprep.subr.bf16.mxu0 0
    %1237 = vmatpush1.bf16.msra.mxu0 0
    %1238 = vmatprep.subr.bf16.mxu0 0
    %1239 = vmatpush1.bf16.msra.mxu0 0
    %1240 = vmatprep.subr.bf16.mxu0 0
    %1241 = vmatpush1.bf16.msra.mxu0 0
    %1242 = vmatprep.subr.bf16.mxu0 0
    %1243 = vmatpush1.bf16.msra.mxu0 0
    %1244 = vmatprep.subr.bf16.mxu0 0
    %1245 = vmatpush1.bf16.msra.mxu0 0
    %1246 = vmatprep.mubr.bf16.mxu0 0
    %1247 = vmatmul.mubr.bf16.gmra.mrb[0].mxu0 %v986
    %v1248 = vpop.f32.mrb[0].mxu0
    %v1249 = vadd.f32 0.0, %v1248
    %v1250 = vpop.f32.mrb[0].mxu0
    %v1251 = vadd.f32 0.0, %v1250
    %v1252 = vpop.f32.mrb[0].mxu0
    %v1253 = vpop.f32.mrb[0].mxu0
    %1254 = vdwg.mxu0
    %1255 = vmatprep.subr.bf16.mxu0 %v1153
    %1256 = vmatpush1.bf16.msra.mxu0 %v1152
    %1257 = vmatprep.subr.bf16.mxu0 %v1157
    %1258 = vmatpush1.bf16.msra.mxu0 %v1156
    %1259 = vmatprep.subr.bf16.mxu0 %v1161
    %1260 = vmatpush1.bf16.msra.mxu0 %v1160
    %1261 = vmatprep.subr.bf16.mxu0 %v1165
    %1262 = vmatpush1.bf16.msra.mxu0 %v1164
    %1263 = vmatprep.subr.bf16.mxu0 %v1169
    %1264 = vmatpush1.bf16.msra.mxu0 %v1168
    %1265 = vmatprep.subr.bf16.mxu0 %v1173
    %1266 = vmatpush1.bf16.msra.mxu0 %v1172
    %1267 = vmatprep.subr.bf16.mxu0 %v1177
    %1268 = vmatpush1.bf16.msra.mxu0 %v1176
    %1269 = vmatprep.subr.bf16.mxu0 %v1181
    %1270 = vmatpush1.bf16.msra.mxu0 %v1180
    %1271 = vmatprep.subr.bf16.mxu0 0
    %1272 = vmatpush1.bf16.msra.mxu0 0
    %1273 = vmatprep.subr.bf16.mxu0 0
    %1274 = vmatpush1.bf16.msra.mxu0 0
    %1275 = vmatprep.subr.bf16.mxu0 0
    %1276 = vmatpush1.bf16.msra.mxu0 0
    %1277 = vmatprep.subr.bf16.mxu0 0
    %1278 = vmatpush1.bf16.msra.mxu0 0
    %1279 = vmatprep.subr.bf16.mxu0 0
    %1280 = vmatpush1.bf16.msra.mxu0 0
    %1281 = vmatprep.subr.bf16.mxu0 0
    %1282 = vmatpush1.bf16.msra.mxu0 0
    %1283 = vmatprep.subr.bf16.mxu0 0
    %1284 = vmatpush1.bf16.msra.mxu0 0
    %1285 = vmatprep.subr.bf16.mxu0 0
    %1286 = vmatpush1.bf16.msra.mxu0 0
    %1287 = vmatprep.mubr.bf16.mxu0 0
    %1288 = vmatmul.mubr.bf16.gmra.mrb[0].mxu0 %v986
    %v1289 = vpop.f32.mrb[0].mxu0
    %v1290 = vadd.f32 0.0, %v1289
    %v1291 = vpop.f32.mrb[0].mxu0
    %v1292 = vadd.f32 0.0, %v1291
    %v1293 = vpop.f32.mrb[0].mxu0
    %v1294 = vpop.f32.mrb[0].mxu0
    %1295 = vdwg.mxu0
    %v1328 = vunpack.c.l.b16 %v990
    %v1329 = vunpack.c.h.b16 %v990
    %v1330 = vunpack.c.l.b16 %v991
    %v1331 = vunpack.c.h.b16 %v991
    %v1332 = vunpack.c.l.b16 %v992
    %v1333 = vunpack.c.h.b16 %v992
    %v1334 = vunpack.c.l.b16 %v993
    %v1335 = vunpack.c.h.b16 %v993
    %v1336 = vunpack.c.l.b16 %v994
    %v1337 = vunpack.c.h.b16 %v994
    %v1338 = vunpack.c.l.b16 %v995
    %v1339 = vunpack.c.h.b16 %v995
    %v1340 = vunpack.c.l.b16 %v996
    %v1341 = vunpack.c.h.b16 %v996
    %v1342 = vunpack.c.l.b16 %v997
    %v1343 = vunpack.c.h.b16 %v997
    %v1344 = vunpack.c.l.b16 %v998
    %v1345 = vunpack.c.h.b16 %v998
    %v1346 = vunpack.c.l.b16 %v999
    %v1347 = vunpack.c.h.b16 %v999
    %v1348 = vunpack.c.l.b16 %v1000
    %v1349 = vunpack.c.h.b16 %v1000
    %v1350 = vunpack.c.l.b16 %v1001
    %v1351 = vunpack.c.h.b16 %v1001
    %v1352 = vunpack.c.l.b16 %v1002
    %v1353 = vunpack.c.h.b16 %v1002
    %v1354 = vunpack.c.l.b16 %v1003
    %v1355 = vunpack.c.h.b16 %v1003
    %v1356 = vunpack.c.l.b16 %v1004
    %v1357 = vunpack.c.h.b16 %v1004
    %v1358 = vunpack.c.l.b16 %v1005
    %v1359 = vunpack.c.h.b16 %v1005
    %v1360 = vunpack.c.l.b16 %v1006
    %v1361 = vunpack.c.h.b16 %v1006
    %v1362 = vunpack.c.l.b16 %v1007
    %v1363 = vunpack.c.h.b16 %v1007
    %v1364 = vunpack.c.l.b16 %v1008
    %v1365 = vunpack.c.h.b16 %v1008
    %v1366 = vunpack.c.l.b16 %v1009
    %v1367 = vunpack.c.h.b16 %v1009
    %v1368 = vunpack.c.l.b16 %v1010
    %v1369 = vunpack.c.h.b16 %v1010
    %v1370 = vunpack.c.l.b16 %v1011
    %v1371 = vunpack.c.h.b16 %v1011
    %v1372 = vunpack.c.l.b16 %v1012
    %v1373 = vunpack.c.h.b16 %v1012
    %v1374 = vunpack.c.l.b16 %v1013
    %v1375 = vunpack.c.h.b16 %v1013
    %v1376 = vunpack.c.l.b16 %v1014
    %v1377 = vunpack.c.h.b16 %v1014
    %v1378 = vunpack.c.l.b16 %v1015
    %v1379 = vunpack.c.h.b16 %v1015
    %v1380 = vunpack.c.l.b16 %v1016
    %v1381 = vunpack.c.h.b16 %v1016
    %v1382 = vunpack.c.l.b16 %v1017
    %v1383 = vunpack.c.h.b16 %v1017
    %v1384 = vunpack.c.l.b16 %v1018
    %v1385 = vunpack.c.h.b16 %v1018
    %v1386 = vunpack.c.l.b16 %v1019
    %v1387 = vunpack.c.h.b16 %v1019
    %v1388 = vunpack.c.l.b16 %v1020
    %v1389 = vunpack.c.h.b16 %v1020
    %v1390 = vunpack.c.l.b16 %v1021
    %v1391 = vunpack.c.h.b16 %v1021
    %v1392 = vpack.c.b16 %v1332, %v1328
    %v1393 = vpack.c.b16 %v1333, %v1329
    %v1394 = vpack.c.b16 %v1334, %v1330
    %v1395 = vpack.c.b16 %v1335, %v1331
    %v1396 = vpack.c.b16 %v1340, %v1336
    %v1397 = vpack.c.b16 %v1341, %v1337
    %v1398 = vpack.c.b16 %v1342, %v1338
    %v1399 = vpack.c.b16 %v1343, %v1339
    %v1400 = vpack.c.b16 %v1348, %v1344
    %v1401 = vpack.c.b16 %v1349, %v1345
    %v1402 = vpack.c.b16 %v1350, %v1346
    %v1403 = vpack.c.b16 %v1351, %v1347
    %v1404 = vpack.c.b16 %v1356, %v1352
    %v1405 = vpack.c.b16 %v1357, %v1353
    %v1406 = vpack.c.b16 %v1358, %v1354
    %v1407 = vpack.c.b16 %v1359, %v1355
    %v1408 = vpack.c.b16 %v1364, %v1360
    %v1409 = vpack.c.b16 %v1365, %v1361
    %v1410 = vpack.c.b16 %v1366, %v1362
    %v1411 = vpack.c.b16 %v1367, %v1363
    %v1412 = vpack.c.b16 %v1372, %v1368
    %v1413 = vpack.c.b16 %v1373, %v1369
    %v1414 = vpack.c.b16 %v1374, %v1370
    %v1415 = vpack.c.b16 %v1375, %v1371
    %v1416 = vpack.c.b16 %v1380, %v1376
    %v1417 = vpack.c.b16 %v1381, %v1377
    %v1418 = vpack.c.b16 %v1382, %v1378
    %v1419 = vpack.c.b16 %v1383, %v1379
    %v1420 = vpack.c.b16 %v1388, %v1384
    %v1421 = vpack.c.b16 %v1389, %v1385
    %v1422 = vpack.c.b16 %v1390, %v1386
    %v1423 = vpack.c.b16 %v1391, %v1387
    %1456 = vmatprep.subr.bf16.mxu0 %v1393
    %1457 = vmatpush1.bf16.msra.mxu0 %v1392
    %1458 = vmatprep.subr.bf16.mxu0 %v1397
    %1459 = vmatpush1.bf16.msra.mxu0 %v1396
    %1460 = vmatprep.subr.bf16.mxu0 %v1401
    %1461 = vmatpush1.bf16.msra.mxu0 %v1400
    %1462 = vmatprep.subr.bf16.mxu0 %v1405
    %1463 = vmatpush1.bf16.msra.mxu0 %v1404
    %1464 = vmatprep.subr.bf16.mxu0 %v1409
    %1465 = vmatpush1.bf16.msra.mxu0 %v1408
    %1466 = vmatprep.subr.bf16.mxu0 %v1413
    %1467 = vmatpush1.bf16.msra.mxu0 %v1412
    %1468 = vmatprep.subr.bf16.mxu0 %v1417
    %1469 = vmatpush1.bf16.msra.mxu0 %v1416
    %1470 = vmatprep.subr.bf16.mxu0 %v1421
    %1471 = vmatpush1.bf16.msra.mxu0 %v1420
    %1472 = vmatprep.subr.bf16.mxu0 0
    %1473 = vmatpush1.bf16.msra.mxu0 0
    %1474 = vmatprep.subr.bf16.mxu0 0
    %1475 = vmatpush1.bf16.msra.mxu0 0
    %1476 = vmatprep.subr.bf16.mxu0 0
    %1477 = vmatpush1.bf16.msra.mxu0 0
    %1478 = vmatprep.subr.bf16.mxu0 0
    %1479 = vmatpush1.bf16.msra.mxu0 0
    %1480 = vmatprep.subr.bf16.mxu0 0
    %1481 = vmatpush1.bf16.msra.mxu0 0
    %1482 = vmatprep.subr.bf16.mxu0 0
    %1483 = vmatpush1.bf16.msra.mxu0 0
    %1484 = vmatprep.subr.bf16.mxu0 0
    %1485 = vmatpush1.bf16.msra.mxu0 0
    %1486 = vmatprep.subr.bf16.mxu0 0
    %1487 = vmatpush1.bf16.msra.mxu0 0
    %1488 = vmatprep.mubr.bf16.mxu0 0
    %1489 = vmatmul.mubr.bf16.gmra.mrb[0].mxu0 %v986
    %v1490 = vpop.f32.mrb[0].mxu0
    %v1491 = vadd.f32 %v1249, %v1490
    %v1492 = vpop.f32.mrb[0].mxu0
    %v1493 = vadd.f32 %v1251, %v1492
    %v1494 = vpop.f32.mrb[0].mxu0
    %v1495 = vpop.f32.mrb[0].mxu0
    %1496 = vdwg.mxu0
    %1497 = vmatprep.subr.bf16.mxu0 %v1395
    %1498 = vmatpush1.bf16.msra.mxu0 %v1394
    %1499 = vmatprep.subr.bf16.mxu0 %v1399
    %1500 = vmatpush1.bf16.msra.mxu0 %v1398
    %1501 = vmatprep.subr.bf16.mxu0 %v1403
    %1502 = vmatpush1.bf16.msra.mxu0 %v1402
    %1503 = vmatprep.subr.bf16.mxu0 %v1407
    %1504 = vmatpush1.bf16.msra.mxu0 %v1406
    %1505 = vmatprep.subr.bf16.mxu0 %v1411
    %1506 = vmatpush1.bf16.msra.mxu0 %v1410
    %1507 = vmatprep.subr.bf16.mxu0 %v1415
    %1508 = vmatpush1.bf16.msra.mxu0 %v1414
    %1509 = vmatprep.subr.bf16.mxu0 %v1419
    %1510 = vmatpush1.bf16.msra.mxu0 %v1418
    %1511 = vmatprep.subr.bf16.mxu0 %v1423
    %1512 = vmatpush1.bf16.msra.mxu0 %v1422
    %1513 = vmatprep.subr.bf16.mxu0 0
    %1514 = vmatpush1.bf16.msra.mxu0 0
    %1515 = vmatprep.subr.bf16.mxu0 0
    %1516 = vmatpush1.bf16.msra.mxu0 0
    %1517 = vmatprep.subr.bf16.mxu0 0
    %1518 = vmatpush1.bf16.msra.mxu0 0
    %1519 = vmatprep.subr.bf16.mxu0 0
    %1520 = vmatpush1.bf16.msra.mxu0 0
    %1521 = vmatprep.subr.bf16.mxu0 0
    %1522 = vmatpush1.bf16.msra.mxu0 0
    %1523 = vmatprep.subr.bf16.mxu0 0
    %1524 = vmatpush1.bf16.msra.mxu0 0
    %1525 = vmatprep.subr.bf16.mxu0 0
    %1526 = vmatpush1.bf16.msra.mxu0 0
    %1527 = vmatprep.subr.bf16.mxu0 0
    %1528 = vmatpush1.bf16.msra.mxu0 0
    %1529 = vmatprep.mubr.bf16.mxu0 0
    %1530 = vmatmul.mubr.bf16.gmra.mrb[0].mxu0 %v986
    %v1531 = vpop.f32.mrb[0].mxu0
    %v1532 = vadd.f32 %v1290, %v1531
    %v1533 = vpop.f32.mrb[0].mxu0
    %v1534 = vadd.f32 %v1292, %v1533
    %v1535 = vpop.f32.mrb[0].mxu0
    %v1536 = vpop.f32.mrb[0].mxu0
    %1537 = vdwg.mxu0
    %1538 = vmatprep.subr.bf16.mxu0 %v1393
    %1539 = vmatpush1.bf16.msra.mxu0 %v1392
    %1540 = vmatprep.subr.bf16.mxu0 %v1397
    %1541 = vmatpush1.bf16.msra.mxu0 %v1396
    %1542 = vmatprep.subr.bf16.mxu0 %v1401
    %1543 = vmatpush1.bf16.msra.mxu0 %v1400
    %1544 = vmatprep.subr.bf16.mxu0 %v1405
    %1545 = vmatpush1.bf16.msra.mxu0 %v1404
    %1546 = vmatprep.subr.bf16.mxu0 %v1409
    %1547 = vmatpush1.bf16.msra.mxu0 %v1408
    %1548 = vmatprep.subr.bf16.mxu0 %v1413
    %1549 = vmatpush1.bf16.msra.mxu0 %v1412
    %1550 = vmatprep.subr.bf16.mxu0 %v1417
    %1551 = vmatpush1.bf16.msra.mxu0 %v1416
    %1552 = vmatprep.subr.bf16.mxu0 %v1421
    %1553 = vmatpush1.bf16.msra.mxu0 %v1420
    %1554 = vmatprep.subr.bf16.mxu0 0
    %1555 = vmatpush1.bf16.msra.mxu0 0
    %1556 = vmatprep.subr.bf16.mxu0 0
    %1557 = vmatpush1.bf16.msra.mxu0 0
    %1558 = vmatprep.subr.bf16.mxu0 0
    %1559 = vmatpush1.bf16.msra.mxu0 0
    %1560 = vmatprep.subr.bf16.mxu0 0
    %1561 = vmatpush1.bf16.msra.mxu0 0
    %1562 = vmatprep.subr.bf16.mxu0 0
    %1563 = vmatpush1.bf16.msra.mxu0 0
    %1564 = vmatprep.subr.bf16.mxu0 0
    %1565 = vmatpush1.bf16.msra.mxu0 0
    %1566 = vmatprep.subr.bf16.mxu0 0
    %1567 = vmatpush1.bf16.msra.mxu0 0
    %1568 = vmatprep.subr.bf16.mxu0 0
    %1569 = vmatpush1.bf16.msra.mxu0 0
    %1570 = vmatprep.mubr.bf16.mxu0 0
    %1571 = vmatmul.mubr.bf16.gmra.mrb[0].mxu0 %v989
    %v1572 = vpop.f32.mrb[0].mxu0
    %v1573 = vadd.f32 0.0, %v1572
    %v1574 = vpop.f32.mrb[0].mxu0
    %v1575 = vadd.f32 0.0, %v1574
    %v1576 = vpop.f32.mrb[0].mxu0
    %v1577 = vpop.f32.mrb[0].mxu0
    %1578 = vdwg.mxu0
    %1579 = vmatprep.subr.bf16.mxu0 %v1395
    %1580 = vmatpush1.bf16.msra.mxu0 %v1394
    %1581 = vmatprep.subr.bf16.mxu0 %v1399
    %1582 = vmatpush1.bf16.msra.mxu0 %v1398
    %1583 = vmatprep.subr.bf16.mxu0 %v1403
    %1584 = vmatpush1.bf16.msra.mxu0 %v1402
    %1585 = vmatprep.subr.bf16.mxu0 %v1407
    %1586 = vmatpush1.bf16.msra.mxu0 %v1406
    %1587 = vmatprep.subr.bf16.mxu0 %v1411
    %1588 = vmatpush1.bf16.msra.mxu0 %v1410
    %1589 = vmatprep.subr.bf16.mxu0 %v1415
    %1590 = vmatpush1.bf16.msra.mxu0 %v1414
    %1591 = vmatprep.subr.bf16.mxu0 %v1419
    %1592 = vmatpush1.bf16.msra.mxu0 %v1418
    %1593 = vmatprep.subr.bf16.mxu0 %v1423
    %1594 = vmatpush1.bf16.msra.mxu0 %v1422
    %1595 = vmatprep.subr.bf16.mxu0 0
    %1596 = vmatpush1.bf16.msra.mxu0 0
    %1597 = vmatprep.subr.bf16.mxu0 0
    %1598 = vmatpush1.bf16.msra.mxu0 0
    %1599 = vmatprep.subr.bf16.mxu0 0
    %1600 = vmatpush1.bf16.msra.mxu0 0
    %1601 = vmatprep.subr.bf16.mxu0 0
    %1602 = vmatpush1.bf16.msra.mxu0 0
    %1603 = vmatprep.subr.bf16.mxu0 0
    %1604 = vmatpush1.bf16.msra.mxu0 0
    %1605 = vmatprep.subr.bf16.mxu0 0
    %1606 = vmatpush1.bf16.msra.mxu0 0
    %1607 = vmatprep.subr.bf16.mxu0 0
    %1608 = vmatpush1.bf16.msra.mxu0 0
    %1609 = vmatprep.subr.bf16.mxu0 0
    %1610 = vmatpush1.bf16.msra.mxu0 0
    %1611 = vmatprep.mubr.bf16.mxu0 0
    %1612 = vmatmul.mubr.bf16.gmra.mrb[0].mxu0 %v989
    %v1613 = vpop.f32.mrb[0].mxu0
    %v1614 = vadd.f32 0.0, %v1613
    %v1615 = vpop.f32.mrb[0].mxu0
    %v1616 = vadd.f32 0.0, %v1615
    %v1617 = vpop.f32.mrb[0].mxu0
    %v1618 = vpop.f32.mrb[0].mxu0
    %1619 = vdwg.mxu0
    %v1620 = vadd.f32 %v1491, %v1573
    %v1621 = vadd.f32 %v1493, %v1575
    %v1622 = vadd.f32 %v1532, %v1614
    %v1623 = vadd.f32 %v1534, %v1616
    %s1624 = scalar_lea.vmem [#allocation2], 1
    %v1625 = vld [vmem:[%s1624] ss:$8 sm:$0xf]
    %v1630 = vcombine.low %v1620, %v1621
    %v1631 = vcombine.low %v1622, %v1623
    %v1633 = vunpack.c.l.s4 1966171168
    %v1634 = vunpack.c.0.s8 %v1633
    %v1635 = vlaneseq
    %v1636 = vshrl.u32 %v1635, 7
    %v1637 = vsub.s32 %v1634, %v1636
    %v1638 = vrot.slane %v1630, %v1637
    %v1640 = vunpack.c.l.s4 1966171168
    %v1641 = vunpack.c.0.s8 %v1640
    %v1642 = vlaneseq
    %v1643 = vshrl.u32 %v1642, 7
    %v1644 = vsub.s32 %v1641, %v1643
    %v1645 = vrot.slane %v1631, %v1644
    %v1646 = vcombine.low %v1638, %v1645
    %v1648 = vunpack.c.l.s4 1966171168
    %v1649 = vunpack.c.0.s8 %v1648
    %v1650 = vlaneseq
    %v1651 = vshrl.u32 %v1650, 7
    %v1652 = vsub.s32 %v1649, %v1651
    %v1653 = vrot.slane %v1646, %v1652
    %v1655 = vadd.f32 %v1625, %v1653
    %v1656 = vxor.u32 %v1655, 2147483648
    %v1657 = vmul.f32 %v1656, 1.442695
    %v1658 = vpow.pop %v1657
    %v1659 = vadd.f32 %v1658, 1.0
    %v1660 = vrcp.pop %v1659
    %v1661 = vmul.f32 1.0, %v1660
    %v1663 = vrot.slane %v1655, 3
    %v1665 = vtanh.pop %v1663
    %v1667 = vrot.slane %v1661, 1
    %v1669 = vmul.f32 %v1667, %v980
    %v1670 = vmul.f32 %v1661, %v1665
    %v1671 = vadd.f32 %v1669, %v1670
    %v1672 = vtanh.pop %v1671
    %v1673 = vrot.slane %v1661, 2
    %v1675 = vmul.f32 %v1673, %v1672
    %1676 = vst [vmem:[#allocation3 + $0x1] sm:$0x1] %v1675
    %v1677 = vpack.c.bf16 %v1675, %v1675
    %v1678 = vunpack.c.l.bf16 %v1677
    %v1679 = vsub.f32 %v1675, %v1678
    %v1680 = vpack.c.bf16 %v1679, %v1679
    %v1681 = vld [vmem:[#allocation4] sm:$0xff]
    %v1682 = vld [vmem:[#allocation4 + $0x8] sm:$0xff]
    %v1683 = vld [vmem:[#allocation4 + $0x10] sm:$0xff]
    %v1684 = vld [vmem:[#allocation4 + $0x18] sm:$0xff]
    %v1685 = vld [vmem:[#allocation4 + $0x20] sm:$0xff]
    %v1686 = vld [vmem:[#allocation4 + $0x28] sm:$0xff]
    %v1687 = vld [vmem:[#allocation4 + $0x30] sm:$0xff]
    %v1688 = vld [vmem:[#allocation4 + $0x38] sm:$0xff]
    %v1689 = vld [vmem:[#allocation4 + $0x40] sm:$0xff]
    %v1690 = vld [vmem:[#allocation4 + $0x48] sm:$0xff]
    %v1691 = vld [vmem:[#allocation4 + $0x50] sm:$0xff]
    %v1692 = vld [vmem:[#allocation4 + $0x58] sm:$0xff]
    %v1693 = vld [vmem:[#allocation4 + $0x60] sm:$0xff]
    %v1694 = vld [vmem:[#allocation4 + $0x68] sm:$0xff]
    %v1695 = vld [vmem:[#allocation4 + $0x70] sm:$0xff]
    %v1696 = vld [vmem:[#allocation4 + $0x78] sm:$0xff]
    %v1697 = vld [vmem:[#allocation4 + $0x80] sm:$0xff]
    %v1698 = vld [vmem:[#allocation4 + $0x88] sm:$0xff]
    %v1699 = vld [vmem:[#allocation4 + $0x90] sm:$0xff]
    %v1700 = vld [vmem:[#allocation4 + $0x98] sm:$0xff]
    %v1701 = vld [vmem:[#allocation4 + $0xa0] sm:$0xff]
    %v1702 = vld [vmem:[#allocation4 + $0xa8] sm:$0xff]
    %v1703 = vld [vmem:[#allocation4 + $0xb0] sm:$0xff]
    %v1704 = vld [vmem:[#allocation4 + $0xb8] sm:$0xff]
    %v1705 = vld [vmem:[#allocation4 + $0xc0] sm:$0xff]
    %v1706 = vld [vmem:[#allocation4 + $0xc8] sm:$0xff]
    %v1707 = vld [vmem:[#allocation4 + $0xd0] sm:$0xff]
    %v1708 = vld [vmem:[#allocation4 + $0xd8] sm:$0xff]
    %v1709 = vld [vmem:[#allocation4 + $0xe0] sm:$0xff]
    %v1710 = vld [vmem:[#allocation4 + $0xe8] sm:$0xff]
    %v1711 = vld [vmem:[#allocation4 + $0xf0] sm:$0xff]
    %v1712 = vld [vmem:[#allocation4 + $0xf8] sm:$0xff]
    %v1713 = vld [vmem:[#allocation7] sm:$0xff]
    %v1714 = vld [vmem:[#allocation7 + $0x8] sm:$0xff]
    %v1715 = vld [vmem:[#allocation7 + $0x10] sm:$0xff]
    %v1716 = vld [vmem:[#allocation7 + $0x18] sm:$0xff]
    %v1717 = vld [vmem:[#allocation7 + $0x20] sm:$0xff]
    %v1718 = vld [vmem:[#allocation7 + $0x28] sm:$0xff]
    %v1719 = vld [vmem:[#allocation7 + $0x30] sm:$0xff]
    %v1720 = vld [vmem:[#allocation7 + $0x38] sm:$0xff]
    %v1721 = vld [vmem:[#allocation7 + $0x40] sm:$0xff]
    %v1722 = vld [vmem:[#allocation7 + $0x48] sm:$0xff]
    %v1723 = vld [vmem:[#allocation7 + $0x50] sm:$0xff]
    %v1724 = vld [vmem:[#allocation7 + $0x58] sm:$0xff]
    %v1725 = vld [vmem:[#allocation7 + $0x60] sm:$0xff]
    %v1726 = vld [vmem:[#allocation7 + $0x68] sm:$0xff]
    %v1727 = vld [vmem:[#allocation7 + $0x70] sm:$0xff]
    %v1728 = vld [vmem:[#allocation7 + $0x78] sm:$0xff]
    %v1729 = vld [vmem:[#allocation7 + $0x80] sm:$0xff]
    %v1730 = vld [vmem:[#allocation7 + $0x88] sm:$0xff]
    %v1731 = vld [vmem:[#allocation7 + $0x90] sm:$0xff]
    %v1732 = vld [vmem:[#allocation7 + $0x98] sm:$0xff]
    %v1733 = vld [vmem:[#allocation7 + $0xa0] sm:$0xff]
    %v1734 = vld [vmem:[#allocation7 + $0xa8] sm:$0xff]
    %v1735 = vld [vmem:[#allocation7 + $0xb0] sm:$0xff]
    %v1736 = vld [vmem:[#allocation7 + $0xb8] sm:$0xff]
    %v1737 = vld [vmem:[#allocation7 + $0xc0] sm:$0xff]
    %v1738 = vld [vmem:[#allocation7 + $0xc8] sm:$0xff]
    %v1739 = vld [vmem:[#allocation7 + $0xd0] sm:$0xff]
    %v1740 = vld [vmem:[#allocation7 + $0xd8] sm:$0xff]
    %v1741 = vld [vmem:[#allocation7 + $0xe0] sm:$0xff]
    %v1742 = vld [vmem:[#allocation7 + $0xe8] sm:$0xff]
    %v1743 = vld [vmem:[#allocation7 + $0xf0] sm:$0xff]
    %v1744 = vld [vmem:[#allocation7 + $0xf8] sm:$0xff]
    %v1777 = vunpack.c.l.b16 %v1713
    %v1778 = vunpack.c.h.b16 %v1713
    %v1779 = vunpack.c.l.b16 %v1714
    %v1780 = vunpack.c.h.b16 %v1714
    %v1781 = vunpack.c.l.b16 %v1715
    %v1782 = vunpack.c.h.b16 %v1715
    %v1783 = vunpack.c.l.b16 %v1716
    %v1784 = vunpack.c.h.b16 %v1716
    %v1785 = vunpack.c.l.b16 %v1717
    %v1786 = vunpack.c.h.b16 %v1717
    %v1787 = vunpack.c.l.b16 %v1718
    %v1788 = vunpack.c.h.b16 %v1718
    %v1789 = vunpack.c.l.b16 %v1719
    %v1790 = vunpack.c.h.b16 %v1719
    %v1791 = vunpack.c.l.b16 %v1720
    %v1792 = vunpack.c.h.b16 %v1720
    %v1793 = vunpack.c.l.b16 %v1721
    %v1794 = vunpack.c.h.b16 %v1721
    %v1795 = vunpack.c.l.b16 %v1722
    %v1796 = vunpack.c.h.b16 %v1722
    %v1797 = vunpack.c.l.b16 %v1723
    %v1798 = vunpack.c.h.b16 %v1723
    %v1799 = vunpack.c.l.b16 %v1724
    %v1800 = vunpack.c.h.b16 %v1724
    %v1801 = vunpack.c.l.b16 %v1725
    %v1802 = vunpack.c.h.b16 %v1725
    %v1803 = vunpack.c.l.b16 %v1726
    %v1804 = vunpack.c.h.b16 %v1726
    %v1805 = vunpack.c.l.b16 %v1727
    %v1806 = vunpack.c.h.b16 %v1727
    %v1807 = vunpack.c.l.b16 %v1728
    %v1808 = vunpack.c.h.b16 %v1728
    %v1809 = vunpack.c.l.b16 %v1729
    %v1810 = vunpack.c.h.b16 %v1729
    %v1811 = vunpack.c.l.b16 %v1730
    %v1812 = vunpack.c.h.b16 %v1730
    %v1813 = vunpack.c.l.b16 %v1731
    %v1814 = vunpack.c.h.b16 %v1731
    %v1815 = vunpack.c.l.b16 %v1732
    %v1816 = vunpack.c.h.b16 %v1732
    %v1817 = vunpack.c.l.b16 %v1733
    %v1818 = vunpack.c.h.b16 %v1733
    %v1819 = vunpack.c.l.b16 %v1734
    %v1820 = vunpack.c.h.b16 %v1734
    %v1821 = vunpack.c.l.b16 %v1735
    %v1822 = vunpack.c.h.b16 %v1735
    %v1823 = vunpack.c.l.b16 %v1736
    %v1824 = vunpack.c.h.b16 %v1736
    %v1825 = vunpack.c.l.b16 %v1737
    %v1826 = vunpack.c.h.b16 %v1737
    %v1827 = vunpack.c.l.b16 %v1738
    %v1828 = vunpack.c.h.b16 %v1738
    %v1829 = vunpack.c.l.b16 %v1739
    %v1830 = vunpack.c.h.b16 %v1739
    %v1831 = vunpack.c.l.b16 %v1740
    %v1832 = vunpack.c.h.b16 %v1740
    %v1833 = vunpack.c.l.b16 %v1741
    %v1834 = vunpack.c.h.b16 %v1741
    %v1835 = vunpack.c.l.b16 %v1742
    %v1836 = vunpack.c.h.b16 %v1742
    %v1837 = vunpack.c.l.b16 %v1743
    %v1838 = vunpack.c.h.b16 %v1743
    %v1839 = vunpack.c.l.b16 %v1744
    %v1840 = vunpack.c.h.b16 %v1744
    %v1841 = vpack.c.b16 %v1781, %v1777
    %v1842 = vpack.c.b16 %v1782, %v1778
    %v1843 = vpack.c.b16 %v1783, %v1779
    %v1844 = vpack.c.b16 %v1784, %v1780
    %v1845 = vpack.c.b16 %v1789, %v1785
    %v1846 = vpack.c.b16 %v1790, %v1786
    %v1847 = vpack.c.b16 %v1791, %v1787
    %v1848 = vpack.c.b16 %v1792, %v1788
    %v1849 = vpack.c.b16 %v1797, %v1793
    %v1850 = vpack.c.b16 %v1798, %v1794
    %v1851 = vpack.c.b16 %v1799, %v1795
    %v1852 = vpack.c.b16 %v1800, %v1796
    %v1853 = vpack.c.b16 %v1805, %v1801
    %v1854 = vpack.c.b16 %v1806, %v1802
    %v1855 = vpack.c.b16 %v1807, %v1803
    %v1856 = vpack.c.b16 %v1808, %v1804
    %v1857 = vpack.c.b16 %v1813, %v1809
    %v1858 = vpack.c.b16 %v1814, %v1810
    %v1859 = vpack.c.b16 %v1815, %v1811
    %v1860 = vpack.c.b16 %v1816, %v1812
    %v1861 = vpack.c.b16 %v1821, %v1817
    %v1862 = vpack.c.b16 %v1822, %v1818
    %v1863 = vpack.c.b16 %v1823, %v1819
    %v1864 = vpack.c.b16 %v1824, %v1820
    %v1865 = vpack.c.b16 %v1829, %v1825
    %v1866 = vpack.c.b16 %v1830, %v1826
    %v1867 = vpack.c.b16 %v1831, %v1827
    %v1868 = vpack.c.b16 %v1832, %v1828
    %v1869 = vpack.c.b16 %v1837, %v1833
    %v1870 = vpack.c.b16 %v1838, %v1834
    %v1871 = vpack.c.b16 %v1839, %v1835
    %v1872 = vpack.c.b16 %v1840, %v1836
    %1905 = vmatprep.subr.bf16.mxu0 %v1842
    %1906 = vmatpush1.bf16.msra.mxu0 %v1841
    %1907 = vmatprep.subr.bf16.mxu0 %v1846
    %1908 = vmatpush1.bf16.msra.mxu0 %v1845
    %1909 = vmatprep.subr.bf16.mxu0 %v1850
    %1910 = vmatpush1.bf16.msra.mxu0 %v1849
    %1911 = vmatprep.subr.bf16.mxu0 %v1854
    %1912 = vmatpush1.bf16.msra.mxu0 %v1853
    %1913 = vmatprep.subr.bf16.mxu0 %v1858
    %1914 = vmatpush1.bf16.msra.mxu0 %v1857
    %1915 = vmatprep.subr.bf16.mxu0 %v1862
    %1916 = vmatpush1.bf16.msra.mxu0 %v1861
    %1917 = vmatprep.subr.bf16.mxu0 %v1866
    %1918 = vmatpush1.bf16.msra.mxu0 %v1865
    %1919 = vmatprep.subr.bf16.mxu0 %v1870
    %1920 = vmatpush1.bf16.msra.mxu0 %v1869
    %1921 = vmatprep.subr.bf16.mxu0 0
    %1922 = vmatpush1.bf16.msra.mxu0 0
    %1923 = vmatprep.subr.bf16.mxu0 0
    %1924 = vmatpush1.bf16.msra.mxu0 0
    %1925 = vmatprep.subr.bf16.mxu0 0
    %1926 = vmatpush1.bf16.msra.mxu0 0
    %1927 = vmatprep.subr.bf16.mxu0 0
    %1928 = vmatpush1.bf16.msra.mxu0 0
    %1929 = vmatprep.subr.bf16.mxu0 0
    %1930 = vmatpush1.bf16.msra.mxu0 0
    %1931 = vmatprep.subr.bf16.mxu0 0
    %1932 = vmatpush1.bf16.msra.mxu0 0
    %1933 = vmatprep.subr.bf16.mxu0 0
    %1934 = vmatpush1.bf16.msra.mxu0 0
    %1935 = vmatprep.subr.bf16.mxu0 0
    %1936 = vmatpush1.bf16.msra.mxu0 0
    %1937 = vmatprep.mubr.bf16.mxu0 0
    %1938 = vmatmul.mubr.bf16.gmra.mrb[0].mxu0 %v1677
    %v1939 = vpop.f32.mrb[0].mxu0
    %v1940 = vadd.f32 0.0, %v1939
    %v1941 = vpop.f32.mrb[0].mxu0
    %v1942 = vadd.f32 0.0, %v1941
    %v1943 = vpop.f32.mrb[0].mxu0
    %v1944 = vpop.f32.mrb[0].mxu0
    %1945 = vdwg.mxu0
    %1946 = vmatprep.subr.bf16.mxu0 %v1844
    %1947 = vmatpush1.bf16.msra.mxu0 %v1843
    %1948 = vmatprep.subr.bf16.mxu0 %v1848
    %1949 = vmatpush1.bf16.msra.mxu0 %v1847
    %1950 = vmatprep.subr.bf16.mxu0 %v1852
    %1951 = vmatpush1.bf16.msra.mxu0 %v1851
    %1952 = vmatprep.subr.bf16.mxu0 %v1856
    %1953 = vmatpush1.bf16.msra.mxu0 %v1855
    %1954 = vmatprep.subr.bf16.mxu0 %v1860
    %1955 = vmatpush1.bf16.msra.mxu0 %v1859
    %1956 = vmatprep.subr.bf16.mxu0 %v1864
    %1957 = vmatpush1.bf16.msra.mxu0 %v1863
    %1958 = vmatprep.subr.bf16.mxu0 %v1868
    %1959 = vmatpush1.bf16.msra.mxu0 %v1867
    %1960 = vmatprep.subr.bf16.mxu0 %v1872
    %1961 = vmatpush1.bf16.msra.mxu0 %v1871
    %1962 = vmatprep.subr.bf16.mxu0 0
    %1963 = vmatpush1.bf16.msra.mxu0 0
    %1964 = vmatprep.subr.bf16.mxu0 0
    %1965 = vmatpush1.bf16.msra.mxu0 0
    %1966 = vmatprep.subr.bf16.mxu0 0
    %1967 = vmatpush1.bf16.msra.mxu0 0
    %1968 = vmatprep.subr.bf16.mxu0 0
    %1969 = vmatpush1.bf16.msra.mxu0 0
    %1970 = vmatprep.subr.bf16.mxu0 0
    %1971 = vmatpush1.bf16.msra.mxu0 0
    %1972 = vmatprep.subr.bf16.mxu0 0
    %1973 = vmatpush1.bf16.msra.mxu0 0
    %1974 = vmatprep.subr.bf16.mxu0 0
    %1975 = vmatpush1.bf16.msra.mxu0 0
    %1976 = vmatprep.subr.bf16.mxu0 0
    %1977 = vmatpush1.bf16.msra.mxu0 0
    %1978 = vmatprep.mubr.bf16.mxu0 0
    %1979 = vmatmul.mubr.bf16.gmra.mrb[0].mxu0 %v1677
    %v1980 = vpop.f32.mrb[0].mxu0
    %v1981 = vadd.f32 0.0, %v1980
    %v1982 = vpop.f32.mrb[0].mxu0
    %v1983 = vadd.f32 0.0, %v1982
    %v1984 = vpop.f32.mrb[0].mxu0
    %v1985 = vpop.f32.mrb[0].mxu0
    %1986 = vdwg.mxu0
    %v2019 = vunpack.c.l.b16 %v1681
    %v2020 = vunpack.c.h.b16 %v1681
    %v2021 = vunpack.c.l.b16 %v1682
    %v2022 = vunpack.c.h.b16 %v1682
    %v2023 = vunpack.c.l.b16 %v1683
    %v2024 = vunpack.c.h.b16 %v1683
    %v2025 = vunpack.c.l.b16 %v1684
    %v2026 = vunpack.c.h.b16 %v1684
    %v2027 = vunpack.c.l.b16 %v1685
    %v2028 = vunpack.c.h.b16 %v1685
    %v2029 = vunpack.c.l.b16 %v1686
    %v2030 = vunpack.c.h.b16 %v1686
    %v2031 = vunpack.c.l.b16 %v1687
    %v2032 = vunpack.c.h.b16 %v1687
    %v2033 = vunpack.c.l.b16 %v1688
    %v2034 = vunpack.c.h.b16 %v1688
    %v2035 = vunpack.c.l.b16 %v1689
    %v2036 = vunpack.c.h.b16 %v1689
    %v2037 = vunpack.c.l.b16 %v1690
    %v2038 = vunpack.c.h.b16 %v1690
    %v2039 = vunpack.c.l.b16 %v1691
    %v2040 = vunpack.c.h.b16 %v1691
    %v2041 = vunpack.c.l.b16 %v1692
    %v2042 = vunpack.c.h.b16 %v1692
    %v2043 = vunpack.c.l.b16 %v1693
    %v2044 = vunpack.c.h.b16 %v1693
    %v2045 = vunpack.c.l.b16 %v1694
    %v2046 = vunpack.c.h.b16 %v1694
    %v2047 = vunpack.c.l.b16 %v1695
    %v2048 = vunpack.c.h.b16 %v1695
    %v2049 = vunpack.c.l.b16 %v1696
    %v2050 = vunpack.c.h.b16 %v1696
    %v2051 = vunpack.c.l.b16 %v1697
    %v2052 = vunpack.c.h.b16 %v1697
    %v2053 = vunpack.c.l.b16 %v1698
    %v2054 = vunpack.c.h.b16 %v1698
    %v2055 = vunpack.c.l.b16 %v1699
    %v2056 = vunpack.c.h.b16 %v1699
    %v2057 = vunpack.c.l.b16 %v1700
    %v2058 = vunpack.c.h.b16 %v1700
    %v2059 = vunpack.c.l.b16 %v1701
    %v2060 = vunpack.c.h.b16 %v1701
    %v2061 = vunpack.c.l.b16 %v1702
    %v2062 = vunpack.c.h.b16 %v1702
    %v2063 = vunpack.c.l.b16 %v1703
    %v2064 = vunpack.c.h.b16 %v1703
    %v2065 = vunpack.c.l.b16 %v1704
    %v2066 = vunpack.c.h.b16 %v1704
    %v2067 = vunpack.c.l.b16 %v1705
    %v2068 = vunpack.c.h.b16 %v1705
    %v2069 = vunpack.c.l.b16 %v1706
    %v2070 = vunpack.c.h.b16 %v1706
    %v2071 = vunpack.c.l.b16 %v1707
    %v2072 = vunpack.c.h.b16 %v1707
    %v2073 = vunpack.c.l.b16 %v1708
    %v2074 = vunpack.c.h.b16 %v1708
    %v2075 = vunpack.c.l.b16 %v1709
    %v2076 = vunpack.c.h.b16 %v1709
    %v2077 = vunpack.c.l.b16 %v1710
    %v2078 = vunpack.c.h.b16 %v1710
    %v2079 = vunpack.c.l.b16 %v1711
    %v2080 = vunpack.c.h.b16 %v1711
    %v2081 = vunpack.c.l.b16 %v1712
    %v2082 = vunpack.c.h.b16 %v1712
    %v2083 = vpack.c.b16 %v2023, %v2019
    %v2084 = vpack.c.b16 %v2024, %v2020
    %v2085 = vpack.c.b16 %v2025, %v2021
    %v2086 = vpack.c.b16 %v2026, %v2022
    %v2087 = vpack.c.b16 %v2031, %v2027
    %v2088 = vpack.c.b16 %v2032, %v2028
    %v2089 = vpack.c.b16 %v2033, %v2029
    %v2090 = vpack.c.b16 %v2034, %v2030
    %v2091 = vpack.c.b16 %v2039, %v2035
    %v2092 = vpack.c.b16 %v2040, %v2036
    %v2093 = vpack.c.b16 %v2041, %v2037
    %v2094 = vpack.c.b16 %v2042, %v2038
    %v2095 = vpack.c.b16 %v2047, %v2043
    %v2096 = vpack.c.b16 %v2048, %v2044
    %v2097 = vpack.c.b16 %v2049, %v2045
    %v2098 = vpack.c.b16 %v2050, %v2046
    %v2099 = vpack.c.b16 %v2055, %v2051
    %v2100 = vpack.c.b16 %v2056, %v2052
    %v2101 = vpack.c.b16 %v2057, %v2053
    %v2102 = vpack.c.b16 %v2058, %v2054
    %v2103 = vpack.c.b16 %v2063, %v2059
    %v2104 = vpack.c.b16 %v2064, %v2060
    %v2105 = vpack.c.b16 %v2065, %v2061
    %v2106 = vpack.c.b16 %v2066, %v2062
    %v2107 = vpack.c.b16 %v2071, %v2067
    %v2108 = vpack.c.b16 %v2072, %v2068
    %v2109 = vpack.c.b16 %v2073, %v2069
    %v2110 = vpack.c.b16 %v2074, %v2070
    %v2111 = vpack.c.b16 %v2079, %v2075
    %v2112 = vpack.c.b16 %v2080, %v2076
    %v2113 = vpack.c.b16 %v2081, %v2077
    %v2114 = vpack.c.b16 %v2082, %v2078
    %2147 = vmatprep.subr.bf16.mxu0 %v2084
    %2148 = vmatpush1.bf16.msra.mxu0 %v2083
    %2149 = vmatprep.subr.bf16.mxu0 %v2088
    %2150 = vmatpush1.bf16.msra.mxu0 %v2087
    %2151 = vmatprep.subr.bf16.mxu0 %v2092
    %2152 = vmatpush1.bf16.msra.mxu0 %v2091
    %2153 = vmatprep.subr.bf16.mxu0 %v2096
    %2154 = vmatpush1.bf16.msra.mxu0 %v2095
    %2155 = vmatprep.subr.bf16.mxu0 %v2100
    %2156 = vmatpush1.bf16.msra.mxu0 %v2099
    %2157 = vmatprep.subr.bf16.mxu0 %v2104
    %2158 = vmatpush1.bf16.msra.mxu0 %v2103
    %2159 = vmatprep.subr.bf16.mxu0 %v2108
    %2160 = vmatpush1.bf16.msra.mxu0 %v2107
    %2161 = vmatprep.subr.bf16.mxu0 %v2112
    %2162 = vmatpush1.bf16.msra.mxu0 %v2111
    %2163 = vmatprep.subr.bf16.mxu0 0
    %2164 = vmatpush1.bf16.msra.mxu0 0
    %2165 = vmatprep.subr.bf16.mxu0 0
    %2166 = vmatpush1.bf16.msra.mxu0 0
    %2167 = vmatprep.subr.bf16.mxu0 0
    %2168 = vmatpush1.bf16.msra.mxu0 0
    %2169 = vmatprep.subr.bf16.mxu0 0
    %2170 = vmatpush1.bf16.msra.mxu0 0
    %2171 = vmatprep.subr.bf16.mxu0 0
    %2172 = vmatpush1.bf16.msra.mxu0 0
    %2173 = vmatprep.subr.bf16.mxu0 0
    %2174 = vmatpush1.bf16.msra.mxu0 0
    %2175 = vmatprep.subr.bf16.mxu0 0
    %2176 = vmatpush1.bf16.msra.mxu0 0
    %2177 = vmatprep.subr.bf16.mxu0 0
    %2178 = vmatpush1.bf16.msra.mxu0 0
    %2179 = vmatprep.mubr.bf16.mxu0 0
    %2180 = vmatmul.mubr.bf16.gmra.mrb[0].mxu0 %v1677
    %v2181 = vpop.f32.mrb[0].mxu0
    %v2182 = vadd.f32 %v1940, %v2181
    %v2183 = vpop.f32.mrb[0].mxu0
    %v2184 = vadd.f32 %v1942, %v2183
    %v2185 = vpop.f32.mrb[0].mxu0
    %v2186 = vpop.f32.mrb[0].mxu0
    %2187 = vdwg.mxu0
    %2188 = vmatprep.subr.bf16.mxu0 %v2086
    %2189 = vmatpush1.bf16.msra.mxu0 %v2085
    %2190 = vmatprep.subr.bf16.mxu0 %v2090
    %2191 = vmatpush1.bf16.msra.mxu0 %v2089
    %2192 = vmatprep.subr.bf16.mxu0 %v2094
    %2193 = vmatpush1.bf16.msra.mxu0 %v2093
    %2194 = vmatprep.subr.bf16.mxu0 %v2098
    %2195 = vmatpush1.bf16.msra.mxu0 %v2097
    %2196 = vmatprep.subr.bf16.mxu0 %v2102
    %2197 = vmatpush1.bf16.msra.mxu0 %v2101
    %2198 = vmatprep.subr.bf16.mxu0 %v2106
    %2199 = vmatpush1.bf16.msra.mxu0 %v2105
    %2200 = vmatprep.subr.bf16.mxu0 %v2110
    %2201 = vmatpush1.bf16.msra.mxu0 %v2109
    %2202 = vmatprep.subr.bf16.mxu0 %v2114
    %2203 = vmatpush1.bf16.msra.mxu0 %v2113
    %2204 = vmatprep.subr.bf16.mxu0 0
    %2205 = vmatpush1.bf16.msra.mxu0 0
    %2206 = vmatprep.subr.bf16.mxu0 0
    %2207 = vmatpush1.bf16.msra.mxu0 0
    %2208 = vmatprep.subr.bf16.mxu0 0
    %2209 = vmatpush1.bf16.msra.mxu0 0
    %2210 = vmatprep.subr.bf16.mxu0 0
    %2211 = vmatpush1.bf16.msra.mxu0 0
    %2212 = vmatprep.subr.bf16.mxu0 0
    %2213 = vmatpush1.bf16.msra.mxu0 0
    %2214 = vmatprep.subr.bf16.mxu0 0
    %2215 = vmatpush1.bf16.msra.mxu0 0
    %2216 = vmatprep.subr.bf16.mxu0 0
    %2217 = vmatpush1.bf16.msra.mxu0 0
    %2218 = vmatprep.subr.bf16.mxu0 0
    %2219 = vmatpush1.bf16.msra.mxu0 0
    %2220 = vmatprep.mubr.bf16.mxu0 0
    %2221 = vmatmul.mubr.bf16.gmra.mrb[0].mxu0 %v1677
    %v2222 = vpop.f32.mrb[0].mxu0
    %v2223 = vadd.f32 %v1981, %v2222
    %v2224 = vpop.f32.mrb[0].mxu0
    %v2225 = vadd.f32 %v1983, %v2224
    %v2226 = vpop.f32.mrb[0].mxu0
    %v2227 = vpop.f32.mrb[0].mxu0
    %2228 = vdwg.mxu0
    %2229 = vmatprep.subr.bf16.mxu0 %v2084
    %2230 = vmatpush1.bf16.msra.mxu0 %v2083
    %2231 = vmatprep.subr.bf16.mxu0 %v2088
    %2232 = vmatpush1.bf16.msra.mxu0 %v2087
    %2233 = vmatprep.subr.bf16.mxu0 %v2092
    %2234 = vmatpush1.bf16.msra.mxu0 %v2091
    %2235 = vmatprep.subr.bf16.mxu0 %v2096
    %2236 = vmatpush1.bf16.msra.mxu0 %v2095
    %2237 = vmatprep.subr.bf16.mxu0 %v2100
    %2238 = vmatpush1.bf16.msra.mxu0 %v2099
    %2239 = vmatprep.subr.bf16.mxu0 %v2104
    %2240 = vmatpush1.bf16.msra.mxu0 %v2103
    %2241 = vmatprep.subr.bf16.mxu0 %v2108
    %2242 = vmatpush1.bf16.msra.mxu0 %v2107
    %2243 = vmatprep.subr.bf16.mxu0 %v2112
    %2244 = vmatpush1.bf16.msra.mxu0 %v2111
    %2245 = vmatprep.subr.bf16.mxu0 0
    %2246 = vmatpush1.bf16.msra.mxu0 0
    %2247 = vmatprep.subr.bf16.mxu0 0
    %2248 = vmatpush1.bf16.msra.mxu0 0
    %2249 = vmatprep.subr.bf16.mxu0 0
    %2250 = vmatpush1.bf16.msra.mxu0 0
    %2251 = vmatprep.subr.bf16.mxu0 0
    %2252 = vmatpush1.bf16.msra.mxu0 0
    %2253 = vmatprep.subr.bf16.mxu0 0
    %2254 = vmatpush1.bf16.msra.mxu0 0
    %2255 = vmatprep.subr.bf16.mxu0 0
    %2256 = vmatpush1.bf16.msra.mxu0 0
    %2257 = vmatprep.subr.bf16.mxu0 0
    %2258 = vmatpush1.bf16.msra.mxu0 0
    %2259 = vmatprep.subr.bf16.mxu0 0
    %2260 = vmatpush1.bf16.msra.mxu0 0
    %2261 = vmatprep.mubr.bf16.mxu0 0
    %2262 = vmatmul.mubr.bf16.gmra.mrb[0].mxu0 %v1680
    %v2263 = vpop.f32.mrb[0].mxu0
    %v2264 = vadd.f32 0.0, %v2263
    %v2265 = vpop.f32.mrb[0].mxu0
    %v2266 = vadd.f32 0.0, %v2265
    %v2267 = vpop.f32.mrb[0].mxu0
    %v2268 = vpop.f32.mrb[0].mxu0
    %2269 = vdwg.mxu0
    %2270 = vmatprep.subr.bf16.mxu0 %v2086
    %2271 = vmatpush1.bf16.msra.mxu0 %v2085
    %2272 = vmatprep.subr.bf16.mxu0 %v2090
    %2273 = vmatpush1.bf16.msra.mxu0 %v2089
    %2274 = vmatprep.subr.bf16.mxu0 %v2094
    %2275 = vmatpush1.bf16.msra.mxu0 %v2093
    %2276 = vmatprep.subr.bf16.mxu0 %v2098
    %2277 = vmatpush1.bf16.msra.mxu0 %v2097
    %2278 = vmatprep.subr.bf16.mxu0 %v2102
    %2279 = vmatpush1.bf16.msra.mxu0 %v2101
    %2280 = vmatprep.subr.bf16.mxu0 %v2106
    %2281 = vmatpush1.bf16.msra.mxu0 %v2105
    %2282 = vmatprep.subr.bf16.mxu0 %v2110
    %2283 = vmatpush1.bf16.msra.mxu0 %v2109
    %2284 = vmatprep.subr.bf16.mxu0 %v2114
    %2285 = vmatpush1.bf16.msra.mxu0 %v2113
    %2286 = vmatprep.subr.bf16.mxu0 0
    %2287 = vmatpush1.bf16.msra.mxu0 0
    %2288 = vmatprep.subr.bf16.mxu0 0
    %2289 = vmatpush1.bf16.msra.mxu0 0
    %2290 = vmatprep.subr.bf16.mxu0 0
    %2291 = vmatpush1.bf16.msra.mxu0 0
    %2292 = vmatprep.subr.bf16.mxu0 0
    %2293 = vmatpush1.bf16.msra.mxu0 0
    %2294 = vmatprep.subr.bf16.mxu0 0
    %2295 = vmatpush1.bf16.msra.mxu0 0
    %2296 = vmatprep.subr.bf16.mxu0 0
    %2297 = vmatpush1.bf16.msra.mxu0 0
    %2298 = vmatprep.subr.bf16.mxu0 0
    %2299 = vmatpush1.bf16.msra.mxu0 0
    %2300 = vmatprep.subr.bf16.mxu0 0
    %2301 = vmatpush1.bf16.msra.mxu0 0
    %2302 = vmatprep.mubr.bf16.mxu0 0
    %2303 = vmatmul.mubr.bf16.gmra.mrb[0].mxu0 %v1680
    %v2304 = vpop.f32.mrb[0].mxu0
    %v2305 = vadd.f32 0.0, %v2304
    %v2306 = vpop.f32.mrb[0].mxu0
    %v2307 = vadd.f32 0.0, %v2306
    %v2308 = vpop.f32.mrb[0].mxu0
    %v2309 = vpop.f32.mrb[0].mxu0
    %2310 = vdwg.mxu0
    %v2311 = vadd.f32 %v2182, %v2264
    %v2312 = vadd.f32 %v2184, %v2266
    %v2313 = vadd.f32 %v2223, %v2305
    %v2314 = vadd.f32 %v2225, %v2307
    %s2315 = scalar_lea.vmem [#allocation2], 2
    %v2316 = vld [vmem:[%s2315] ss:$8 sm:$0xf]
    %v2321 = vcombine.low %v2311, %v2312
    %v2322 = vcombine.low %v2313, %v2314
    %v2324 = vunpack.c.l.s4 1966171168
    %v2325 = vunpack.c.0.s8 %v2324
    %v2326 = vlaneseq
    %v2327 = vshrl.u32 %v2326, 7
    %v2328 = vsub.s32 %v2325, %v2327
    %v2329 = vrot.slane %v2321, %v2328
    %v2331 = vunpack.c.l.s4 1966171168
    %v2332 = vunpack.c.0.s8 %v2331
    %v2333 = vlaneseq
    %v2334 = vshrl.u32 %v2333, 7
    %v2335 = vsub.s32 %v2332, %v2334
    %v2336 = vrot.slane %v2322, %v2335
    %v2337 = vcombine.low %v2329, %v2336
    %v2339 = vunpack.c.l.s4 1966171168
    %v2340 = vunpack.c.0.s8 %v2339
    %v2341 = vlaneseq
    %v2342 = vshrl.u32 %v2341, 7
    %v2343 = vsub.s32 %v2340, %v2342
    %v2344 = vrot.slane %v2337, %v2343
    %v2346 = vadd.f32 %v2316, %v2344
    %v2347 = vxor.u32 %v2346, 2147483648
    %v2348 = vmul.f32 %v2347, 1.442695
    %v2349 = vpow.pop %v2348
    %v2350 = vadd.f32 %v2349, 1.0
    %v2351 = vrcp.pop %v2350
    %v2352 = vmul.f32 1.0, %v2351
    %v2354 = vrot.slane %v2346, 3
    %v2356 = vtanh.pop %v2354
    %v2358 = vrot.slane %v2352, 1
    %v2360 = vmul.f32 %v2358, %v1671
    %v2361 = vmul.f32 %v2352, %v2356
    %v2362 = vadd.f32 %v2360, %v2361
    %v2363 = vtanh.pop %v2362
    %v2364 = vrot.slane %v2352, 2
    %v2366 = vmul.f32 %v2364, %v2363
    %2367 = vst [vmem:[#allocation3 + $0x2] sm:$0x1] %v2366
    %v2368 = vpack.c.bf16 %v2366, %v2366
    %v2369 = vunpack.c.l.bf16 %v2368
    %v2370 = vsub.f32 %v2366, %v2369
    %v2371 = vpack.c.bf16 %v2370, %v2370
    %v2372 = vld [vmem:[#allocation4] sm:$0xff]
    %v2373 = vld [vmem:[#allocation4 + $0x8] sm:$0xff]
    %v2374 = vld [vmem:[#allocation4 + $0x10] sm:$0xff]
    %v2375 = vld [vmem:[#allocation4 + $0x18] sm:$0xff]
    %v2376 = vld [vmem:[#allocation4 + $0x20] sm:$0xff]
    %v2377 = vld [vmem:[#allocation4 + $0x28] sm:$0xff]
    %v2378 = vld [vmem:[#allocation4 + $0x30] sm:$0xff]
    %v2379 = vld [vmem:[#allocation4 + $0x38] sm:$0xff]
    %v2380 = vld [vmem:[#allocation4 + $0x40] sm:$0xff]
    %v2381 = vld [vmem:[#allocation4 + $0x48] sm:$0xff]
    %v2382 = vld [vmem:[#allocation4 + $0x50] sm:$0xff]
    %v2383 = vld [vmem:[#allocation4 + $0x58] sm:$0xff]
    %v2384 = vld [vmem:[#allocation4 + $0x60] sm:$0xff]
    %v2385 = vld [vmem:[#allocation4 + $0x68] sm:$0xff]
    %v2386 = vld [vmem:[#allocation4 + $0x70] sm:$0xff]
    %v2387 = vld [vmem:[#allocation4 + $0x78] sm:$0xff]
    %v2388 = vld [vmem:[#allocation4 + $0x80] sm:$0xff]
    %v2389 = vld [vmem:[#allocation4 + $0x88] sm:$0xff]
    %v2390 = vld [vmem:[#allocation4 + $0x90] sm:$0xff]
    %v2391 = vld [vmem:[#allocation4 + $0x98] sm:$0xff]
    %v2392 = vld [vmem:[#allocation4 + $0xa0] sm:$0xff]
    %v2393 = vld [vmem:[#allocation4 + $0xa8] sm:$0xff]
    %v2394 = vld [vmem:[#allocation4 + $0xb0] sm:$0xff]
    %v2395 = vld [vmem:[#allocation4 + $0xb8] sm:$0xff]
    %v2396 = vld [vmem:[#allocation4 + $0xc0] sm:$0xff]
    %v2397 = vld [vmem:[#allocation4 + $0xc8] sm:$0xff]
    %v2398 = vld [vmem:[#allocation4 + $0xd0] sm:$0xff]
    %v2399 = vld [vmem:[#allocation4 + $0xd8] sm:$0xff]
    %v2400 = vld [vmem:[#allocation4 + $0xe0] sm:$0xff]
    %v2401 = vld [vmem:[#allocation4 + $0xe8] sm:$0xff]
    %v2402 = vld [vmem:[#allocation4 + $0xf0] sm:$0xff]
    %v2403 = vld [vmem:[#allocation4 + $0xf8] sm:$0xff]
    %v2404 = vld [vmem:[#allocation7] sm:$0xff]
    %v2405 = vld [vmem:[#allocation7 + $0x8] sm:$0xff]
    %v2406 = vld [vmem:[#allocation7 + $0x10] sm:$0xff]
    %v2407 = vld [vmem:[#allocation7 + $0x18] sm:$0xff]
    %v2408 = vld [vmem:[#allocation7 + $0x20] sm:$0xff]
    %v2409 = vld [vmem:[#allocation7 + $0x28] sm:$0xff]
    %v2410 = vld [vmem:[#allocation7 + $0x30] sm:$0xff]
    %v2411 = vld [vmem:[#allocation7 + $0x38] sm:$0xff]
    %v2412 = vld [vmem:[#allocation7 + $0x40] sm:$0xff]
    %v2413 = vld [vmem:[#allocation7 + $0x48] sm:$0xff]
    %v2414 = vld [vmem:[#allocation7 + $0x50] sm:$0xff]
    %v2415 = vld [vmem:[#allocation7 + $0x58] sm:$0xff]
    %v2416 = vld [vmem:[#allocation7 + $0x60] sm:$0xff]
    %v2417 = vld [vmem:[#allocation7 + $0x68] sm:$0xff]
    %v2418 = vld [vmem:[#allocation7 + $0x70] sm:$0xff]
    %v2419 = vld [vmem:[#allocation7 + $0x78] sm:$0xff]
    %v2420 = vld [vmem:[#allocation7 + $0x80] sm:$0xff]
    %v2421 = vld [vmem:[#allocation7 + $0x88] sm:$0xff]
    %v2422 = vld [vmem:[#allocation7 + $0x90] sm:$0xff]
    %v2423 = vld [vmem:[#allocation7 + $0x98] sm:$0xff]
    %v2424 = vld [vmem:[#allocation7 + $0xa0] sm:$0xff]
    %v2425 = vld [vmem:[#allocation7 + $0xa8] sm:$0xff]
    %v2426 = vld [vmem:[#allocation7 + $0xb0] sm:$0xff]
    %v2427 = vld [vmem:[#allocation7 + $0xb8] sm:$0xff]
    %v2428 = vld [vmem:[#allocation7 + $0xc0] sm:$0xff]
    %v2429 = vld [vmem:[#allocation7 + $0xc8] sm:$0xff]
    %v2430 = vld [vmem:[#allocation7 + $0xd0] sm:$0xff]
    %v2431 = vld [vmem:[#allocation7 + $0xd8] sm:$0xff]
    %v2432 = vld [vmem:[#allocation7 + $0xe0] sm:$0xff]
    %v2433 = vld [vmem:[#allocation7 + $0xe8] sm:$0xff]
    %v2434 = vld [vmem:[#allocation7 + $0xf0] sm:$0xff]
    %v2435 = vld [vmem:[#allocation7 + $0xf8] sm:$0xff]
    %v2468 = vunpack.c.l.b16 %v2404
    %v2469 = vunpack.c.h.b16 %v2404
    %v2470 = vunpack.c.l.b16 %v2405
    %v2471 = vunpack.c.h.b16 %v2405
    %v2472 = vunpack.c.l.b16 %v2406
    %v2473 = vunpack.c.h.b16 %v2406
    %v2474 = vunpack.c.l.b16 %v2407
    %v2475 = vunpack.c.h.b16 %v2407
    %v2476 = vunpack.c.l.b16 %v2408
    %v2477 = vunpack.c.h.b16 %v2408
    %v2478 = vunpack.c.l.b16 %v2409
    %v2479 = vunpack.c.h.b16 %v2409
    %v2480 = vunpack.c.l.b16 %v2410
    %v2481 = vunpack.c.h.b16 %v2410
    %v2482 = vunpack.c.l.b16 %v2411
    %v2483 = vunpack.c.h.b16 %v2411
    %v2484 = vunpack.c.l.b16 %v2412
    %v2485 = vunpack.c.h.b16 %v2412
    %v2486 = vunpack.c.l.b16 %v2413
    %v2487 = vunpack.c.h.b16 %v2413
    %v2488 = vunpack.c.l.b16 %v2414
    %v2489 = vunpack.c.h.b16 %v2414
    %v2490 = vunpack.c.l.b16 %v2415
    %v2491 = vunpack.c.h.b16 %v2415
    %v2492 = vunpack.c.l.b16 %v2416
    %v2493 = vunpack.c.h.b16 %v2416
    %v2494 = vunpack.c.l.b16 %v2417
    %v2495 = vunpack.c.h.b16 %v2417
    %v2496 = vunpack.c.l.b16 %v2418
    %v2497 = vunpack.c.h.b16 %v2418
    %v2498 = vunpack.c.l.b16 %v2419
    %v2499 = vunpack.c.h.b16 %v2419
    %v2500 = vunpack.c.l.b16 %v2420
    %v2501 = vunpack.c.h.b16 %v2420
    %v2502 = vunpack.c.l.b16 %v2421
    %v2503 = vunpack.c.h.b16 %v2421
    %v2504 = vunpack.c.l.b16 %v2422
    %v2505 = vunpack.c.h.b16 %v2422
    %v2506 = vunpack.c.l.b16 %v2423
    %v2507 = vunpack.c.h.b16 %v2423
    %v2508 = vunpack.c.l.b16 %v2424
    %v2509 = vunpack.c.h.b16 %v2424
    %v2510 = vunpack.c.l.b16 %v2425
    %v2511 = vunpack.c.h.b16 %v2425
    %v2512 = vunpack.c.l.b16 %v2426
    %v2513 = vunpack.c.h.b16 %v2426
    %v2514 = vunpack.c.l.b16 %v2427
    %v2515 = vunpack.c.h.b16 %v2427
    %v2516 = vunpack.c.l.b16 %v2428
    %v2517 = vunpack.c.h.b16 %v2428
    %v2518 = vunpack.c.l.b16 %v2429
    %v2519 = vunpack.c.h.b16 %v2429
    %v2520 = vunpack.c.l.b16 %v2430
    %v2521 = vunpack.c.h.b16 %v2430
    %v2522 = vunpack.c.l.b16 %v2431
    %v2523 = vunpack.c.h.b16 %v2431
    %v2524 = vunpack.c.l.b16 %v2432
    %v2525 = vunpack.c.h.b16 %v2432
    %v2526 = vunpack.c.l.b16 %v2433
    %v2527 = vunpack.c.h.b16 %v2433
    %v2528 = vunpack.c.l.b16 %v2434
    %v2529 = vunpack.c.h.b16 %v2434
    %v2530 = vunpack.c.l.b16 %v2435
    %v2531 = vunpack.c.h.b16 %v2435
    %v2532 = vpack.c.b16 %v2472, %v2468
    %v2533 = vpack.c.b16 %v2473, %v2469
    %v2534 = vpack.c.b16 %v2474, %v2470
    %v2535 = vpack.c.b16 %v2475, %v2471
    %v2536 = vpack.c.b16 %v2480, %v2476
    %v2537 = vpack.c.b16 %v2481, %v2477
    %v2538 = vpack.c.b16 %v2482, %v2478
    %v2539 = vpack.c.b16 %v2483, %v2479
    %v2540 = vpack.c.b16 %v2488, %v2484
    %v2541 = vpack.c.b16 %v2489, %v2485
    %v2542 = vpack.c.b16 %v2490, %v2486
    %v2543 = vpack.c.b16 %v2491, %v2487
    %v2544 = vpack.c.b16 %v2496, %v2492
    %v2545 = vpack.c.b16 %v2497, %v2493
    %v2546 = vpack.c.b16 %v2498, %v2494
    %v2547 = vpack.c.b16 %v2499, %v2495
    %v2548 = vpack.c.b16 %v2504, %v2500
    %v2549 = vpack.c.b16 %v2505, %v2501
    %v2550 = vpack.c.b16 %v2506, %v2502
    %v2551 = vpack.c.b16 %v2507, %v2503
    %v2552 = vpack.c.b16 %v2512, %v2508
    %v2553 = vpack.c.b16 %v2513, %v2509
    %v2554 = vpack.c.b16 %v2514, %v2510
    %v2555 = vpack.c.b16 %v2515, %v2511
    %v2556 = vpack.c.b16 %v2520, %v2516
    %v2557 = vpack.c.b16 %v2521, %v2517
    %v2558 = vpack.c.b16 %v2522, %v2518
    %v2559 = vpack.c.b16 %v2523, %v2519
    %v2560 = vpack.c.b16 %v2528, %v2524
    %v2561 = vpack.c.b16 %v2529, %v2525
    %v2562 = vpack.c.b16 %v2530, %v2526
    %v2563 = vpack.c.b16 %v2531, %v2527
    %2596 = vmatprep.subr.bf16.mxu0 %v2533
    %2597 = vmatpush1.bf16.msra.mxu0 %v2532
    %2598 = vmatprep.subr.bf16.mxu0 %v2537
    %2599 = vmatpush1.bf16.msra.mxu0 %v2536
    %2600 = vmatprep.subr.bf16.mxu0 %v2541
    %2601 = vmatpush1.bf16.msra.mxu0 %v2540
    %2602 = vmatprep.subr.bf16.mxu0 %v2545
    %2603 = vmatpush1.bf16.msra.mxu0 %v2544
    %2604 = vmatprep.subr.bf16.mxu0 %v2549
    %2605 = vmatpush1.bf16.msra.mxu0 %v2548
    %2606 = vmatprep.subr.bf16.mxu0 %v2553
    %2607 = vmatpush1.bf16.msra.mxu0 %v2552
    %2608 = vmatprep.subr.bf16.mxu0 %v2557
    %2609 = vmatpush1.bf16.msra.mxu0 %v2556
    %2610 = vmatprep.subr.bf16.mxu0 %v2561
    %2611 = vmatpush1.bf16.msra.mxu0 %v2560
    %2612 = vmatprep.subr.bf16.mxu0 0
    %2613 = vmatpush1.bf16.msra.mxu0 0
    %2614 = vmatprep.subr.bf16.mxu0 0
    %2615 = vmatpush1.bf16.msra.mxu0 0
    %2616 = vmatprep.subr.bf16.mxu0 0
    %2617 = vmatpush1.bf16.msra.mxu0 0
    %2618 = vmatprep.subr.bf16.mxu0 0
    %2619 = vmatpush1.bf16.msra.mxu0 0
    %2620 = vmatprep.subr.bf16.mxu0 0
    %2621 = vmatpush1.bf16.msra.mxu0 0
    %2622 = vmatprep.subr.bf16.mxu0 0
    %2623 = vmatpush1.bf16.msra.mxu0 0
    %2624 = vmatprep.subr.bf16.mxu0 0
    %2625 = vmatpush1.bf16.msra.mxu0 0
    %2626 = vmatprep.subr.bf16.mxu0 0
    %2627 = vmatpush1.bf16.msra.mxu0 0
    %2628 = vmatprep.mubr.bf16.mxu0 0
    %2629 = vmatmul.mubr.bf16.gmra.mrb[0].mxu0 %v2368
    %v2630 = vpop.f32.mrb[0].mxu0
    %v2631 = vadd.f32 0.0, %v2630
    %v2632 = vpop.f32.mrb[0].mxu0
    %v2633 = vadd.f32 0.0, %v2632
    %v2634 = vpop.f32.mrb[0].mxu0
    %v2635 = vpop.f32.mrb[0].mxu0
    %2636 = vdwg.mxu0
    %2637 = vmatprep.subr.bf16.mxu0 %v2535
    %2638 = vmatpush1.bf16.msra.mxu0 %v2534
    %2639 = vmatprep.subr.bf16.mxu0 %v2539
    %2640 = vmatpush1.bf16.msra.mxu0 %v2538
    %2641 = vmatprep.subr.bf16.mxu0 %v2543
    %2642 = vmatpush1.bf16.msra.mxu0 %v2542
    %2643 = vmatprep.subr.bf16.mxu0 %v2547
    %2644 = vmatpush1.bf16.msra.mxu0 %v2546
    %2645 = vmatprep.subr.bf16.mxu0 %v2551
    %2646 = vmatpush1.bf16.msra.mxu0 %v2550
    %2647 = vmatprep.subr.bf16.mxu0 %v2555
    %2648 = vmatpush1.bf16.msra.mxu0 %v2554
    %2649 = vmatprep.subr.bf16.mxu0 %v2559
    %2650 = vmatpush1.bf16.msra.mxu0 %v2558
    %2651 = vmatprep.subr.bf16.mxu0 %v2563
    %2652 = vmatpush1.bf16.msra.mxu0 %v2562
    %2653 = vmatprep.subr.bf16.mxu0 0
    %2654 = vmatpush1.bf16.msra.mxu0 0
    %2655 = vmatprep.subr.bf16.mxu0 0
    %2656 = vmatpush1.bf16.msra.mxu0 0
    %2657 = vmatprep.subr.bf16.mxu0 0
    %2658 = vmatpush1.bf16.msra.mxu0 0
    %2659 = vmatprep.subr.bf16.mxu0 0
    %2660 = vmatpush1.bf16.msra.mxu0 0
    %2661 = vmatprep.subr.bf16.mxu0 0
    %2662 = vmatpush1.bf16.msra.mxu0 0
    %2663 = vmatprep.subr.bf16.mxu0 0
    %2664 = vmatpush1.bf16.msra.mxu0 0
    %2665 = vmatprep.subr.bf16.mxu0 0
    %2666 = vmatpush1.bf16.msra.mxu0 0
    %2667 = vmatprep.subr.bf16.mxu0 0
    %2668 = vmatpush1.bf16.msra.mxu0 0
    %2669 = vmatprep.mubr.bf16.mxu0 0
    %2670 = vmatmul.mubr.bf16.gmra.mrb[0].mxu0 %v2368
    %v2671 = vpop.f32.mrb[0].mxu0
    %v2672 = vadd.f32 0.0, %v2671
    %v2673 = vpop.f32.mrb[0].mxu0
    %v2674 = vadd.f32 0.0, %v2673
    %v2675 = vpop.f32.mrb[0].mxu0
    %v2676 = vpop.f32.mrb[0].mxu0
    %2677 = vdwg.mxu0
    %v2710 = vunpack.c.l.b16 %v2372
    %v2711 = vunpack.c.h.b16 %v2372
    %v2712 = vunpack.c.l.b16 %v2373
    %v2713 = vunpack.c.h.b16 %v2373
    %v2714 = vunpack.c.l.b16 %v2374
    %v2715 = vunpack.c.h.b16 %v2374
    %v2716 = vunpack.c.l.b16 %v2375
    %v2717 = vunpack.c.h.b16 %v2375
    %v2718 = vunpack.c.l.b16 %v2376
    %v2719 = vunpack.c.h.b16 %v2376
    %v2720 = vunpack.c.l.b16 %v2377
    %v2721 = vunpack.c.h.b16 %v2377
    %v2722 = vunpack.c.l.b16 %v2378
    %v2723 = vunpack.c.h.b16 %v2378
    %v2724 = vunpack.c.l.b16 %v2379
    %v2725 = vunpack.c.h.b16 %v2379
    %v2726 = vunpack.c.l.b16 %v2380
    %v2727 = vunpack.c.h.b16 %v2380
    %v2728 = vunpack.c.l.b16 %v2381
    %v2729 = vunpack.c.h.b16 %v2381
    %v2730 = vunpack.c.l.b16 %v2382
    %v2731 = vunpack.c.h.b16 %v2382
    %v2732 = vunpack.c.l.b16 %v2383
    %v2733 = vunpack.c.h.b16 %v2383
    %v2734 = vunpack.c.l.b16 %v2384
    %v2735 = vunpack.c.h.b16 %v2384
    %v2736 = vunpack.c.l.b16 %v2385
    %v2737 = vunpack.c.h.b16 %v2385
    %v2738 = vunpack.c.l.b16 %v2386
    %v2739 = vunpack.c.h.b16 %v2386
    %v2740 = vunpack.c.l.b16 %v2387
    %v2741 = vunpack.c.h.b16 %v2387
    %v2742 = vunpack.c.l.b16 %v2388
    %v2743 = vunpack.c.h.b16 %v2388
    %v2744 = vunpack.c.l.b16 %v2389
    %v2745 = vunpack.c.h.b16 %v2389
    %v2746 = vunpack.c.l.b16 %v2390
    %v2747 = vunpack.c.h.b16 %v2390
    %v2748 = vunpack.c.l.b16 %v2391
    %v2749 = vunpack.c.h.b16 %v2391
    %v2750 = vunpack.c.l.b16 %v2392
    %v2751 = vunpack.c.h.b16 %v2392
    %v2752 = vunpack.c.l.b16 %v2393
    %v2753 = vunpack.c.h.b16 %v2393
    %v2754 = vunpack.c.l.b16 %v2394
    %v2755 = vunpack.c.h.b16 %v2394
    %v2756 = vunpack.c.l.b16 %v2395
    %v2757 = vunpack.c.h.b16 %v2395
    %v2758 = vunpack.c.l.b16 %v2396
    %v2759 = vunpack.c.h.b16 %v2396
    %v2760 = vunpack.c.l.b16 %v2397
    %v2761 = vunpack.c.h.b16 %v2397
    %v2762 = vunpack.c.l.b16 %v2398
    %v2763 = vunpack.c.h.b16 %v2398
    %v2764 = vunpack.c.l.b16 %v2399
    %v2765 = vunpack.c.h.b16 %v2399
    %v2766 = vunpack.c.l.b16 %v2400
    %v2767 = vunpack.c.h.b16 %v2400
    %v2768 = vunpack.c.l.b16 %v2401
    %v2769 = vunpack.c.h.b16 %v2401
    %v2770 = vunpack.c.l.b16 %v2402
    %v2771 = vunpack.c.h.b16 %v2402
    %v2772 = vunpack.c.l.b16 %v2403
    %v2773 = vunpack.c.h.b16 %v2403
    %v2774 = vpack.c.b16 %v2714, %v2710
    %v2775 = vpack.c.b16 %v2715, %v2711
    %v2776 = vpack.c.b16 %v2716, %v2712
    %v2777 = vpack.c.b16 %v2717, %v2713
    %v2778 = vpack.c.b16 %v2722, %v2718
    %v2779 = vpack.c.b16 %v2723, %v2719
    %v2780 = vpack.c.b16 %v2724, %v2720
    %v2781 = vpack.c.b16 %v2725, %v2721
    %v2782 = vpack.c.b16 %v2730, %v2726
    %v2783 = vpack.c.b16 %v2731, %v2727
    %v2784 = vpack.c.b16 %v2732, %v2728
    %v2785 = vpack.c.b16 %v2733, %v2729
    %v2786 = vpack.c.b16 %v2738, %v2734
    %v2787 = vpack.c.b16 %v2739, %v2735
    %v2788 = vpack.c.b16 %v2740, %v2736
    %v2789 = vpack.c.b16 %v2741, %v2737
    %v2790 = vpack.c.b16 %v2746, %v2742
    %v2791 = vpack.c.b16 %v2747, %v2743
    %v2792 = vpack.c.b16 %v2748, %v2744
    %v2793 = vpack.c.b16 %v2749, %v2745
    %v2794 = vpack.c.b16 %v2754, %v2750
    %v2795 = vpack.c.b16 %v2755, %v2751
    %v2796 = vpack.c.b16 %v2756, %v2752
    %v2797 = vpack.c.b16 %v2757, %v2753
    %v2798 = vpack.c.b16 %v2762, %v2758
    %v2799 = vpack.c.b16 %v2763, %v2759
    %v2800 = vpack.c.b16 %v2764, %v2760
    %v2801 = vpack.c.b16 %v2765, %v2761
    %v2802 = vpack.c.b16 %v2770, %v2766
    %v2803 = vpack.c.b16 %v2771, %v2767
    %v2804 = vpack.c.b16 %v2772, %v2768
    %v2805 = vpack.c.b16 %v2773, %v2769
    %2838 = vmatprep.subr.bf16.mxu0 %v2775
    %2839 = vmatpush1.bf16.msra.mxu0 %v2774
    %2840 = vmatprep.subr.bf16.mxu0 %v2779
    %2841 = vmatpush1.bf16.msra.mxu0 %v2778
    %2842 = vmatprep.subr.bf16.mxu0 %v2783
    %2843 = vmatpush1.bf16.msra.mxu0 %v2782
    %2844 = vmatprep.subr.bf16.mxu0 %v2787
    %2845 = vmatpush1.bf16.msra.mxu0 %v2786
    %2846 = vmatprep.subr.bf16.mxu0 %v2791
    %2847 = vmatpush1.bf16.msra.mxu0 %v2790
    %2848 = vmatprep.subr.bf16.mxu0 %v2795
    %2849 = vmatpush1.bf16.msra.mxu0 %v2794
    %2850 = vmatprep.subr.bf16.mxu0 %v2799
    %2851 = vmatpush1.bf16.msra.mxu0 %v2798
    %2852 = vmatprep.subr.bf16.mxu0 %v2803
    %2853 = vmatpush1.bf16.msra.mxu0 %v2802
    %2854 = vmatprep.subr.bf16.mxu0 0
    %2855 = vmatpush1.bf16.msra.mxu0 0
    %2856 = vmatprep.subr.bf16.mxu0 0
    %2857 = vmatpush1.bf16.msra.mxu0 0
    %2858 = vmatprep.subr.bf16.mxu0 0
    %2859 = vmatpush1.bf16.msra.mxu0 0
    %2860 = vmatprep.subr.bf16.mxu0 0
    %2861 = vmatpush1.bf16.msra.mxu0 0
    %2862 = vmatprep.subr.bf16.mxu0 0
    %2863 = vmatpush1.bf16.msra.mxu0 0
    %2864 = vmatprep.subr.bf16.mxu0 0
    %2865 = vmatpush1.bf16.msra.mxu0 0
    %2866 = vmatprep.subr.bf16.mxu0 0
    %2867 = vmatpush1.bf16.msra.mxu0 0
    %2868 = vmatprep.subr.bf16.mxu0 0
    %2869 = vmatpush1.bf16.msra.mxu0 0
    %2870 = vmatprep.mubr.bf16.mxu0 0
    %2871 = vmatmul.mubr.bf16.gmra.mrb[0].mxu0 %v2368
    %v2872 = vpop.f32.mrb[0].mxu0
    %v2873 = vadd.f32 %v2631, %v2872
    %v2874 = vpop.f32.mrb[0].mxu0
    %v2875 = vadd.f32 %v2633, %v2874
    %v2876 = vpop.f32.mrb[0].mxu0
    %v2877 = vpop.f32.mrb[0].mxu0
    %2878 = vdwg.mxu0
    %2879 = vmatprep.subr.bf16.mxu0 %v2777
    %2880 = vmatpush1.bf16.msra.mxu0 %v2776
    %2881 = vmatprep.subr.bf16.mxu0 %v2781
    %2882 = vmatpush1.bf16.msra.mxu0 %v2780
    %2883 = vmatprep.subr.bf16.mxu0 %v2785
    %2884 = vmatpush1.bf16.msra.mxu0 %v2784
    %2885 = vmatprep.subr.bf16.mxu0 %v2789
    %2886 = vmatpush1.bf16.msra.mxu0 %v2788
    %2887 = vmatprep.subr.bf16.mxu0 %v2793
    %2888 = vmatpush1.bf16.msra.mxu0 %v2792
    %2889 = vmatprep.subr.bf16.mxu0 %v2797
    %2890 = vmatpush1.bf16.msra.mxu0 %v2796
    %2891 = vmatprep.subr.bf16.mxu0 %v2801
    %2892 = vmatpush1.bf16.msra.mxu0 %v2800
    %2893 = vmatprep.subr.bf16.mxu0 %v2805
    %2894 = vmatpush1.bf16.msra.mxu0 %v2804
    %2895 = vmatprep.subr.bf16.mxu0 0
    %2896 = vmatpush1.bf16.msra.mxu0 0
    %2897 = vmatprep.subr.bf16.mxu0 0
    %2898 = vmatpush1.bf16.msra.mxu0 0
    %2899 = vmatprep.subr.bf16.mxu0 0
    %2900 = vmatpush1.bf16.msra.mxu0 0
    %2901 = vmatprep.subr.bf16.mxu0 0
    %2902 = vmatpush1.bf16.msra.mxu0 0
    %2903 = vmatprep.subr.bf16.mxu0 0
    %2904 = vmatpush1.bf16.msra.mxu0 0
    %2905 = vmatprep.subr.bf16.mxu0 0
    %2906 = vmatpush1.bf16.msra.mxu0 0
    %2907 = vmatprep.subr.bf16.mxu0 0
    %2908 = vmatpush1.bf16.msra.mxu0 0
    %2909 = vmatprep.subr.bf16.mxu0 0
    %2910 = vmatpush1.bf16.msra.mxu0 0
    %2911 = vmatprep.mubr.bf16.mxu0 0
    %2912 = vmatmul.mubr.bf16.gmra.mrb[0].mxu0 %v2368
    %v2913 = vpop.f32.mrb[0].mxu0
    %v2914 = vadd.f32 %v2672, %v2913
    %v2915 = vpop.f32.mrb[0].mxu0
    %v2916 = vadd.f32 %v2674, %v2915
    %v2917 = vpop.f32.mrb[0].mxu0
    %v2918 = vpop.f32.mrb[0].mxu0
    %2919 = vdwg.mxu0
    %2920 = vmatprep.subr.bf16.mxu0 %v2775
    %2921 = vmatpush1.bf16.msra.mxu0 %v2774
    %2922 = vmatprep.subr.bf16.mxu0 %v2779
    %2923 = vmatpush1.bf16.msra.mxu0 %v2778
    %2924 = vmatprep.subr.bf16.mxu0 %v2783
    %2925 = vmatpush1.bf16.msra.mxu0 %v2782
    %2926 = vmatprep.subr.bf16.mxu0 %v2787
    %2927 = vmatpush1.bf16.msra.mxu0 %v2786
    %2928 = vmatprep.subr.bf16.mxu0 %v2791
    %2929 = vmatpush1.bf16.msra.mxu0 %v2790
    %2930 = vmatprep.subr.bf16.mxu0 %v2795
    %2931 = vmatpush1.bf16.msra.mxu0 %v2794
    %2932 = vmatprep.subr.bf16.mxu0 %v2799
    %2933 = vmatpush1.bf16.msra.mxu0 %v2798
    %2934 = vmatprep.subr.bf16.mxu0 %v2803
    %2935 = vmatpush1.bf16.msra.mxu0 %v2802
    %2936 = vmatprep.subr.bf16.mxu0 0
    %2937 = vmatpush1.bf16.msra.mxu0 0
    %2938 = vmatprep.subr.bf16.mxu0 0
    %2939 = vmatpush1.bf16.msra.mxu0 0
    %2940 = vmatprep.subr.bf16.mxu0 0
    %2941 = vmatpush1.bf16.msra.mxu0 0
    %2942 = vmatprep.subr.bf16.mxu0 0
    %2943 = vmatpush1.bf16.msra.mxu0 0
    %2944 = vmatprep.subr.bf16.mxu0 0
    %2945 = vmatpush1.bf16.msra.mxu0 0
    %2946 = vmatprep.subr.bf16.mxu0 0
    %2947 = vmatpush1.bf16.msra.mxu0 0
    %2948 = vmatprep.subr.bf16.mxu0 0
    %2949 = vmatpush1.bf16.msra.mxu0 0
    %2950 = vmatprep.subr.bf16.mxu0 0
    %2951 = vmatpush1.bf16.msra.mxu0 0
    %2952 = vmatprep.mubr.bf16.mxu0 0
    %2953 = vmatmul.mubr.bf16.gmra.mrb[0].mxu0 %v2371
    %v2954 = vpop.f32.mrb[0].mxu0
    %v2955 = vadd.f32 0.0, %v2954
    %v2956 = vpop.f32.mrb[0].mxu0
    %v2957 = vadd.f32 0.0, %v2956
    %v2958 = vpop.f32.mrb[0].mxu0
    %v2959 = vpop.f32.mrb[0].mxu0
    %2960 = vdwg.mxu0
    %2961 = vmatprep.subr.bf16.mxu0 %v2777
    %2962 = vmatpush1.bf16.msra.mxu0 %v2776
    %2963 = vmatprep.subr.bf16.mxu0 %v2781
    %2964 = vmatpush1.bf16.msra.mxu0 %v2780
    %2965 = vmatprep.subr.bf16.mxu0 %v2785
    %2966 = vmatpush1.bf16.msra.mxu0 %v2784
    %2967 = vmatprep.subr.bf16.mxu0 %v2789
    %2968 = vmatpush1.bf16.msra.mxu0 %v2788
    %2969 = vmatprep.subr.bf16.mxu0 %v2793
    %2970 = vmatpush1.bf16.msra.mxu0 %v2792
    %2971 = vmatprep.subr.bf16.mxu0 %v2797
    %2972 = vmatpush1.bf16.msra.mxu0 %v2796
    %2973 = vmatprep.subr.bf16.mxu0 %v2801
    %2974 = vmatpush1.bf16.msra.mxu0 %v2800
    %2975 = vmatprep.subr.bf16.mxu0 %v2805
    %2976 = vmatpush1.bf16.msra.mxu0 %v2804
    %2977 = vmatprep.subr.bf16.mxu0 0
    %2978 = vmatpush1.bf16.msra.mxu0 0
    %2979 = vmatprep.subr.bf16.mxu0 0
    %2980 = vmatpush1.bf16.msra.mxu0 0
    %2981 = vmatprep.subr.bf16.mxu0 0
    %2982 = vmatpush1.bf16.msra.mxu0 0
    %2983 = vmatprep.subr.bf16.mxu0 0
    %2984 = vmatpush1.bf16.msra.mxu0 0
    %2985 = vmatprep.subr.bf16.mxu0 0
    %2986 = vmatpush1.bf16.msra.mxu0 0
    %2987 = vmatprep.subr.bf16.mxu0 0
    %2988 = vmatpush1.bf16.msra.mxu0 0
    %2989 = vmatprep.subr.bf16.mxu0 0
    %2990 = vmatpush1.bf16.msra.mxu0 0
    %2991 = vmatprep.subr.bf16.mxu0 0
    %2992 = vmatpush1.bf16.msra.mxu0 0
    %2993 = vmatprep.mubr.bf16.mxu0 0
    %2994 = vmatmul.mubr.bf16.gmra.mrb[0].mxu0 %v2371
    %v2995 = vpop.f32.mrb[0].mxu0
    %v2996 = vadd.f32 0.0, %v2995
    %v2997 = vpop.f32.mrb[0].mxu0
    %v2998 = vadd.f32 0.0, %v2997
    %v2999 = vpop.f32.mrb[0].mxu0
    %v3000 = vpop.f32.mrb[0].mxu0
    %3001 = vdwg.mxu0
    %v3002 = vadd.f32 %v2873, %v2955
    %v3003 = vadd.f32 %v2875, %v2957
    %v3004 = vadd.f32 %v2914, %v2996
    %v3005 = vadd.f32 %v2916, %v2998
    %s3006 = scalar_lea.vmem [#allocation2], 3
    %v3007 = vld [vmem:[%s3006] ss:$8 sm:$0xf]
    %v3012 = vcombine.low %v3002, %v3003
    %v3013 = vcombine.low %v3004, %v3005
    %v3015 = vunpack.c.l.s4 1966171168
    %v3016 = vunpack.c.0.s8 %v3015
    %v3017 = vlaneseq
    %v3018 = vshrl.u32 %v3017, 7
    %v3019 = vsub.s32 %v3016, %v3018
    %v3020 = vrot.slane %v3012, %v3019
    %v3022 = vunpack.c.l.s4 1966171168
    %v3023 = vunpack.c.0.s8 %v3022
    %v3024 = vlaneseq
    %v3025 = vshrl.u32 %v3024, 7
    %v3026 = vsub.s32 %v3023, %v3025
    %v3027 = vrot.slane %v3013, %v3026
    %v3028 = vcombine.low %v3020, %v3027
    %v3030 = vunpack.c.l.s4 1966171168
    %v3031 = vunpack.c.0.s8 %v3030
    %v3032 = vlaneseq
    %v3033 = vshrl.u32 %v3032, 7
    %v3034 = vsub.s32 %v3031, %v3033
    %v3035 = vrot.slane %v3028, %v3034
    %v3037 = vadd.f32 %v3007, %v3035
    %v3038 = vxor.u32 %v3037, 2147483648
    %v3039 = vmul.f32 %v3038, 1.442695
    %v3040 = vpow.pop %v3039
    %v3041 = vadd.f32 %v3040, 1.0
    %v3042 = vrcp.pop %v3041
    %v3043 = vmul.f32 1.0, %v3042
    %v3045 = vrot.slane %v3037, 3
    %v3047 = vtanh.pop %v3045
    %v3049 = vrot.slane %v3043, 1
    %v3051 = vmul.f32 %v3049, %v2362
    %v3052 = vmul.f32 %v3043, %v3047
    %v3053 = vadd.f32 %v3051, %v3052
    %v3054 = vtanh.pop %v3053
    %v3055 = vrot.slane %v3043, 2
    %v3057 = vmul.f32 %v3055, %v3054
    %3058 = vst [vmem:[#allocation3 + $0x3] sm:$0x1] %v3057
    %v3059 = vpack.c.bf16 %v3057, %v3057
    %v3060 = vunpack.c.l.bf16 %v3059
    %v3061 = vsub.f32 %v3057, %v3060
    %v3062 = vpack.c.bf16 %v3061, %v3061
    %v3063 = vld [vmem:[#allocation4] sm:$0xff]
    %v3064 = vld [vmem:[#allocation4 + $0x8] sm:$0xff]
    %v3065 = vld [vmem:[#allocation4 + $0x10] sm:$0xff]
    %v3066 = vld [vmem:[#allocation4 + $0x18] sm:$0xff]
    %v3067 = vld [vmem:[#allocation4 + $0x20] sm:$0xff]
    %v3068 = vld [vmem:[#allocation4 + $0x28] sm:$0xff]
    %v3069 = vld [vmem:[#allocation4 + $0x30] sm:$0xff]
    %v3070 = vld [vmem:[#allocation4 + $0x38] sm:$0xff]
    %v3071 = vld [vmem:[#allocation4 + $0x40] sm:$0xff]
    %v3072 = vld [vmem:[#allocation4 + $0x48] sm:$0xff]
    %v3073 = vld [vmem:[#allocation4 + $0x50] sm:$0xff]
    %v3074 = vld [vmem:[#allocation4 + $0x58] sm:$0xff]
    %v3075 = vld [vmem:[#allocation4 + $0x60] sm:$0xff]
    %v3076 = vld [vmem:[#allocation4 + $0x68] sm:$0xff]
    %v3077 = vld [vmem:[#allocation4 + $0x70] sm:$0xff]
    %v3078 = vld [vmem:[#allocation4 + $0x78] sm:$0xff]
    %v3079 = vld [vmem:[#allocation4 + $0x80] sm:$0xff]
    %v3080 = vld [vmem:[#allocation4 + $0x88] sm:$0xff]
    %v3081 = vld [vmem:[#allocation4 + $0x90] sm:$0xff]
    %v3082 = vld [vmem:[#allocation4 + $0x98] sm:$0xff]
    %v3083 = vld [vmem:[#allocation4 + $0xa0] sm:$0xff]
    %v3084 = vld [vmem:[#allocation4 + $0xa8] sm:$0xff]
    %v3085 = vld [vmem:[#allocation4 + $0xb0] sm:$0xff]
    %v3086 = vld [vmem:[#allocation4 + $0xb8] sm:$0xff]
    %v3087 = vld [vmem:[#allocation4 + $0xc0] sm:$0xff]
    %v3088 = vld [vmem:[#allocation4 + $0xc8] sm:$0xff]
    %v3089 = vld [vmem:[#allocation4 + $0xd0] sm:$0xff]
    %v3090 = vld [vmem:[#allocation4 + $0xd8] sm:$0xff]
    %v3091 = vld [vmem:[#allocation4 + $0xe0] sm:$0xff]
    %v3092 = vld [vmem:[#allocation4 + $0xe8] sm:$0xff]
    %v3093 = vld [vmem:[#allocation4 + $0xf0] sm:$0xff]
    %v3094 = vld [vmem:[#allocation4 + $0xf8] sm:$0xff]
    %v3095 = vld [vmem:[#allocation7] sm:$0xff]
    %v3096 = vld [vmem:[#allocation7 + $0x8] sm:$0xff]
    %v3097 = vld [vmem:[#allocation7 + $0x10] sm:$0xff]
    %v3098 = vld [vmem:[#allocation7 + $0x18] sm:$0xff]
    %v3099 = vld [vmem:[#allocation7 + $0x20] sm:$0xff]
    %v3100 = vld [vmem:[#allocation7 + $0x28] sm:$0xff]
    %v3101 = vld [vmem:[#allocation7 + $0x30] sm:$0xff]
    %v3102 = vld [vmem:[#allocation7 + $0x38] sm:$0xff]
    %v3103 = vld [vmem:[#allocation7 + $0x40] sm:$0xff]
    %v3104 = vld [vmem:[#allocation7 + $0x48] sm:$0xff]
    %v3105 = vld [vmem:[#allocation7 + $0x50] sm:$0xff]
    %v3106 = vld [vmem:[#allocation7 + $0x58] sm:$0xff]
    %v3107 = vld [vmem:[#allocation7 + $0x60] sm:$0xff]
    %v3108 = vld [vmem:[#allocation7 + $0x68] sm:$0xff]
    %v3109 = vld [vmem:[#allocation7 + $0x70] sm:$0xff]
    %v3110 = vld [vmem:[#allocation7 + $0x78] sm:$0xff]
    %v3111 = vld [vmem:[#allocation7 + $0x80] sm:$0xff]
    %v3112 = vld [vmem:[#allocation7 + $0x88] sm:$0xff]
    %v3113 = vld [vmem:[#allocation7 + $0x90] sm:$0xff]
    %v3114 = vld [vmem:[#allocation7 + $0x98] sm:$0xff]
    %v3115 = vld [vmem:[#allocation7 + $0xa0] sm:$0xff]
    %v3116 = vld [vmem:[#allocation7 + $0xa8] sm:$0xff]
    %v3117 = vld [vmem:[#allocation7 + $0xb0] sm:$0xff]
    %v3118 = vld [vmem:[#allocation7 + $0xb8] sm:$0xff]
    %v3119 = vld [vmem:[#allocation7 + $0xc0] sm:$0xff]
    %v3120 = vld [vmem:[#allocation7 + $0xc8] sm:$0xff]
    %v3121 = vld [vmem:[#allocation7 + $0xd0] sm:$0xff]
    %v3122 = vld [vmem:[#allocation7 + $0xd8] sm:$0xff]
    %v3123 = vld [vmem:[#allocation7 + $0xe0] sm:$0xff]
    %v3124 = vld [vmem:[#allocation7 + $0xe8] sm:$0xff]
    %v3125 = vld [vmem:[#allocation7 + $0xf0] sm:$0xff]
    %v3126 = vld [vmem:[#allocation7 + $0xf8] sm:$0xff]
    %v3159 = vunpack.c.l.b16 %v3095
    %v3160 = vunpack.c.h.b16 %v3095
    %v3161 = vunpack.c.l.b16 %v3096
    %v3162 = vunpack.c.h.b16 %v3096
    %v3163 = vunpack.c.l.b16 %v3097
    %v3164 = vunpack.c.h.b16 %v3097
    %v3165 = vunpack.c.l.b16 %v3098
    %v3166 = vunpack.c.h.b16 %v3098
    %v3167 = vunpack.c.l.b16 %v3099
    %v3168 = vunpack.c.h.b16 %v3099
    %v3169 = vunpack.c.l.b16 %v3100
    %v3170 = vunpack.c.h.b16 %v3100
    %v3171 = vunpack.c.l.b16 %v3101
    %v3172 = vunpack.c.h.b16 %v3101
    %v3173 = vunpack.c.l.b16 %v3102
    %v3174 = vunpack.c.h.b16 %v3102
    %v3175 = vunpack.c.l.b16 %v3103
    %v3176 = vunpack.c.h.b16 %v3103
    %v3177 = vunpack.c.l.b16 %v3104
    %v3178 = vunpack.c.h.b16 %v3104
    %v3179 = vunpack.c.l.b16 %v3105
    %v3180 = vunpack.c.h.b16 %v3105
    %v3181 = vunpack.c.l.b16 %v3106
    %v3182 = vunpack.c.h.b16 %v3106
    %v3183 = vunpack.c.l.b16 %v3107
    %v3184 = vunpack.c.h.b16 %v3107
    %v3185 = vunpack.c.l.b16 %v3108
    %v3186 = vunpack.c.h.b16 %v3108
    %v3187 = vunpack.c.l.b16 %v3109
    %v3188 = vunpack.c.h.b16 %v3109
    %v3189 = vunpack.c.l.b16 %v3110
    %v3190 = vunpack.c.h.b16 %v3110
    %v3191 = vunpack.c.l.b16 %v3111
    %v3192 = vunpack.c.h.b16 %v3111
    %v3193 = vunpack.c.l.b16 %v3112
    %v3194 = vunpack.c.h.b16 %v3112
    %v3195 = vunpack.c.l.b16 %v3113
    %v3196 = vunpack.c.h.b16 %v3113
    %v3197 = vunpack.c.l.b16 %v3114
    %v3198 = vunpack.c.h.b16 %v3114
    %v3199 = vunpack.c.l.b16 %v3115
    %v3200 = vunpack.c.h.b16 %v3115
    %v3201 = vunpack.c.l.b16 %v3116
    %v3202 = vunpack.c.h.b16 %v3116
    %v3203 = vunpack.c.l.b16 %v3117
    %v3204 = vunpack.c.h.b16 %v3117
    %v3205 = vunpack.c.l.b16 %v3118
    %v3206 = vunpack.c.h.b16 %v3118
    %v3207 = vunpack.c.l.b16 %v3119
    %v3208 = vunpack.c.h.b16 %v3119
    %v3209 = vunpack.c.l.b16 %v3120
    %v3210 = vunpack.c.h.b16 %v3120
    %v3211 = vunpack.c.l.b16 %v3121
    %v3212 = vunpack.c.h.b16 %v3121
    %v3213 = vunpack.c.l.b16 %v3122
    %v3214 = vunpack.c.h.b16 %v3122
    %v3215 = vunpack.c.l.b16 %v3123
    %v3216 = vunpack.c.h.b16 %v3123
    %v3217 = vunpack.c.l.b16 %v3124
    %v3218 = vunpack.c.h.b16 %v3124
    %v3219 = vunpack.c.l.b16 %v3125
    %v3220 = vunpack.c.h.b16 %v3125
    %v3221 = vunpack.c.l.b16 %v3126
    %v3222 = vunpack.c.h.b16 %v3126
    %v3223 = vpack.c.b16 %v3163, %v3159
    %v3224 = vpack.c.b16 %v3164, %v3160
    %v3225 = vpack.c.b16 %v3165, %v3161
    %v3226 = vpack.c.b16 %v3166, %v3162
    %v3227 = vpack.c.b16 %v3171, %v3167
    %v3228 = vpack.c.b16 %v3172, %v3168
    %v3229 = vpack.c.b16 %v3173, %v3169
    %v3230 = vpack.c.b16 %v3174, %v3170
    %v3231 = vpack.c.b16 %v3179, %v3175
    %v3232 = vpack.c.b16 %v3180, %v3176
    %v3233 = vpack.c.b16 %v3181, %v3177
    %v3234 = vpack.c.b16 %v3182, %v3178
    %v3235 = vpack.c.b16 %v3187, %v3183
    %v3236 = vpack.c.b16 %v3188, %v3184
    %v3237 = vpack.c.b16 %v3189, %v3185
    %v3238 = vpack.c.b16 %v3190, %v3186
    %v3239 = vpack.c.b16 %v3195, %v3191
    %v3240 = vpack.c.b16 %v3196, %v3192
    %v3241 = vpack.c.b16 %v3197, %v3193
    %v3242 = vpack.c.b16 %v3198, %v3194
    %v3243 = vpack.c.b16 %v3203, %v3199
    %v3244 = vpack.c.b16 %v3204, %v3200
    %v3245 = vpack.c.b16 %v3205, %v3201
    %v3246 = vpack.c.b16 %v3206, %v3202
    %v3247 = vpack.c.b16 %v3211, %v3207
    %v3248 = vpack.c.b16 %v3212, %v3208
    %v3249 = vpack.c.b16 %v3213, %v3209
    %v3250 = vpack.c.b16 %v3214, %v3210
    %v3251 = vpack.c.b16 %v3219, %v3215
    %v3252 = vpack.c.b16 %v3220, %v3216
    %v3253 = vpack.c.b16 %v3221, %v3217
    %v3254 = vpack.c.b16 %v3222, %v3218
    %3287 = vmatprep.subr.bf16.mxu0 %v3224
    %3288 = vmatpush1.bf16.msra.mxu0 %v3223
    %3289 = vmatprep.subr.bf16.mxu0 %v3228
    %3290 = vmatpush1.bf16.msra.mxu0 %v3227
    %3291 = vmatprep.subr.bf16.mxu0 %v3232
    %3292 = vmatpush1.bf16.msra.mxu0 %v3231
    %3293 = vmatprep.subr.bf16.mxu0 %v3236
    %3294 = vmatpush1.bf16.msra.mxu0 %v3235
    %3295 = vmatprep.subr.bf16.mxu0 %v3240
    %3296 = vmatpush1.bf16.msra.mxu0 %v3239
    %3297 = vmatprep.subr.bf16.mxu0 %v3244
    %3298 = vmatpush1.bf16.msra.mxu0 %v3243
    %3299 = vmatprep.subr.bf16.mxu0 %v3248
    %3300 = vmatpush1.bf16.msra.mxu0 %v3247
    %3301 = vmatprep.subr.bf16.mxu0 %v3252
    %3302 = vmatpush1.bf16.msra.mxu0 %v3251
    %3303 = vmatprep.subr.bf16.mxu0 0
    %3304 = vmatpush1.bf16.msra.mxu0 0
    %3305 = vmatprep.subr.bf16.mxu0 0
    %3306 = vmatpush1.bf16.msra.mxu0 0
    %3307 = vmatprep.subr.bf16.mxu0 0
    %3308 = vmatpush1.bf16.msra.mxu0 0
    %3309 = vmatprep.subr.bf16.mxu0 0
    %3310 = vmatpush1.bf16.msra.mxu0 0
    %3311 = vmatprep.subr.bf16.mxu0 0
    %3312 = vmatpush1.bf16.msra.mxu0 0
    %3313 = vmatprep.subr.bf16.mxu0 0
    %3314 = vmatpush1.bf16.msra.mxu0 0
    %3315 = vmatprep.subr.bf16.mxu0 0
    %3316 = vmatpush1.bf16.msra.mxu0 0
    %3317 = vmatprep.subr.bf16.mxu0 0
    %3318 = vmatpush1.bf16.msra.mxu0 0
    %3319 = vmatprep.mubr.bf16.mxu0 0
    %3320 = vmatmul.mubr.bf16.gmra.mrb[0].mxu0 %v3059
    %v3321 = vpop.f32.mrb[0].mxu0
    %v3322 = vadd.f32 0.0, %v3321
    %v3323 = vpop.f32.mrb[0].mxu0
    %v3324 = vadd.f32 0.0, %v3323
    %v3325 = vpop.f32.mrb[0].mxu0
    %v3326 = vpop.f32.mrb[0].mxu0
    %3327 = vdwg.mxu0
    %3328 = vmatprep.subr.bf16.mxu0 %v3226
    %3329 = vmatpush1.bf16.msra.mxu0 %v3225
    %3330 = vmatprep.subr.bf16.mxu0 %v3230
    %3331 = vmatpush1.bf16.msra.mxu0 %v3229
    %3332 = vmatprep.subr.bf16.mxu0 %v3234
    %3333 = vmatpush1.bf16.msra.mxu0 %v3233
    %3334 = vmatprep.subr.bf16.mxu0 %v3238
    %3335 = vmatpush1.bf16.msra.mxu0 %v3237
    %3336 = vmatprep.subr.bf16.mxu0 %v3242
    %3337 = vmatpush1.bf16.msra.mxu0 %v3241
    %3338 = vmatprep.subr.bf16.mxu0 %v3246
    %3339 = vmatpush1.bf16.msra.mxu0 %v3245
    %3340 = vmatprep.subr.bf16.mxu0 %v3250
    %3341 = vmatpush1.bf16.msra.mxu0 %v3249
    %3342 = vmatprep.subr.bf16.mxu0 %v3254
    %3343 = vmatpush1.bf16.msra.mxu0 %v3253
    %3344 = vmatprep.subr.bf16.mxu0 0
    %3345 = vmatpush1.bf16.msra.mxu0 0
    %3346 = vmatprep.subr.bf16.mxu0 0
    %3347 = vmatpush1.bf16.msra.mxu0 0
    %3348 = vmatprep.subr.bf16.mxu0 0
    %3349 = vmatpush1.bf16.msra.mxu0 0
    %3350 = vmatprep.subr.bf16.mxu0 0
    %3351 = vmatpush1.bf16.msra.mxu0 0
    %3352 = vmatprep.subr.bf16.mxu0 0
    %3353 = vmatpush1.bf16.msra.mxu0 0
    %3354 = vmatprep.subr.bf16.mxu0 0
    %3355 = vmatpush1.bf16.msra.mxu0 0
    %3356 = vmatprep.subr.bf16.mxu0 0
    %3357 = vmatpush1.bf16.msra.mxu0 0
    %3358 = vmatprep.subr.bf16.mxu0 0
    %3359 = vmatpush1.bf16.msra.mxu0 0
    %3360 = vmatprep.mubr.bf16.mxu0 0
    %3361 = vmatmul.mubr.bf16.gmra.mrb[0].mxu0 %v3059
    %v3362 = vpop.f32.mrb[0].mxu0
    %v3363 = vadd.f32 0.0, %v3362
    %v3364 = vpop.f32.mrb[0].mxu0
    %v3365 = vadd.f32 0.0, %v3364
    %v3366 = vpop.f32.mrb[0].mxu0
    %v3367 = vpop.f32.mrb[0].mxu0
    %3368 = vdwg.mxu0
    %v3401 = vunpack.c.l.b16 %v3063
    %v3402 = vunpack.c.h.b16 %v3063
    %v3403 = vunpack.c.l.b16 %v3064
    %v3404 = vunpack.c.h.b16 %v3064
    %v3405 = vunpack.c.l.b16 %v3065
    %v3406 = vunpack.c.h.b16 %v3065
    %v3407 = vunpack.c.l.b16 %v3066
    %v3408 = vunpack.c.h.b16 %v3066
    %v3409 = vunpack.c.l.b16 %v3067
    %v3410 = vunpack.c.h.b16 %v3067
    %v3411 = vunpack.c.l.b16 %v3068
    %v3412 = vunpack.c.h.b16 %v3068
    %v3413 = vunpack.c.l.b16 %v3069
    %v3414 = vunpack.c.h.b16 %v3069
    %v3415 = vunpack.c.l.b16 %v3070
    %v3416 = vunpack.c.h.b16 %v3070
    %v3417 = vunpack.c.l.b16 %v3071
    %v3418 = vunpack.c.h.b16 %v3071
    %v3419 = vunpack.c.l.b16 %v3072
    %v3420 = vunpack.c.h.b16 %v3072
    %v3421 = vunpack.c.l.b16 %v3073
    %v3422 = vunpack.c.h.b16 %v3073
    %v3423 = vunpack.c.l.b16 %v3074
    %v3424 = vunpack.c.h.b16 %v3074
    %v3425 = vunpack.c.l.b16 %v3075
    %v3426 = vunpack.c.h.b16 %v3075
    %v3427 = vunpack.c.l.b16 %v3076
    %v3428 = vunpack.c.h.b16 %v3076
    %v3429 = vunpack.c.l.b16 %v3077
    %v3430 = vunpack.c.h.b16 %v3077
    %v3431 = vunpack.c.l.b16 %v3078
    %v3432 = vunpack.c.h.b16 %v3078
    %v3433 = vunpack.c.l.b16 %v3079
    %v3434 = vunpack.c.h.b16 %v3079
    %v3435 = vunpack.c.l.b16 %v3080
    %v3436 = vunpack.c.h.b16 %v3080
    %v3437 = vunpack.c.l.b16 %v3081
    %v3438 = vunpack.c.h.b16 %v3081
    %v3439 = vunpack.c.l.b16 %v3082
    %v3440 = vunpack.c.h.b16 %v3082
    %v3441 = vunpack.c.l.b16 %v3083
    %v3442 = vunpack.c.h.b16 %v3083
    %v3443 = vunpack.c.l.b16 %v3084
    %v3444 = vunpack.c.h.b16 %v3084
    %v3445 = vunpack.c.l.b16 %v3085
    %v3446 = vunpack.c.h.b16 %v3085
    %v3447 = vunpack.c.l.b16 %v3086
    %v3448 = vunpack.c.h.b16 %v3086
    %v3449 = vunpack.c.l.b16 %v3087
    %v3450 = vunpack.c.h.b16 %v3087
    %v3451 = vunpack.c.l.b16 %v3088
    %v3452 = vunpack.c.h.b16 %v3088
    %v3453 = vunpack.c.l.b16 %v3089
    %v3454 = vunpack.c.h.b16 %v3089
    %v3455 = vunpack.c.l.b16 %v3090
    %v3456 = vunpack.c.h.b16 %v3090
    %v3457 = vunpack.c.l.b16 %v3091
    %v3458 = vunpack.c.h.b16 %v3091
    %v3459 = vunpack.c.l.b16 %v3092
    %v3460 = vunpack.c.h.b16 %v3092
    %v3461 = vunpack.c.l.b16 %v3093
    %v3462 = vunpack.c.h.b16 %v3093
    %v3463 = vunpack.c.l.b16 %v3094
    %v3464 = vunpack.c.h.b16 %v3094
    %v3465 = vpack.c.b16 %v3405, %v3401
    %v3466 = vpack.c.b16 %v3406, %v3402
    %v3467 = vpack.c.b16 %v3407, %v3403
    %v3468 = vpack.c.b16 %v3408, %v3404
    %v3469 = vpack.c.b16 %v3413, %v3409
    %v3470 = vpack.c.b16 %v3414, %v3410
    %v3471 = vpack.c.b16 %v3415, %v3411
    %v3472 = vpack.c.b16 %v3416, %v3412
    %v3473 = vpack.c.b16 %v3421, %v3417
    %v3474 = vpack.c.b16 %v3422, %v3418
    %v3475 = vpack.c.b16 %v3423, %v3419
    %v3476 = vpack.c.b16 %v3424, %v3420
    %v3477 = vpack.c.b16 %v3429, %v3425
    %v3478 = vpack.c.b16 %v3430, %v3426
    %v3479 = vpack.c.b16 %v3431, %v3427
    %v3480 = vpack.c.b16 %v3432, %v3428
    %v3481 = vpack.c.b16 %v3437, %v3433
    %v3482 = vpack.c.b16 %v3438, %v3434
    %v3483 = vpack.c.b16 %v3439, %v3435
    %v3484 = vpack.c.b16 %v3440, %v3436
    %v3485 = vpack.c.b16 %v3445, %v3441
    %v3486 = vpack.c.b16 %v3446, %v3442
    %v3487 = vpack.c.b16 %v3447, %v3443
    %v3488 = vpack.c.b16 %v3448, %v3444
    %v3489 = vpack.c.b16 %v3453, %v3449
    %v3490 = vpack.c.b16 %v3454, %v3450
    %v3491 = vpack.c.b16 %v3455, %v3451
    %v3492 = vpack.c.b16 %v3456, %v3452
    %v3493 = vpack.c.b16 %v3461, %v3457
    %v3494 = vpack.c.b16 %v3462, %v3458
    %v3495 = vpack.c.b16 %v3463, %v3459
    %v3496 = vpack.c.b16 %v3464, %v3460
    %3529 = vmatprep.subr.bf16.mxu0 %v3466
    %3530 = vmatpush1.bf16.msra.mxu0 %v3465
    %3531 = vmatprep.subr.bf16.mxu0 %v3470
    %3532 = vmatpush1.bf16.msra.mxu0 %v3469
    %3533 = vmatprep.subr.bf16.mxu0 %v3474
    %3534 = vmatpush1.bf16.msra.mxu0 %v3473
    %3535 = vmatprep.subr.bf16.mxu0 %v3478
    %3536 = vmatpush1.bf16.msra.mxu0 %v3477
    %3537 = vmatprep.subr.bf16.mxu0 %v3482
    %3538 = vmatpush1.bf16.msra.mxu0 %v3481
    %3539 = vmatprep.subr.bf16.mxu0 %v3486
    %3540 = vmatpush1.bf16.msra.mxu0 %v3485
    %3541 = vmatprep.subr.bf16.mxu0 %v3490
    %3542 = vmatpush1.bf16.msra.mxu0 %v3489
    %3543 = vmatprep.subr.bf16.mxu0 %v3494
    %3544 = vmatpush1.bf16.msra.mxu0 %v3493
    %3545 = vmatprep.subr.bf16.mxu0 0
    %3546 = vmatpush1.bf16.msra.mxu0 0
    %3547 = vmatprep.subr.bf16.mxu0 0
    %3548 = vmatpush1.bf16.msra.mxu0 0
    %3549 = vmatprep.subr.bf16.mxu0 0
    %3550 = vmatpush1.bf16.msra.mxu0 0
    %3551 = vmatprep.subr.bf16.mxu0 0
    %3552 = vmatpush1.bf16.msra.mxu0 0
    %3553 = vmatprep.subr.bf16.mxu0 0
    %3554 = vmatpush1.bf16.msra.mxu0 0
    %3555 = vmatprep.subr.bf16.mxu0 0
    %3556 = vmatpush1.bf16.msra.mxu0 0
    %3557 = vmatprep.subr.bf16.mxu0 0
    %3558 = vmatpush1.bf16.msra.mxu0 0
    %3559 = vmatprep.subr.bf16.mxu0 0
    %3560 = vmatpush1.bf16.msra.mxu0 0
    %3561 = vmatprep.mubr.bf16.mxu0 0
    %3562 = vmatmul.mubr.bf16.gmra.mrb[0].mxu0 %v3059
    %v3563 = vpop.f32.mrb[0].mxu0
    %v3564 = vadd.f32 %v3322, %v3563
    %v3565 = vpop.f32.mrb[0].mxu0
    %v3566 = vadd.f32 %v3324, %v3565
    %v3567 = vpop.f32.mrb[0].mxu0
    %v3568 = vpop.f32.mrb[0].mxu0
    %3569 = vdwg.mxu0
    %3570 = vmatprep.subr.bf16.mxu0 %v3468
    %3571 = vmatpush1.bf16.msra.mxu0 %v3467
    %3572 = vmatprep.subr.bf16.mxu0 %v3472
    %3573 = vmatpush1.bf16.msra.mxu0 %v3471
    %3574 = vmatprep.subr.bf16.mxu0 %v3476
    %3575 = vmatpush1.bf16.msra.mxu0 %v3475
    %3576 = vmatprep.subr.bf16.mxu0 %v3480
    %3577 = vmatpush1.bf16.msra.mxu0 %v3479
    %3578 = vmatprep.subr.bf16.mxu0 %v3484
    %3579 = vmatpush1.bf16.msra.mxu0 %v3483
    %3580 = vmatprep.subr.bf16.mxu0 %v3488
    %3581 = vmatpush1.bf16.msra.mxu0 %v3487
    %3582 = vmatprep.subr.bf16.mxu0 %v3492
    %3583 = vmatpush1.bf16.msra.mxu0 %v3491
    %3584 = vmatprep.subr.bf16.mxu0 %v3496
    %3585 = vmatpush1.bf16.msra.mxu0 %v3495
    %3586 = vmatprep.subr.bf16.mxu0 0
    %3587 = vmatpush1.bf16.msra.mxu0 0
    %3588 = vmatprep.subr.bf16.mxu0 0
    %3589 = vmatpush1.bf16.msra.mxu0 0
    %3590 = vmatprep.subr.bf16.mxu0 0
    %3591 = vmatpush1.bf16.msra.mxu0 0
    %3592 = vmatprep.subr.bf16.mxu0 0
    %3593 = vmatpush1.bf16.msra.mxu0 0
    %3594 = vmatprep.subr.bf16.mxu0 0
    %3595 = vmatpush1.bf16.msra.mxu0 0
    %3596 = vmatprep.subr.bf16.mxu0 0
    %3597 = vmatpush1.bf16.msra.mxu0 0
    %3598 = vmatprep.subr.bf16.mxu0 0
    %3599 = vmatpush1.bf16.msra.mxu0 0
    %3600 = vmatprep.subr.bf16.mxu0 0
    %3601 = vmatpush1.bf16.msra.mxu0 0
    %3602 = vmatprep.mubr.bf16.mxu0 0
    %3603 = vmatmul.mubr.bf16.gmra.mrb[0].mxu0 %v3059
    %v3604 = vpop.f32.mrb[0].mxu0
    %v3605 = vadd.f32 %v3363, %v3604
    %v3606 = vpop.f32.mrb[0].mxu0
    %v3607 = vadd.f32 %v3365, %v3606
    %v3608 = vpop.f32.mrb[0].mxu0
    %v3609 = vpop.f32.mrb[0].mxu0
    %3610 = vdwg.mxu0
    %3611 = vmatprep.subr.bf16.mxu0 %v3466
    %3612 = vmatpush1.bf16.msra.mxu0 %v3465
    %3613 = vmatprep.subr.bf16.mxu0 %v3470
    %3614 = vmatpush1.bf16.msra.mxu0 %v3469
    %3615 = vmatprep.subr.bf16.mxu0 %v3474
    %3616 = vmatpush1.bf16.msra.mxu0 %v3473
    %3617 = vmatprep.subr.bf16.mxu0 %v3478
    %3618 = vmatpush1.bf16.msra.mxu0 %v3477
    %3619 = vmatprep.subr.bf16.mxu0 %v3482
    %3620 = vmatpush1.bf16.msra.mxu0 %v3481
    %3621 = vmatprep.subr.bf16.mxu0 %v3486
    %3622 = vmatpush1.bf16.msra.mxu0 %v3485
    %3623 = vmatprep.subr.bf16.mxu0 %v3490
    %3624 = vmatpush1.bf16.msra.mxu0 %v3489
    %3625 = vmatprep.subr.bf16.mxu0 %v3494
    %3626 = vmatpush1.bf16.msra.mxu0 %v3493
    %3627 = vmatprep.subr.bf16.mxu0 0
    %3628 = vmatpush1.bf16.msra.mxu0 0
    %3629 = vmatprep.subr.bf16.mxu0 0
    %3630 = vmatpush1.bf16.msra.mxu0 0
    %3631 = vmatprep.subr.bf16.mxu0 0
    %3632 = vmatpush1.bf16.msra.mxu0 0
    %3633 = vmatprep.subr.bf16.mxu0 0
    %3634 = vmatpush1.bf16.msra.mxu0 0
    %3635 = vmatprep.subr.bf16.mxu0 0
    %3636 = vmatpush1.bf16.msra.mxu0 0
    %3637 = vmatprep.subr.bf16.mxu0 0
    %3638 = vmatpush1.bf16.msra.mxu0 0
    %3639 = vmatprep.subr.bf16.mxu0 0
    %3640 = vmatpush1.bf16.msra.mxu0 0
    %3641 = vmatprep.subr.bf16.mxu0 0
    %3642 = vmatpush1.bf16.msra.mxu0 0
    %3643 = vmatprep.mubr.bf16.mxu0 0
    %3644 = vmatmul.mubr.bf16.gmra.mrb[0].mxu0 %v3062
    %v3645 = vpop.f32.mrb[0].mxu0
    %v3646 = vadd.f32 0.0, %v3645
    %v3647 = vpop.f32.mrb[0].mxu0
    %v3648 = vadd.f32 0.0, %v3647
    %v3649 = vpop.f32.mrb[0].mxu0
    %v3650 = vpop.f32.mrb[0].mxu0
    %3651 = vdwg.mxu0
    %3652 = vmatprep.subr.bf16.mxu0 %v3468
    %3653 = vmatpush1.bf16.msra.mxu0 %v3467
    %3654 = vmatprep.subr.bf16.mxu0 %v3472
    %3655 = vmatpush1.bf16.msra.mxu0 %v3471
    %3656 = vmatprep.subr.bf16.mxu0 %v3476
    %3657 = vmatpush1.bf16.msra.mxu0 %v3475
    %3658 = vmatprep.subr.bf16.mxu0 %v3480
    %3659 = vmatpush1.bf16.msra.mxu0 %v3479
    %3660 = vmatprep.subr.bf16.mxu0 %v3484
    %3661 = vmatpush1.bf16.msra.mxu0 %v3483
    %3662 = vmatprep.subr.bf16.mxu0 %v3488
    %3663 = vmatpush1.bf16.msra.mxu0 %v3487
    %3664 = vmatprep.subr.bf16.mxu0 %v3492
    %3665 = vmatpush1.bf16.msra.mxu0 %v3491
    %3666 = vmatprep.subr.bf16.mxu0 %v3496
    %3667 = vmatpush1.bf16.msra.mxu0 %v3495
    %3668 = vmatprep.subr.bf16.mxu0 0
    %3669 = vmatpush1.bf16.msra.mxu0 0
    %3670 = vmatprep.subr.bf16.mxu0 0
    %3671 = vmatpush1.bf16.msra.mxu0 0
    %3672 = vmatprep.subr.bf16.mxu0 0
    %3673 = vmatpush1.bf16.msra.mxu0 0
    %3674 = vmatprep.subr.bf16.mxu0 0
    %3675 = vmatpush1.bf16.msra.mxu0 0
    %3676 = vmatprep.subr.bf16.mxu0 0
    %3677 = vmatpush1.bf16.msra.mxu0 0
    %3678 = vmatprep.subr.bf16.mxu0 0
    %3679 = vmatpush1.bf16.msra.mxu0 0
    %3680 = vmatprep.subr.bf16.mxu0 0
    %3681 = vmatpush1.bf16.msra.mxu0 0
    %3682 = vmatprep.subr.bf16.mxu0 0
    %3683 = vmatpush1.bf16.msra.mxu0 0
    %3684 = vmatprep.mubr.bf16.mxu0 0
    %3685 = vmatmul.mubr.bf16.gmra.mrb[0].mxu0 %v3062
    %v3686 = vpop.f32.mrb[0].mxu0
    %v3687 = vadd.f32 0.0, %v3686
    %v3688 = vpop.f32.mrb[0].mxu0
    %v3689 = vadd.f32 0.0, %v3688
    %v3690 = vpop.f32.mrb[0].mxu0
    %v3691 = vpop.f32.mrb[0].mxu0
    %3692 = vdwg.mxu0
    %v3693 = vadd.f32 %v3564, %v3646
    %v3694 = vadd.f32 %v3566, %v3648
    %v3695 = vadd.f32 %v3605, %v3687
    %v3696 = vadd.f32 %v3607, %v3689
    %s3697 = scalar_lea.vmem [#allocation2], 4
    %v3698 = vld [vmem:[%s3697] ss:$8 sm:$0xf]
    %v3703 = vcombine.low %v3693, %v3694
    %v3704 = vcombine.low %v3695, %v3696
    %v3706 = vunpack.c.l.s4 1966171168
    %v3707 = vunpack.c.0.s8 %v3706
    %v3708 = vlaneseq
    %v3709 = vshrl.u32 %v3708, 7
    %v3710 = vsub.s32 %v3707, %v3709
    %v3711 = vrot.slane %v3703, %v3710
    %v3713 = vunpack.c.l.s4 1966171168
    %v3714 = vunpack.c.0.s8 %v3713
    %v3715 = vlaneseq
    %v3716 = vshrl.u32 %v3715, 7
    %v3717 = vsub.s32 %v3714, %v3716
    %v3718 = vrot.slane %v3704, %v3717
    %v3719 = vcombine.low %v3711, %v3718
    %v3721 = vunpack.c.l.s4 1966171168
    %v3722 = vunpack.c.0.s8 %v3721
    %v3723 = vlaneseq
    %v3724 = vshrl.u32 %v3723, 7
    %v3725 = vsub.s32 %v3722, %v3724
    %v3726 = vrot.slane %v3719, %v3725
    %v3728 = vadd.f32 %v3698, %v3726
    %v3729 = vxor.u32 %v3728, 2147483648
    %v3730 = vmul.f32 %v3729, 1.442695
    %v3731 = vpow.pop %v3730
    %v3732 = vadd.f32 %v3731, 1.0
    %v3733 = vrcp.pop %v3732
    %v3734 = vmul.f32 1.0, %v3733
    %v3736 = vrot.slane %v3728, 3
    %v3738 = vtanh.pop %v3736
    %v3740 = vrot.slane %v3734, 1
    %v3742 = vmul.f32 %v3740, %v3053
    %v3743 = vmul.f32 %v3734, %v3738
    %v3744 = vadd.f32 %v3742, %v3743
    %v3745 = vtanh.pop %v3744
    %v3746 = vrot.slane %v3734, 2
    %v3748 = vmul.f32 %v3746, %v3745
    %3749 = vst [vmem:[#allocation3 + $0x4] sm:$0x1] %v3748
    %v3750 = vpack.c.bf16 %v3748, %v3748
    %v3751 = vunpack.c.l.bf16 %v3750
    %v3752 = vsub.f32 %v3748, %v3751
    %v3753 = vpack.c.bf16 %v3752, %v3752
    %v3754 = vld [vmem:[#allocation4] sm:$0xff]
    %v3755 = vld [vmem:[#allocation4 + $0x8] sm:$0xff]
    %v3756 = vld [vmem:[#allocation4 + $0x10] sm:$0xff]
    %v3757 = vld [vmem:[#allocation4 + $0x18] sm:$0xff]
    %v3758 = vld [vmem:[#allocation4 + $0x20] sm:$0xff]
    %v3759 = vld [vmem:[#allocation4 + $0x28] sm:$0xff]
    %v3760 = vld [vmem:[#allocation4 + $0x30] sm:$0xff]
    %v3761 = vld [vmem:[#allocation4 + $0x38] sm:$0xff]
    %v3762 = vld [vmem:[#allocation4 + $0x40] sm:$0xff]
    %v3763 = vld [vmem:[#allocation4 + $0x48] sm:$0xff]
    %v3764 = vld [vmem:[#allocation4 + $0x50] sm:$0xff]
    %v3765 = vld [vmem:[#allocation4 + $0x58] sm:$0xff]
    %v3766 = vld [vmem:[#allocation4 + $0x60] sm:$0xff]
    %v3767 = vld [vmem:[#allocation4 + $0x68] sm:$0xff]
    %v3768 = vld [vmem:[#allocation4 + $0x70] sm:$0xff]
    %v3769 = vld [vmem:[#allocation4 + $0x78] sm:$0xff]
    %v3770 = vld [vmem:[#allocation4 + $0x80] sm:$0xff]
    %v3771 = vld [vmem:[#allocation4 + $0x88] sm:$0xff]
    %v3772 = vld [vmem:[#allocation4 + $0x90] sm:$0xff]
    %v3773 = vld [vmem:[#allocation4 + $0x98] sm:$0xff]
    %v3774 = vld [vmem:[#allocation4 + $0xa0] sm:$0xff]
    %v3775 = vld [vmem:[#allocation4 + $0xa8] sm:$0xff]
    %v3776 = vld [vmem:[#allocation4 + $0xb0] sm:$0xff]
    %v3777 = vld [vmem:[#allocation4 + $0xb8] sm:$0xff]
    %v3778 = vld [vmem:[#allocation4 + $0xc0] sm:$0xff]
    %v3779 = vld [vmem:[#allocation4 + $0xc8] sm:$0xff]
    %v3780 = vld [vmem:[#allocation4 + $0xd0] sm:$0xff]
    %v3781 = vld [vmem:[#allocation4 + $0xd8] sm:$0xff]
    %v3782 = vld [vmem:[#allocation4 + $0xe0] sm:$0xff]
    %v3783 = vld [vmem:[#allocation4 + $0xe8] sm:$0xff]
    %v3784 = vld [vmem:[#allocation4 + $0xf0] sm:$0xff]
    %v3785 = vld [vmem:[#allocation4 + $0xf8] sm:$0xff]
    %v3786 = vld [vmem:[#allocation7] sm:$0xff]
    %v3787 = vld [vmem:[#allocation7 + $0x8] sm:$0xff]
    %v3788 = vld [vmem:[#allocation7 + $0x10] sm:$0xff]
    %v3789 = vld [vmem:[#allocation7 + $0x18] sm:$0xff]
    %v3790 = vld [vmem:[#allocation7 + $0x20] sm:$0xff]
    %v3791 = vld [vmem:[#allocation7 + $0x28] sm:$0xff]
    %v3792 = vld [vmem:[#allocation7 + $0x30] sm:$0xff]
    %v3793 = vld [vmem:[#allocation7 + $0x38] sm:$0xff]
    %v3794 = vld [vmem:[#allocation7 + $0x40] sm:$0xff]
    %v3795 = vld [vmem:[#allocation7 + $0x48] sm:$0xff]
    %v3796 = vld [vmem:[#allocation7 + $0x50] sm:$0xff]
    %v3797 = vld [vmem:[#allocation7 + $0x58] sm:$0xff]
    %v3798 = vld [vmem:[#allocation7 + $0x60] sm:$0xff]
    %v3799 = vld [vmem:[#allocation7 + $0x68] sm:$0xff]
    %v3800 = vld [vmem:[#allocation7 + $0x70] sm:$0xff]
    %v3801 = vld [vmem:[#allocation7 + $0x78] sm:$0xff]
    %v3802 = vld [vmem:[#allocation7 + $0x80] sm:$0xff]
    %v3803 = vld [vmem:[#allocation7 + $0x88] sm:$0xff]
    %v3804 = vld [vmem:[#allocation7 + $0x90] sm:$0xff]
    %v3805 = vld [vmem:[#allocation7 + $0x98] sm:$0xff]
    %v3806 = vld [vmem:[#allocation7 + $0xa0] sm:$0xff]
    %v3807 = vld [vmem:[#allocation7 + $0xa8] sm:$0xff]
    %v3808 = vld [vmem:[#allocation7 + $0xb0] sm:$0xff]
    %v3809 = vld [vmem:[#allocation7 + $0xb8] sm:$0xff]
    %v3810 = vld [vmem:[#allocation7 + $0xc0] sm:$0xff]
    %v3811 = vld [vmem:[#allocation7 + $0xc8] sm:$0xff]
    %v3812 = vld [vmem:[#allocation7 + $0xd0] sm:$0xff]
    %v3813 = vld [vmem:[#allocation7 + $0xd8] sm:$0xff]
    %v3814 = vld [vmem:[#allocation7 + $0xe0] sm:$0xff]
    %v3815 = vld [vmem:[#allocation7 + $0xe8] sm:$0xff]
    %v3816 = vld [vmem:[#allocation7 + $0xf0] sm:$0xff]
    %v3817 = vld [vmem:[#allocation7 + $0xf8] sm:$0xff]
    %v3850 = vunpack.c.l.b16 %v3786
    %v3851 = vunpack.c.h.b16 %v3786
    %v3852 = vunpack.c.l.b16 %v3787
    %v3853 = vunpack.c.h.b16 %v3787
    %v3854 = vunpack.c.l.b16 %v3788
    %v3855 = vunpack.c.h.b16 %v3788
    %v3856 = vunpack.c.l.b16 %v3789
    %v3857 = vunpack.c.h.b16 %v3789
    %v3858 = vunpack.c.l.b16 %v3790
    %v3859 = vunpack.c.h.b16 %v3790
    %v3860 = vunpack.c.l.b16 %v3791
    %v3861 = vunpack.c.h.b16 %v3791
    %v3862 = vunpack.c.l.b16 %v3792
    %v3863 = vunpack.c.h.b16 %v3792
    %v3864 = vunpack.c.l.b16 %v3793
    %v3865 = vunpack.c.h.b16 %v3793
    %v3866 = vunpack.c.l.b16 %v3794
    %v3867 = vunpack.c.h.b16 %v3794
    %v3868 = vunpack.c.l.b16 %v3795
    %v3869 = vunpack.c.h.b16 %v3795
    %v3870 = vunpack.c.l.b16 %v3796
    %v3871 = vunpack.c.h.b16 %v3796
    %v3872 = vunpack.c.l.b16 %v3797
    %v3873 = vunpack.c.h.b16 %v3797
    %v3874 = vunpack.c.l.b16 %v3798
    %v3875 = vunpack.c.h.b16 %v3798
    %v3876 = vunpack.c.l.b16 %v3799
    %v3877 = vunpack.c.h.b16 %v3799
    %v3878 = vunpack.c.l.b16 %v3800
    %v3879 = vunpack.c.h.b16 %v3800
    %v3880 = vunpack.c.l.b16 %v3801
    %v3881 = vunpack.c.h.b16 %v3801
    %v3882 = vunpack.c.l.b16 %v3802
    %v3883 = vunpack.c.h.b16 %v3802
    %v3884 = vunpack.c.l.b16 %v3803
    %v3885 = vunpack.c.h.b16 %v3803
    %v3886 = vunpack.c.l.b16 %v3804
    %v3887 = vunpack.c.h.b16 %v3804
    %v3888 = vunpack.c.l.b16 %v3805
    %v3889 = vunpack.c.h.b16 %v3805
    %v3890 = vunpack.c.l.b16 %v3806
    %v3891 = vunpack.c.h.b16 %v3806
    %v3892 = vunpack.c.l.b16 %v3807
    %v3893 = vunpack.c.h.b16 %v3807
    %v3894 = vunpack.c.l.b16 %v3808
    %v3895 = vunpack.c.h.b16 %v3808
    %v3896 = vunpack.c.l.b16 %v3809
    %v3897 = vunpack.c.h.b16 %v3809
    %v3898 = vunpack.c.l.b16 %v3810
    %v3899 = vunpack.c.h.b16 %v3810
    %v3900 = vunpack.c.l.b16 %v3811
    %v3901 = vunpack.c.h.b16 %v3811
    %v3902 = vunpack.c.l.b16 %v3812
    %v3903 = vunpack.c.h.b16 %v3812
    %v3904 = vunpack.c.l.b16 %v3813
    %v3905 = vunpack.c.h.b16 %v3813
    %v3906 = vunpack.c.l.b16 %v3814
    %v3907 = vunpack.c.h.b16 %v3814
    %v3908 = vunpack.c.l.b16 %v3815
    %v3909 = vunpack.c.h.b16 %v3815
    %v3910 = vunpack.c.l.b16 %v3816
    %v3911 = vunpack.c.h.b16 %v3816
    %v3912 = vunpack.c.l.b16 %v3817
    %v3913 = vunpack.c.h.b16 %v3817
    %v3914 = vpack.c.b16 %v3854, %v3850
    %v3915 = vpack.c.b16 %v3855, %v3851
    %v3916 = vpack.c.b16 %v3856, %v3852
    %v3917 = vpack.c.b16 %v3857, %v3853
    %v3918 = vpack.c.b16 %v3862, %v3858
    %v3919 = vpack.c.b16 %v3863, %v3859
    %v3920 = vpack.c.b16 %v3864, %v3860
    %v3921 = vpack.c.b16 %v3865, %v3861
    %v3922 = vpack.c.b16 %v3870, %v3866
    %v3923 = vpack.c.b16 %v3871, %v3867
    %v3924 = vpack.c.b16 %v3872, %v3868
    %v3925 = vpack.c.b16 %v3873, %v3869
    %v3926 = vpack.c.b16 %v3878, %v3874
    %v3927 = vpack.c.b16 %v3879, %v3875
    %v3928 = vpack.c.b16 %v3880, %v3876
    %v3929 = vpack.c.b16 %v3881, %v3877
    %v3930 = vpack.c.b16 %v3886, %v3882
    %v3931 = vpack.c.b16 %v3887, %v3883
    %v3932 = vpack.c.b16 %v3888, %v3884
    %v3933 = vpack.c.b16 %v3889, %v3885
    %v3934 = vpack.c.b16 %v3894, %v3890
    %v3935 = vpack.c.b16 %v3895, %v3891
    %v3936 = vpack.c.b16 %v3896, %v3892
    %v3937 = vpack.c.b16 %v3897, %v3893
    %v3938 = vpack.c.b16 %v3902, %v3898
    %v3939 = vpack.c.b16 %v3903, %v3899
    %v3940 = vpack.c.b16 %v3904, %v3900
    %v3941 = vpack.c.b16 %v3905, %v3901
    %v3942 = vpack.c.b16 %v3910, %v3906
    %v3943 = vpack.c.b16 %v3911, %v3907
    %v3944 = vpack.c.b16 %v3912, %v3908
    %v3945 = vpack.c.b16 %v3913, %v3909
    %3978 = vmatprep.subr.bf16.mxu0 %v3915
    %3979 = vmatpush1.bf16.msra.mxu0 %v3914
    %3980 = vmatprep.subr.bf16.mxu0 %v3919
    %3981 = vmatpush1.bf16.msra.mxu0 %v3918
    %3982 = vmatprep.subr.bf16.mxu0 %v3923
    %3983 = vmatpush1.bf16.msra.mxu0 %v3922
    %3984 = vmatprep.subr.bf16.mxu0 %v3927
    %3985 = vmatpush1.bf16.msra.mxu0 %v3926
    %3986 = vmatprep.subr.bf16.mxu0 %v3931
    %3987 = vmatpush1.bf16.msra.mxu0 %v3930
    %3988 = vmatprep.subr.bf16.mxu0 %v3935
    %3989 = vmatpush1.bf16.msra.mxu0 %v3934
    %3990 = vmatprep.subr.bf16.mxu0 %v3939
    %3991 = vmatpush1.bf16.msra.mxu0 %v3938
    %3992 = vmatprep.subr.bf16.mxu0 %v3943
    %3993 = vmatpush1.bf16.msra.mxu0 %v3942
    %3994 = vmatprep.subr.bf16.mxu0 0
    %3995 = vmatpush1.bf16.msra.mxu0 0
    %3996 = vmatprep.subr.bf16.mxu0 0
    %3997 = vmatpush1.bf16.msra.mxu0 0
    %3998 = vmatprep.subr.bf16.mxu0 0
    %3999 = vmatpush1.bf16.msra.mxu0 0
    %4000 = vmatprep.subr.bf16.mxu0 0
    %4001 = vmatpush1.bf16.msra.mxu0 0
    %4002 = vmatprep.subr.bf16.mxu0 0
    %4003 = vmatpush1.bf16.msra.mxu0 0
    %4004 = vmatprep.subr.bf16.mxu0 0
    %4005 = vmatpush1.bf16.msra.mxu0 0
    %4006 = vmatprep.subr.bf16.mxu0 0
    %4007 = vmatpush1.bf16.msra.mxu0 0
    %4008 = vmatprep.subr.bf16.mxu0 0
    %4009 = vmatpush1.bf16.msra.mxu0 0
    %4010 = vmatprep.mubr.bf16.mxu0 0
    %4011 = vmatmul.mubr.bf16.gmra.mrb[0].mxu0 %v3750
    %v4012 = vpop.f32.mrb[0].mxu0
    %v4013 = vadd.f32 0.0, %v4012
    %v4014 = vpop.f32.mrb[0].mxu0
    %v4015 = vadd.f32 0.0, %v4014
    %v4016 = vpop.f32.mrb[0].mxu0
    %v4017 = vpop.f32.mrb[0].mxu0
    %4018 = vdwg.mxu0
    %4019 = vmatprep.subr.bf16.mxu0 %v3917
    %4020 = vmatpush1.bf16.msra.mxu0 %v3916
    %4021 = vmatprep.subr.bf16.mxu0 %v3921
    %4022 = vmatpush1.bf16.msra.mxu0 %v3920
    %4023 = vmatprep.subr.bf16.mxu0 %v3925
    %4024 = vmatpush1.bf16.msra.mxu0 %v3924
    %4025 = vmatprep.subr.bf16.mxu0 %v3929
    %4026 = vmatpush1.bf16.msra.mxu0 %v3928
    %4027 = vmatprep.subr.bf16.mxu0 %v3933
    %4028 = vmatpush1.bf16.msra.mxu0 %v3932
    %4029 = vmatprep.subr.bf16.mxu0 %v3937
    %4030 = vmatpush1.bf16.msra.mxu0 %v3936
    %4031 = vmatprep.subr.bf16.mxu0 %v3941
    %4032 = vmatpush1.bf16.msra.mxu0 %v3940
    %4033 = vmatprep.subr.bf16.mxu0 %v3945
    %4034 = vmatpush1.bf16.msra.mxu0 %v3944
    %4035 = vmatprep.subr.bf16.mxu0 0
    %4036 = vmatpush1.bf16.msra.mxu0 0
    %4037 = vmatprep.subr.bf16.mxu0 0
    %4038 = vmatpush1.bf16.msra.mxu0 0
    %4039 = vmatprep.subr.bf16.mxu0 0
    %4040 = vmatpush1.bf16.msra.mxu0 0
    %4041 = vmatprep.subr.bf16.mxu0 0
    %4042 = vmatpush1.bf16.msra.mxu0 0
    %4043 = vmatprep.subr.bf16.mxu0 0
    %4044 = vmatpush1.bf16.msra.mxu0 0
    %4045 = vmatprep.subr.bf16.mxu0 0
    %4046 = vmatpush1.bf16.msra.mxu0 0
    %4047 = vmatprep.subr.bf16.mxu0 0
    %4048 = vmatpush1.bf16.msra.mxu0 0
    %4049 = vmatprep.subr.bf16.mxu0 0
    %4050 = vmatpush1.bf16.msra.mxu0 0
    %4051 = vmatprep.mubr.bf16.mxu0 0
    %4052 = vmatmul.mubr.bf16.gmra.mrb[0].mxu0 %v3750
    %v4053 = vpop.f32.mrb[0].mxu0
    %v4054 = vadd.f32 0.0, %v4053
    %v4055 = vpop.f32.mrb[0].mxu0
    %v4056 = vadd.f32 0.0, %v4055
    %v4057 = vpop.f32.mrb[0].mxu0
    %v4058 = vpop.f32.mrb[0].mxu0
    %4059 = vdwg.mxu0
    %v4092 = vunpack.c.l.b16 %v3754
    %v4093 = vunpack.c.h.b16 %v3754
    %v4094 = vunpack.c.l.b16 %v3755
    %v4095 = vunpack.c.h.b16 %v3755
    %v4096 = vunpack.c.l.b16 %v3756
    %v4097 = vunpack.c.h.b16 %v3756
    %v4098 = vunpack.c.l.b16 %v3757
    %v4099 = vunpack.c.h.b16 %v3757
    %v4100 = vunpack.c.l.b16 %v3758
    %v4101 = vunpack.c.h.b16 %v3758
    %v4102 = vunpack.c.l.b16 %v3759
    %v4103 = vunpack.c.h.b16 %v3759
    %v4104 = vunpack.c.l.b16 %v3760
    %v4105 = vunpack.c.h.b16 %v3760
    %v4106 = vunpack.c.l.b16 %v3761
    %v4107 = vunpack.c.h.b16 %v3761
    %v4108 = vunpack.c.l.b16 %v3762
    %v4109 = vunpack.c.h.b16 %v3762
    %v4110 = vunpack.c.l.b16 %v3763
    %v4111 = vunpack.c.h.b16 %v3763
    %v4112 = vunpack.c.l.b16 %v3764
    %v4113 = vunpack.c.h.b16 %v3764
    %v4114 = vunpack.c.l.b16 %v3765
    %v4115 = vunpack.c.h.b16 %v3765
    %v4116 = vunpack.c.l.b16 %v3766
    %v4117 = vunpack.c.h.b16 %v3766
    %v4118 = vunpack.c.l.b16 %v3767
    %v4119 = vunpack.c.h.b16 %v3767
    %v4120 = vunpack.c.l.b16 %v3768
    %v4121 = vunpack.c.h.b16 %v3768
    %v4122 = vunpack.c.l.b16 %v3769
    %v4123 = vunpack.c.h.b16 %v3769
    %v4124 = vunpack.c.l.b16 %v3770
    %v4125 = vunpack.c.h.b16 %v3770
    %v4126 = vunpack.c.l.b16 %v3771
    %v4127 = vunpack.c.h.b16 %v3771
    %v4128 = vunpack.c.l.b16 %v3772
    %v4129 = vunpack.c.h.b16 %v3772
    %v4130 = vunpack.c.l.b16 %v3773
    %v4131 = vunpack.c.h.b16 %v3773
    %v4132 = vunpack.c.l.b16 %v3774
    %v4133 = vunpack.c.h.b16 %v3774
    %v4134 = vunpack.c.l.b16 %v3775
    %v4135 = vunpack.c.h.b16 %v3775
    %v4136 = vunpack.c.l.b16 %v3776
    %v4137 = vunpack.c.h.b16 %v3776
    %v4138 = vunpack.c.l.b16 %v3777
    %v4139 = vunpack.c.h.b16 %v3777
    %v4140 = vunpack.c.l.b16 %v3778
    %v4141 = vunpack.c.h.b16 %v3778
    %v4142 = vunpack.c.l.b16 %v3779
    %v4143 = vunpack.c.h.b16 %v3779
    %v4144 = vunpack.c.l.b16 %v3780
    %v4145 = vunpack.c.h.b16 %v3780
    %v4146 = vunpack.c.l.b16 %v3781
    %v4147 = vunpack.c.h.b16 %v3781
    %v4148 = vunpack.c.l.b16 %v3782
    %v4149 = vunpack.c.h.b16 %v3782
    %v4150 = vunpack.c.l.b16 %v3783
    %v4151 = vunpack.c.h.b16 %v3783
    %v4152 = vunpack.c.l.b16 %v3784
    %v4153 = vunpack.c.h.b16 %v3784
    %v4154 = vunpack.c.l.b16 %v3785
    %v4155 = vunpack.c.h.b16 %v3785
    %v4156 = vpack.c.b16 %v4096, %v4092
    %v4157 = vpack.c.b16 %v4097, %v4093
    %v4158 = vpack.c.b16 %v4098, %v4094
    %v4159 = vpack.c.b16 %v4099, %v4095
    %v4160 = vpack.c.b16 %v4104, %v4100
    %v4161 = vpack.c.b16 %v4105, %v4101
    %v4162 = vpack.c.b16 %v4106, %v4102
    %v4163 = vpack.c.b16 %v4107, %v4103
    %v4164 = vpack.c.b16 %v4112, %v4108
    %v4165 = vpack.c.b16 %v4113, %v4109
    %v4166 = vpack.c.b16 %v4114, %v4110
    %v4167 = vpack.c.b16 %v4115, %v4111
    %v4168 = vpack.c.b16 %v4120, %v4116
    %v4169 = vpack.c.b16 %v4121, %v4117
    %v4170 = vpack.c.b16 %v4122, %v4118
    %v4171 = vpack.c.b16 %v4123, %v4119
    %v4172 = vpack.c.b16 %v4128, %v4124
    %v4173 = vpack.c.b16 %v4129, %v4125
    %v4174 = vpack.c.b16 %v4130, %v4126
    %v4175 = vpack.c.b16 %v4131, %v4127
    %v4176 = vpack.c.b16 %v4136, %v4132
    %v4177 = vpack.c.b16 %v4137, %v4133
    %v4178 = vpack.c.b16 %v4138, %v4134
    %v4179 = vpack.c.b16 %v4139, %v4135
    %v4180 = vpack.c.b16 %v4144, %v4140
    %v4181 = vpack.c.b16 %v4145, %v4141
    %v4182 = vpack.c.b16 %v4146, %v4142
    %v4183 = vpack.c.b16 %v4147, %v4143
    %v4184 = vpack.c.b16 %v4152, %v4148
    %v4185 = vpack.c.b16 %v4153, %v4149
    %v4186 = vpack.c.b16 %v4154, %v4150
    %v4187 = vpack.c.b16 %v4155, %v4151
    %4220 = vmatprep.subr.bf16.mxu0 %v4157
    %4221 = vmatpush1.bf16.msra.mxu0 %v4156
    %4222 = vmatprep.subr.bf16.mxu0 %v4161
    %4223 = vmatpush1.bf16.msra.mxu0 %v4160
    %4224 = vmatprep.subr.bf16.mxu0 %v4165
    %4225 = vmatpush1.bf16.msra.mxu0 %v4164
    %4226 = vmatprep.subr.bf16.mxu0 %v4169
    %4227 = vmatpush1.bf16.msra.mxu0 %v4168
    %4228 = vmatprep.subr.bf16.mxu0 %v4173
    %4229 = vmatpush1.bf16.msra.mxu0 %v4172
    %4230 = vmatprep.subr.bf16.mxu0 %v4177
    %4231 = vmatpush1.bf16.msra.mxu0 %v4176
    %4232 = vmatprep.subr.bf16.mxu0 %v4181
    %4233 = vmatpush1.bf16.msra.mxu0 %v4180
    %4234 = vmatprep.subr.bf16.mxu0 %v4185
    %4235 = vmatpush1.bf16.msra.mxu0 %v4184
    %4236 = vmatprep.subr.bf16.mxu0 0
    %4237 = vmatpush1.bf16.msra.mxu0 0
    %4238 = vmatprep.subr.bf16.mxu0 0
    %4239 = vmatpush1.bf16.msra.mxu0 0
    %4240 = vmatprep.subr.bf16.mxu0 0
    %4241 = vmatpush1.bf16.msra.mxu0 0
    %4242 = vmatprep.subr.bf16.mxu0 0
    %4243 = vmatpush1.bf16.msra.mxu0 0
    %4244 = vmatprep.subr.bf16.mxu0 0
    %4245 = vmatpush1.bf16.msra.mxu0 0
    %4246 = vmatprep.subr.bf16.mxu0 0
    %4247 = vmatpush1.bf16.msra.mxu0 0
    %4248 = vmatprep.subr.bf16.mxu0 0
    %4249 = vmatpush1.bf16.msra.mxu0 0
    %4250 = vmatprep.subr.bf16.mxu0 0
    %4251 = vmatpush1.bf16.msra.mxu0 0
    %4252 = vmatprep.mubr.bf16.mxu0 0
    %4253 = vmatmul.mubr.bf16.gmra.mrb[0].mxu0 %v3750
    %v4254 = vpop.f32.mrb[0].mxu0
    %v4255 = vadd.f32 %v4013, %v4254
    %v4256 = vpop.f32.mrb[0].mxu0
    %v4257 = vadd.f32 %v4015, %v4256
    %v4258 = vpop.f32.mrb[0].mxu0
    %v4259 = vpop.f32.mrb[0].mxu0
    %4260 = vdwg.mxu0
    %4261 = vmatprep.subr.bf16.mxu0 %v4159
    %4262 = vmatpush1.bf16.msra.mxu0 %v4158
    %4263 = vmatprep.subr.bf16.mxu0 %v4163
    %4264 = vmatpush1.bf16.msra.mxu0 %v4162
    %4265 = vmatprep.subr.bf16.mxu0 %v4167
    %4266 = vmatpush1.bf16.msra.mxu0 %v4166
    %4267 = vmatprep.subr.bf16.mxu0 %v4171
    %4268 = vmatpush1.bf16.msra.mxu0 %v4170
    %4269 = vmatprep.subr.bf16.mxu0 %v4175
    %4270 = vmatpush1.bf16.msra.mxu0 %v4174
    %4271 = vmatprep.subr.bf16.mxu0 %v4179
    %4272 = vmatpush1.bf16.msra.mxu0 %v4178
    %4273 = vmatprep.subr.bf16.mxu0 %v4183
    %4274 = vmatpush1.bf16.msra.mxu0 %v4182
    %4275 = vmatprep.subr.bf16.mxu0 %v4187
    %4276 = vmatpush1.bf16.msra.mxu0 %v4186
    %4277 = vmatprep.subr.bf16.mxu0 0
    %4278 = vmatpush1.bf16.msra.mxu0 0
    %4279 = vmatprep.subr.bf16.mxu0 0
    %4280 = vmatpush1.bf16.msra.mxu0 0
    %4281 = vmatprep.subr.bf16.mxu0 0
    %4282 = vmatpush1.bf16.msra.mxu0 0
    %4283 = vmatprep.subr.bf16.mxu0 0
    %4284 = vmatpush1.bf16.msra.mxu0 0
    %4285 = vmatprep.subr.bf16.mxu0 0
    %4286 = vmatpush1.bf16.msra.mxu0 0
    %4287 = vmatprep.subr.bf16.mxu0 0
    %4288 = vmatpush1.bf16.msra.mxu0 0
    %4289 = vmatprep.subr.bf16.mxu0 0
    %4290 = vmatpush1.bf16.msra.mxu0 0
    %4291 = vmatprep.subr.bf16.mxu0 0
    %4292 = vmatpush1.bf16.msra.mxu0 0
    %4293 = vmatprep.mubr.bf16.mxu0 0
    %4294 = vmatmul.mubr.bf16.gmra.mrb[0].mxu0 %v3750
    %v4295 = vpop.f32.mrb[0].mxu0
    %v4296 = vadd.f32 %v4054, %v4295
    %v4297 = vpop.f32.mrb[0].mxu0
    %v4298 = vadd.f32 %v4056, %v4297
    %v4299 = vpop.f32.mrb[0].mxu0
    %v4300 = vpop.f32.mrb[0].mxu0
    %4301 = vdwg.mxu0
    %4302 = vmatprep.subr.bf16.mxu0 %v4157
    %4303 = vmatpush1.bf16.msra.mxu0 %v4156
    %4304 = vmatprep.subr.bf16.mxu0 %v4161
    %4305 = vmatpush1.bf16.msra.mxu0 %v4160
    %4306 = vmatprep.subr.bf16.mxu0 %v4165
    %4307 = vmatpush1.bf16.msra.mxu0 %v4164
    %4308 = vmatprep.subr.bf16.mxu0 %v4169
    %4309 = vmatpush1.bf16.msra.mxu0 %v4168
    %4310 = vmatprep.subr.bf16.mxu0 %v4173
    %4311 = vmatpush1.bf16.msra.mxu0 %v4172
    %4312 = vmatprep.subr.bf16.mxu0 %v4177
    %4313 = vmatpush1.bf16.msra.mxu0 %v4176
    %4314 = vmatprep.subr.bf16.mxu0 %v4181
    %4315 = vmatpush1.bf16.msra.mxu0 %v4180
    %4316 = vmatprep.subr.bf16.mxu0 %v4185
    %4317 = vmatpush1.bf16.msra.mxu0 %v4184
    %4318 = vmatprep.subr.bf16.mxu0 0
    %4319 = vmatpush1.bf16.msra.mxu0 0
    %4320 = vmatprep.subr.bf16.mxu0 0
    %4321 = vmatpush1.bf16.msra.mxu0 0
    %4322 = vmatprep.subr.bf16.mxu0 0
    %4323 = vmatpush1.bf16.msra.mxu0 0
    %4324 = vmatprep.subr.bf16.mxu0 0
    %4325 = vmatpush1.bf16.msra.mxu0 0
    %4326 = vmatprep.subr.bf16.mxu0 0
    %4327 = vmatpush1.bf16.msra.mxu0 0
    %4328 = vmatprep.subr.bf16.mxu0 0
    %4329 = vmatpush1.bf16.msra.mxu0 0
    %4330 = vmatprep.subr.bf16.mxu0 0
    %4331 = vmatpush1.bf16.msra.mxu0 0
    %4332 = vmatprep.subr.bf16.mxu0 0
    %4333 = vmatpush1.bf16.msra.mxu0 0
    %4334 = vmatprep.mubr.bf16.mxu0 0
    %4335 = vmatmul.mubr.bf16.gmra.mrb[0].mxu0 %v3753
    %v4336 = vpop.f32.mrb[0].mxu0
    %v4337 = vadd.f32 0.0, %v4336
    %v4338 = vpop.f32.mrb[0].mxu0
    %v4339 = vadd.f32 0.0, %v4338
    %v4340 = vpop.f32.mrb[0].mxu0
    %v4341 = vpop.f32.mrb[0].mxu0
    %4342 = vdwg.mxu0
    %4343 = vmatprep.subr.bf16.mxu0 %v4159
    %4344 = vmatpush1.bf16.msra.mxu0 %v4158
    %4345 = vmatprep.subr.bf16.mxu0 %v4163
    %4346 = vmatpush1.bf16.msra.mxu0 %v4162
    %4347 = vmatprep.subr.bf16.mxu0 %v4167
    %4348 = vmatpush1.bf16.msra.mxu0 %v4166
    %4349 = vmatprep.subr.bf16.mxu0 %v4171
    %4350 = vmatpush1.bf16.msra.mxu0 %v4170
    %4351 = vmatprep.subr.bf16.mxu0 %v4175
    %4352 = vmatpush1.bf16.msra.mxu0 %v4174
    %4353 = vmatprep.subr.bf16.mxu0 %v4179
    %4354 = vmatpush1.bf16.msra.mxu0 %v4178
    %4355 = vmatprep.subr.bf16.mxu0 %v4183
    %4356 = vmatpush1.bf16.msra.mxu0 %v4182
    %4357 = vmatprep.subr.bf16.mxu0 %v4187
    %4358 = vmatpush1.bf16.msra.mxu0 %v4186
    %4359 = vmatprep.subr.bf16.mxu0 0
    %4360 = vmatpush1.bf16.msra.mxu0 0
    %4361 = vmatprep.subr.bf16.mxu0 0
    %4362 = vmatpush1.bf16.msra.mxu0 0
    %4363 = vmatprep.subr.bf16.mxu0 0
    %4364 = vmatpush1.bf16.msra.mxu0 0
    %4365 = vmatprep.subr.bf16.mxu0 0
    %4366 = vmatpush1.bf16.msra.mxu0 0
    %4367 = vmatprep.subr.bf16.mxu0 0
    %4368 = vmatpush1.bf16.msra.mxu0 0
    %4369 = vmatprep.subr.bf16.mxu0 0
    %4370 = vmatpush1.bf16.msra.mxu0 0
    %4371 = vmatprep.subr.bf16.mxu0 0
    %4372 = vmatpush1.bf16.msra.mxu0 0
    %4373 = vmatprep.subr.bf16.mxu0 0
    %4374 = vmatpush1.bf16.msra.mxu0 0
    %4375 = vmatprep.mubr.bf16.mxu0 0
    %4376 = vmatmul.mubr.bf16.gmra.mrb[0].mxu0 %v3753
    %v4377 = vpop.f32.mrb[0].mxu0
    %v4378 = vadd.f32 0.0, %v4377
    %v4379 = vpop.f32.mrb[0].mxu0
    %v4380 = vadd.f32 0.0, %v4379
    %v4381 = vpop.f32.mrb[0].mxu0
    %v4382 = vpop.f32.mrb[0].mxu0
    %4383 = vdwg.mxu0
    %v4384 = vadd.f32 %v4255, %v4337
    %v4385 = vadd.f32 %v4257, %v4339
    %v4386 = vadd.f32 %v4296, %v4378
    %v4387 = vadd.f32 %v4298, %v4380
    %s4388 = scalar_lea.vmem [#allocation2], 5
    %v4389 = vld [vmem:[%s4388] ss:$8 sm:$0xf]
    %v4394 = vcombine.low %v4384, %v4385
    %v4395 = vcombine.low %v4386, %v4387
    %v4397 = vunpack.c.l.s4 1966171168
    %v4398 = vunpack.c.0.s8 %v4397
    %v4399 = vlaneseq
    %v4400 = vshrl.u32 %v4399, 7
    %v4401 = vsub.s32 %v4398, %v4400
    %v4402 = vrot.slane %v4394, %v4401
    %v4404 = vunpack.c.l.s4 1966171168
    %v4405 = vunpack.c.0.s8 %v4404
    %v4406 = vlaneseq
    %v4407 = vshrl.u32 %v4406, 7
    %v4408 = vsub.s32 %v4405, %v4407
    %v4409 = vrot.slane %v4395, %v4408
    %v4410 = vcombine.low %v4402, %v4409
    %v4412 = vunpack.c.l.s4 1966171168
    %v4413 = vunpack.c.0.s8 %v4412
    %v4414 = vlaneseq
    %v4415 = vshrl.u32 %v4414, 7
    %v4416 = vsub.s32 %v4413, %v4415
    %v4417 = vrot.slane %v4410, %v4416
    %v4419 = vadd.f32 %v4389, %v4417
    %v4420 = vxor.u32 %v4419, 2147483648
    %v4421 = vmul.f32 %v4420, 1.442695
    %v4422 = vpow.pop %v4421
    %v4423 = vadd.f32 %v4422, 1.0
    %v4424 = vrcp.pop %v4423
    %v4425 = vmul.f32 1.0, %v4424
    %v4427 = vrot.slane %v4419, 3
    %v4429 = vtanh.pop %v4427
    %v4431 = vrot.slane %v4425, 1
    %v4433 = vmul.f32 %v4431, %v3744
    %v4434 = vmul.f32 %v4425, %v4429
    %v4435 = vadd.f32 %v4433, %v4434
    %v4436 = vtanh.pop %v4435
    %v4437 = vrot.slane %v4425, 2
    %v4439 = vmul.f32 %v4437, %v4436
    %4440 = vst [vmem:[#allocation3 + $0x5] sm:$0x1] %v4439
    %v4441 = vpack.c.bf16 %v4439, %v4439
    %v4442 = vunpack.c.l.bf16 %v4441
    %v4443 = vsub.f32 %v4439, %v4442
    %v4444 = vpack.c.bf16 %v4443, %v4443
    %v4445 = vld [vmem:[#allocation4] sm:$0xff]
    %v4446 = vld [vmem:[#allocation4 + $0x8] sm:$0xff]
    %v4447 = vld [vmem:[#allocation4 + $0x10] sm:$0xff]
    %v4448 = vld [vmem:[#allocation4 + $0x18] sm:$0xff]
    %v4449 = vld [vmem:[#allocation4 + $0x20] sm:$0xff]
    %v4450 = vld [vmem:[#allocation4 + $0x28] sm:$0xff]
    %v4451 = vld [vmem:[#allocation4 + $0x30] sm:$0xff]
    %v4452 = vld [vmem:[#allocation4 + $0x38] sm:$0xff]
    %v4453 = vld [vmem:[#allocation4 + $0x40] sm:$0xff]
    %v4454 = vld [vmem:[#allocation4 + $0x48] sm:$0xff]
    %v4455 = vld [vmem:[#allocation4 + $0x50] sm:$0xff]
    %v4456 = vld [vmem:[#allocation4 + $0x58] sm:$0xff]
    %v4457 = vld [vmem:[#allocation4 + $0x60] sm:$0xff]
    %v4458 = vld [vmem:[#allocation4 + $0x68] sm:$0xff]
    %v4459 = vld [vmem:[#allocation4 + $0x70] sm:$0xff]
    %v4460 = vld [vmem:[#allocation4 + $0x78] sm:$0xff]
    %v4461 = vld [vmem:[#allocation4 + $0x80] sm:$0xff]
    %v4462 = vld [vmem:[#allocation4 + $0x88] sm:$0xff]
    %v4463 = vld [vmem:[#allocation4 + $0x90] sm:$0xff]
    %v4464 = vld [vmem:[#allocation4 + $0x98] sm:$0xff]
    %v4465 = vld [vmem:[#allocation4 + $0xa0] sm:$0xff]
    %v4466 = vld [vmem:[#allocation4 + $0xa8] sm:$0xff]
    %v4467 = vld [vmem:[#allocation4 + $0xb0] sm:$0xff]
    %v4468 = vld [vmem:[#allocation4 + $0xb8] sm:$0xff]
    %v4469 = vld [vmem:[#allocation4 + $0xc0] sm:$0xff]
    %v4470 = vld [vmem:[#allocation4 + $0xc8] sm:$0xff]
    %v4471 = vld [vmem:[#allocation4 + $0xd0] sm:$0xff]
    %v4472 = vld [vmem:[#allocation4 + $0xd8] sm:$0xff]
    %v4473 = vld [vmem:[#allocation4 + $0xe0] sm:$0xff]
    %v4474 = vld [vmem:[#allocation4 + $0xe8] sm:$0xff]
    %v4475 = vld [vmem:[#allocation4 + $0xf0] sm:$0xff]
    %v4476 = vld [vmem:[#allocation4 + $0xf8] sm:$0xff]
    %v4477 = vld [vmem:[#allocation7] sm:$0xff]
    %v4478 = vld [vmem:[#allocation7 + $0x8] sm:$0xff]
    %v4479 = vld [vmem:[#allocation7 + $0x10] sm:$0xff]
    %v4480 = vld [vmem:[#allocation7 + $0x18] sm:$0xff]
    %v4481 = vld [vmem:[#allocation7 + $0x20] sm:$0xff]
    %v4482 = vld [vmem:[#allocation7 + $0x28] sm:$0xff]
    %v4483 = vld [vmem:[#allocation7 + $0x30] sm:$0xff]
    %v4484 = vld [vmem:[#allocation7 + $0x38] sm:$0xff]
    %v4485 = vld [vmem:[#allocation7 + $0x40] sm:$0xff]
    %v4486 = vld [vmem:[#allocation7 + $0x48] sm:$0xff]
    %v4487 = vld [vmem:[#allocation7 + $0x50] sm:$0xff]
    %v4488 = vld [vmem:[#allocation7 + $0x58] sm:$0xff]
    %v4489 = vld [vmem:[#allocation7 + $0x60] sm:$0xff]
    %v4490 = vld [vmem:[#allocation7 + $0x68] sm:$0xff]
    %v4491 = vld [vmem:[#allocation7 + $0x70] sm:$0xff]
    %v4492 = vld [vmem:[#allocation7 + $0x78] sm:$0xff]
    %v4493 = vld [vmem:[#allocation7 + $0x80] sm:$0xff]
    %v4494 = vld [vmem:[#allocation7 + $0x88] sm:$0xff]
    %v4495 = vld [vmem:[#allocation7 + $0x90] sm:$0xff]
    %v4496 = vld [vmem:[#allocation7 + $0x98] sm:$0xff]
    %v4497 = vld [vmem:[#allocation7 + $0xa0] sm:$0xff]
    %v4498 = vld [vmem:[#allocation7 + $0xa8] sm:$0xff]
    %v4499 = vld [vmem:[#allocation7 + $0xb0] sm:$0xff]
    %v4500 = vld [vmem:[#allocation7 + $0xb8] sm:$0xff]
    %v4501 = vld [vmem:[#allocation7 + $0xc0] sm:$0xff]
    %v4502 = vld [vmem:[#allocation7 + $0xc8] sm:$0xff]
    %v4503 = vld [vmem:[#allocation7 + $0xd0] sm:$0xff]
    %v4504 = vld [vmem:[#allocation7 + $0xd8] sm:$0xff]
    %v4505 = vld [vmem:[#allocation7 + $0xe0] sm:$0xff]
    %v4506 = vld [vmem:[#allocation7 + $0xe8] sm:$0xff]
    %v4507 = vld [vmem:[#allocation7 + $0xf0] sm:$0xff]
    %v4508 = vld [vmem:[#allocation7 + $0xf8] sm:$0xff]
    %v4541 = vunpack.c.l.b16 %v4477
    %v4542 = vunpack.c.h.b16 %v4477
    %v4543 = vunpack.c.l.b16 %v4478
    %v4544 = vunpack.c.h.b16 %v4478
    %v4545 = vunpack.c.l.b16 %v4479
    %v4546 = vunpack.c.h.b16 %v4479
    %v4547 = vunpack.c.l.b16 %v4480
    %v4548 = vunpack.c.h.b16 %v4480
    %v4549 = vunpack.c.l.b16 %v4481
    %v4550 = vunpack.c.h.b16 %v4481
    %v4551 = vunpack.c.l.b16 %v4482
    %v4552 = vunpack.c.h.b16 %v4482
    %v4553 = vunpack.c.l.b16 %v4483
    %v4554 = vunpack.c.h.b16 %v4483
    %v4555 = vunpack.c.l.b16 %v4484
    %v4556 = vunpack.c.h.b16 %v4484
    %v4557 = vunpack.c.l.b16 %v4485
    %v4558 = vunpack.c.h.b16 %v4485
    %v4559 = vunpack.c.l.b16 %v4486
    %v4560 = vunpack.c.h.b16 %v4486
    %v4561 = vunpack.c.l.b16 %v4487
    %v4562 = vunpack.c.h.b16 %v4487
    %v4563 = vunpack.c.l.b16 %v4488
    %v4564 = vunpack.c.h.b16 %v4488
    %v4565 = vunpack.c.l.b16 %v4489
    %v4566 = vunpack.c.h.b16 %v4489
    %v4567 = vunpack.c.l.b16 %v4490
    %v4568 = vunpack.c.h.b16 %v4490
    %v4569 = vunpack.c.l.b16 %v4491
    %v4570 = vunpack.c.h.b16 %v4491
    %v4571 = vunpack.c.l.b16 %v4492
    %v4572 = vunpack.c.h.b16 %v4492
    %v4573 = vunpack.c.l.b16 %v4493
    %v4574 = vunpack.c.h.b16 %v4493
    %v4575 = vunpack.c.l.b16 %v4494
    %v4576 = vunpack.c.h.b16 %v4494
    %v4577 = vunpack.c.l.b16 %v4495
    %v4578 = vunpack.c.h.b16 %v4495
    %v4579 = vunpack.c.l.b16 %v4496
    %v4580 = vunpack.c.h.b16 %v4496
    %v4581 = vunpack.c.l.b16 %v4497
    %v4582 = vunpack.c.h.b16 %v4497
    %v4583 = vunpack.c.l.b16 %v4498
    %v4584 = vunpack.c.h.b16 %v4498
    %v4585 = vunpack.c.l.b16 %v4499
    %v4586 = vunpack.c.h.b16 %v4499
    %v4587 = vunpack.c.l.b16 %v4500
    %v4588 = vunpack.c.h.b16 %v4500
    %v4589 = vunpack.c.l.b16 %v4501
    %v4590 = vunpack.c.h.b16 %v4501
    %v4591 = vunpack.c.l.b16 %v4502
    %v4592 = vunpack.c.h.b16 %v4502
    %v4593 = vunpack.c.l.b16 %v4503
    %v4594 = vunpack.c.h.b16 %v4503
    %v4595 = vunpack.c.l.b16 %v4504
    %v4596 = vunpack.c.h.b16 %v4504
    %v4597 = vunpack.c.l.b16 %v4505
    %v4598 = vunpack.c.h.b16 %v4505
    %v4599 = vunpack.c.l.b16 %v4506
    %v4600 = vunpack.c.h.b16 %v4506
    %v4601 = vunpack.c.l.b16 %v4507
    %v4602 = vunpack.c.h.b16 %v4507
    %v4603 = vunpack.c.l.b16 %v4508
    %v4604 = vunpack.c.h.b16 %v4508
    %v4605 = vpack.c.b16 %v4545, %v4541
    %v4606 = vpack.c.b16 %v4546, %v4542
    %v4607 = vpack.c.b16 %v4547, %v4543
    %v4608 = vpack.c.b16 %v4548, %v4544
    %v4609 = vpack.c.b16 %v4553, %v4549
    %v4610 = vpack.c.b16 %v4554, %v4550
    %v4611 = vpack.c.b16 %v4555, %v4551
    %v4612 = vpack.c.b16 %v4556, %v4552
    %v4613 = vpack.c.b16 %v4561, %v4557
    %v4614 = vpack.c.b16 %v4562, %v4558
    %v4615 = vpack.c.b16 %v4563, %v4559
    %v4616 = vpack.c.b16 %v4564, %v4560
    %v4617 = vpack.c.b16 %v4569, %v4565
    %v4618 = vpack.c.b16 %v4570, %v4566
    %v4619 = vpack.c.b16 %v4571, %v4567
    %v4620 = vpack.c.b16 %v4572, %v4568
    %v4621 = vpack.c.b16 %v4577, %v4573
    %v4622 = vpack.c.b16 %v4578, %v4574
    %v4623 = vpack.c.b16 %v4579, %v4575
    %v4624 = vpack.c.b16 %v4580, %v4576
    %v4625 = vpack.c.b16 %v4585, %v4581
    %v4626 = vpack.c.b16 %v4586, %v4582
    %v4627 = vpack.c.b16 %v4587, %v4583
    %v4628 = vpack.c.b16 %v4588, %v4584
    %v4629 = vpack.c.b16 %v4593, %v4589
    %v4630 = vpack.c.b16 %v4594, %v4590
    %v4631 = vpack.c.b16 %v4595, %v4591
    %v4632 = vpack.c.b16 %v4596, %v4592
    %v4633 = vpack.c.b16 %v4601, %v4597
    %v4634 = vpack.c.b16 %v4602, %v4598
    %v4635 = vpack.c.b16 %v4603, %v4599
    %v4636 = vpack.c.b16 %v4604, %v4600
    %4669 = vmatprep.subr.bf16.mxu0 %v4606
    %4670 = vmatpush1.bf16.msra.mxu0 %v4605
    %4671 = vmatprep.subr.bf16.mxu0 %v4610
    %4672 = vmatpush1.bf16.msra.mxu0 %v4609
    %4673 = vmatprep.subr.bf16.mxu0 %v4614
    %4674 = vmatpush1.bf16.msra.mxu0 %v4613
    %4675 = vmatprep.subr.bf16.mxu0 %v4618
    %4676 = vmatpush1.bf16.msra.mxu0 %v4617
    %4677 = vmatprep.subr.bf16.mxu0 %v4622
    %4678 = vmatpush1.bf16.msra.mxu0 %v4621
    %4679 = vmatprep.subr.bf16.mxu0 %v4626
    %4680 = vmatpush1.bf16.msra.mxu0 %v4625
    %4681 = vmatprep.subr.bf16.mxu0 %v4630
    %4682 = vmatpush1.bf16.msra.mxu0 %v4629
    %4683 = vmatprep.subr.bf16.mxu0 %v4634
    %4684 = vmatpush1.bf16.msra.mxu0 %v4633
    %4685 = vmatprep.subr.bf16.mxu0 0
    %4686 = vmatpush1.bf16.msra.mxu0 0
    %4687 = vmatprep.subr.bf16.mxu0 0
    %4688 = vmatpush1.bf16.msra.mxu0 0
    %4689 = vmatprep.subr.bf16.mxu0 0
    %4690 = vmatpush1.bf16.msra.mxu0 0
    %4691 = vmatprep.subr.bf16.mxu0 0
    %4692 = vmatpush1.bf16.msra.mxu0 0
    %4693 = vmatprep.subr.bf16.mxu0 0
    %4694 = vmatpush1.bf16.msra.mxu0 0
    %4695 = vmatprep.subr.bf16.mxu0 0
    %4696 = vmatpush1.bf16.msra.mxu0 0
    %4697 = vmatprep.subr.bf16.mxu0 0
    %4698 = vmatpush1.bf16.msra.mxu0 0
    %4699 = vmatprep.subr.bf16.mxu0 0
    %4700 = vmatpush1.bf16.msra.mxu0 0
    %4701 = vmatprep.mubr.bf16.mxu0 0
    %4702 = vmatmul.mubr.bf16.gmra.mrb[0].mxu0 %v4441
    %v4703 = vpop.f32.mrb[0].mxu0
    %v4704 = vadd.f32 0.0, %v4703
    %v4705 = vpop.f32.mrb[0].mxu0
    %v4706 = vadd.f32 0.0, %v4705
    %v4707 = vpop.f32.mrb[0].mxu0
    %v4708 = vpop.f32.mrb[0].mxu0
    %4709 = vdwg.mxu0
    %4710 = vmatprep.subr.bf16.mxu0 %v4608
    %4711 = vmatpush1.bf16.msra.mxu0 %v4607
    %4712 = vmatprep.subr.bf16.mxu0 %v4612
    %4713 = vmatpush1.bf16.msra.mxu0 %v4611
    %4714 = vmatprep.subr.bf16.mxu0 %v4616
    %4715 = vmatpush1.bf16.msra.mxu0 %v4615
    %4716 = vmatprep.subr.bf16.mxu0 %v4620
    %4717 = vmatpush1.bf16.msra.mxu0 %v4619
    %4718 = vmatprep.subr.bf16.mxu0 %v4624
    %4719 = vmatpush1.bf16.msra.mxu0 %v4623
    %4720 = vmatprep.subr.bf16.mxu0 %v4628
    %4721 = vmatpush1.bf16.msra.mxu0 %v4627
    %4722 = vmatprep.subr.bf16.mxu0 %v4632
    %4723 = vmatpush1.bf16.msra.mxu0 %v4631
    %4724 = vmatprep.subr.bf16.mxu0 %v4636
    %4725 = vmatpush1.bf16.msra.mxu0 %v4635
    %4726 = vmatprep.subr.bf16.mxu0 0
    %4727 = vmatpush1.bf16.msra.mxu0 0
    %4728 = vmatprep.subr.bf16.mxu0 0
    %4729 = vmatpush1.bf16.msra.mxu0 0
    %4730 = vmatprep.subr.bf16.mxu0 0
    %4731 = vmatpush1.bf16.msra.mxu0 0
    %4732 = vmatprep.subr.bf16.mxu0 0
    %4733 = vmatpush1.bf16.msra.mxu0 0
    %4734 = vmatprep.subr.bf16.mxu0 0
    %4735 = vmatpush1.bf16.msra.mxu0 0
    %4736 = vmatprep.subr.bf16.mxu0 0
    %4737 = vmatpush1.bf16.msra.mxu0 0
    %4738 = vmatprep.subr.bf16.mxu0 0
    %4739 = vmatpush1.bf16.msra.mxu0 0
    %4740 = vmatprep.subr.bf16.mxu0 0
    %4741 = vmatpush1.bf16.msra.mxu0 0
    %4742 = vmatprep.mubr.bf16.mxu0 0
    %4743 = vmatmul.mubr.bf16.gmra.mrb[0].mxu0 %v4441
    %v4744 = vpop.f32.mrb[0].mxu0
    %v4745 = vadd.f32 0.0, %v4744
    %v4746 = vpop.f32.mrb[0].mxu0
    %v4747 = vadd.f32 0.0, %v4746
    %v4748 = vpop.f32.mrb[0].mxu0
    %v4749 = vpop.f32.mrb[0].mxu0
    %4750 = vdwg.mxu0
    %v4783 = vunpack.c.l.b16 %v4445
    %v4784 = vunpack.c.h.b16 %v4445
    %v4785 = vunpack.c.l.b16 %v4446
    %v4786 = vunpack.c.h.b16 %v4446
    %v4787 = vunpack.c.l.b16 %v4447
    %v4788 = vunpack.c.h.b16 %v4447
    %v4789 = vunpack.c.l.b16 %v4448
    %v4790 = vunpack.c.h.b16 %v4448
    %v4791 = vunpack.c.l.b16 %v4449
    %v4792 = vunpack.c.h.b16 %v4449
    %v4793 = vunpack.c.l.b16 %v4450
    %v4794 = vunpack.c.h.b16 %v4450
    %v4795 = vunpack.c.l.b16 %v4451
    %v4796 = vunpack.c.h.b16 %v4451
    %v4797 = vunpack.c.l.b16 %v4452
    %v4798 = vunpack.c.h.b16 %v4452
    %v4799 = vunpack.c.l.b16 %v4453
    %v4800 = vunpack.c.h.b16 %v4453
    %v4801 = vunpack.c.l.b16 %v4454
    %v4802 = vunpack.c.h.b16 %v4454
    %v4803 = vunpack.c.l.b16 %v4455
    %v4804 = vunpack.c.h.b16 %v4455
    %v4805 = vunpack.c.l.b16 %v4456
    %v4806 = vunpack.c.h.b16 %v4456
    %v4807 = vunpack.c.l.b16 %v4457
    %v4808 = vunpack.c.h.b16 %v4457
    %v4809 = vunpack.c.l.b16 %v4458
    %v4810 = vunpack.c.h.b16 %v4458
    %v4811 = vunpack.c.l.b16 %v4459
    %v4812 = vunpack.c.h.b16 %v4459
    %v4813 = vunpack.c.l.b16 %v4460
    %v4814 = vunpack.c.h.b16 %v4460
    %v4815 = vunpack.c.l.b16 %v4461
    %v4816 = vunpack.c.h.b16 %v4461
    %v4817 = vunpack.c.l.b16 %v4462
    %v4818 = vunpack.c.h.b16 %v4462
    %v4819 = vunpack.c.l.b16 %v4463
    %v4820 = vunpack.c.h.b16 %v4463
    %v4821 = vunpack.c.l.b16 %v4464
    %v4822 = vunpack.c.h.b16 %v4464
    %v4823 = vunpack.c.l.b16 %v4465
    %v4824 = vunpack.c.h.b16 %v4465
    %v4825 = vunpack.c.l.b16 %v4466
    %v4826 = vunpack.c.h.b16 %v4466
    %v4827 = vunpack.c.l.b16 %v4467
    %v4828 = vunpack.c.h.b16 %v4467
    %v4829 = vunpack.c.l.b16 %v4468
    %v4830 = vunpack.c.h.b16 %v4468
    %v4831 = vunpack.c.l.b16 %v4469
    %v4832 = vunpack.c.h.b16 %v4469
    %v4833 = vunpack.c.l.b16 %v4470
    %v4834 = vunpack.c.h.b16 %v4470
    %v4835 = vunpack.c.l.b16 %v4471
    %v4836 = vunpack.c.h.b16 %v4471
    %v4837 = vunpack.c.l.b16 %v4472
    %v4838 = vunpack.c.h.b16 %v4472
    %v4839 = vunpack.c.l.b16 %v4473
    %v4840 = vunpack.c.h.b16 %v4473
    %v4841 = vunpack.c.l.b16 %v4474
    %v4842 = vunpack.c.h.b16 %v4474
    %v4843 = vunpack.c.l.b16 %v4475
    %v4844 = vunpack.c.h.b16 %v4475
    %v4845 = vunpack.c.l.b16 %v4476
    %v4846 = vunpack.c.h.b16 %v4476
    %v4847 = vpack.c.b16 %v4787, %v4783
    %v4848 = vpack.c.b16 %v4788, %v4784
    %v4849 = vpack.c.b16 %v4789, %v4785
    %v4850 = vpack.c.b16 %v4790, %v4786
    %v4851 = vpack.c.b16 %v4795, %v4791
    %v4852 = vpack.c.b16 %v4796, %v4792
    %v4853 = vpack.c.b16 %v4797, %v4793
    %v4854 = vpack.c.b16 %v4798, %v4794
    %v4855 = vpack.c.b16 %v4803, %v4799
    %v4856 = vpack.c.b16 %v4804, %v4800
    %v4857 = vpack.c.b16 %v4805, %v4801
    %v4858 = vpack.c.b16 %v4806, %v4802
    %v4859 = vpack.c.b16 %v4811, %v4807
    %v4860 = vpack.c.b16 %v4812, %v4808
    %v4861 = vpack.c.b16 %v4813, %v4809
    %v4862 = vpack.c.b16 %v4814, %v4810
    %v4863 = vpack.c.b16 %v4819, %v4815
    %v4864 = vpack.c.b16 %v4820, %v4816
    %v4865 = vpack.c.b16 %v4821, %v4817
    %v4866 = vpack.c.b16 %v4822, %v4818
    %v4867 = vpack.c.b16 %v4827, %v4823
    %v4868 = vpack.c.b16 %v4828, %v4824
    %v4869 = vpack.c.b16 %v4829, %v4825
    %v4870 = vpack.c.b16 %v4830, %v4826
    %v4871 = vpack.c.b16 %v4835, %v4831
    %v4872 = vpack.c.b16 %v4836, %v4832
    %v4873 = vpack.c.b16 %v4837, %v4833
    %v4874 = vpack.c.b16 %v4838, %v4834
    %v4875 = vpack.c.b16 %v4843, %v4839
    %v4876 = vpack.c.b16 %v4844, %v4840
    %v4877 = vpack.c.b16 %v4845, %v4841
    %v4878 = vpack.c.b16 %v4846, %v4842
    %4911 = vmatprep.subr.bf16.mxu0 %v4848
    %4912 = vmatpush1.bf16.msra.mxu0 %v4847
    %4913 = vmatprep.subr.bf16.mxu0 %v4852
    %4914 = vmatpush1.bf16.msra.mxu0 %v4851
    %4915 = vmatprep.subr.bf16.mxu0 %v4856
    %4916 = vmatpush1.bf16.msra.mxu0 %v4855
    %4917 = vmatprep.subr.bf16.mxu0 %v4860
    %4918 = vmatpush1.bf16.msra.mxu0 %v4859
    %4919 = vmatprep.subr.bf16.mxu0 %v4864
    %4920 = vmatpush1.bf16.msra.mxu0 %v4863
    %4921 = vmatprep.subr.bf16.mxu0 %v4868
    %4922 = vmatpush1.bf16.msra.mxu0 %v4867
    %4923 = vmatprep.subr.bf16.mxu0 %v4872
    %4924 = vmatpush1.bf16.msra.mxu0 %v4871
    %4925 = vmatprep.subr.bf16.mxu0 %v4876
    %4926 = vmatpush1.bf16.msra.mxu0 %v4875
    %4927 = vmatprep.subr.bf16.mxu0 0
    %4928 = vmatpush1.bf16.msra.mxu0 0
    %4929 = vmatprep.subr.bf16.mxu0 0
    %4930 = vmatpush1.bf16.msra.mxu0 0
    %4931 = vmatprep.subr.bf16.mxu0 0
    %4932 = vmatpush1.bf16.msra.mxu0 0
    %4933 = vmatprep.subr.bf16.mxu0 0
    %4934 = vmatpush1.bf16.msra.mxu0 0
    %4935 = vmatprep.subr.bf16.mxu0 0
    %4936 = vmatpush1.bf16.msra.mxu0 0
    %4937 = vmatprep.subr.bf16.mxu0 0
    %4938 = vmatpush1.bf16.msra.mxu0 0
    %4939 = vmatprep.subr.bf16.mxu0 0
    %4940 = vmatpush1.bf16.msra.mxu0 0
    %4941 = vmatprep.subr.bf16.mxu0 0
    %4942 = vmatpush1.bf16.msra.mxu0 0
    %4943 = vmatprep.mubr.bf16.mxu0 0
    %4944 = vmatmul.mubr.bf16.gmra.mrb[0].mxu0 %v4441
    %v4945 = vpop.f32.mrb[0].mxu0
    %v4946 = vadd.f32 %v4704, %v4945
    %v4947 = vpop.f32.mrb[0].mxu0
    %v4948 = vadd.f32 %v4706, %v4947
    %v4949 = vpop.f32.mrb[0].mxu0
    %v4950 = vpop.f32.mrb[0].mxu0
    %4951 = vdwg.mxu0
    %4952 = vmatprep.subr.bf16.mxu0 %v4850
    %4953 = vmatpush1.bf16.msra.mxu0 %v4849
    %4954 = vmatprep.subr.bf16.mxu0 %v4854
    %4955 = vmatpush1.bf16.msra.mxu0 %v4853
    %4956 = vmatprep.subr.bf16.mxu0 %v4858
    %4957 = vmatpush1.bf16.msra.mxu0 %v4857
    %4958 = vmatprep.subr.bf16.mxu0 %v4862
    %4959 = vmatpush1.bf16.msra.mxu0 %v4861
    %4960 = vmatprep.subr.bf16.mxu0 %v4866
    %4961 = vmatpush1.bf16.msra.mxu0 %v4865
    %4962 = vmatprep.subr.bf16.mxu0 %v4870
    %4963 = vmatpush1.bf16.msra.mxu0 %v4869
    %4964 = vmatprep.subr.bf16.mxu0 %v4874
    %4965 = vmatpush1.bf16.msra.mxu0 %v4873
    %4966 = vmatprep.subr.bf16.mxu0 %v4878
    %4967 = vmatpush1.bf16.msra.mxu0 %v4877
    %4968 = vmatprep.subr.bf16.mxu0 0
    %4969 = vmatpush1.bf16.msra.mxu0 0
    %4970 = vmatprep.subr.bf16.mxu0 0
    %4971 = vmatpush1.bf16.msra.mxu0 0
    %4972 = vmatprep.subr.bf16.mxu0 0
    %4973 = vmatpush1.bf16.msra.mxu0 0
    %4974 = vmatprep.subr.bf16.mxu0 0
    %4975 = vmatpush1.bf16.msra.mxu0 0
    %4976 = vmatprep.subr.bf16.mxu0 0
    %4977 = vmatpush1.bf16.msra.mxu0 0
    %4978 = vmatprep.subr.bf16.mxu0 0
    %4979 = vmatpush1.bf16.msra.mxu0 0
    %4980 = vmatprep.subr.bf16.mxu0 0
    %4981 = vmatpush1.bf16.msra.mxu0 0
    %4982 = vmatprep.subr.bf16.mxu0 0
    %4983 = vmatpush1.bf16.msra.mxu0 0
    %4984 = vmatprep.mubr.bf16.mxu0 0
    %4985 = vmatmul.mubr.bf16.gmra.mrb[0].mxu0 %v4441
    %v4986 = vpop.f32.mrb[0].mxu0
    %v4987 = vadd.f32 %v4745, %v4986
    %v4988 = vpop.f32.mrb[0].mxu0
    %v4989 = vadd.f32 %v4747, %v4988
    %v4990 = vpop.f32.mrb[0].mxu0
    %v4991 = vpop.f32.mrb[0].mxu0
    %4992 = vdwg.mxu0
    %4993 = vmatprep.subr.bf16.mxu0 %v4848
    %4994 = vmatpush1.bf16.msra.mxu0 %v4847
    %4995 = vmatprep.subr.bf16.mxu0 %v4852
    %4996 = vmatpush1.bf16.msra.mxu0 %v4851
    %4997 = vmatprep.subr.bf16.mxu0 %v4856
    %4998 = vmatpush1.bf16.msra.mxu0 %v4855
    %4999 = vmatprep.subr.bf16.mxu0 %v4860
    %5000 = vmatpush1.bf16.msra.mxu0 %v4859
    %5001 = vmatprep.subr.bf16.mxu0 %v4864
    %5002 = vmatpush1.bf16.msra.mxu0 %v4863
    %5003 = vmatprep.subr.bf16.mxu0 %v4868
    %5004 = vmatpush1.bf16.msra.mxu0 %v4867
    %5005 = vmatprep.subr.bf16.mxu0 %v4872
    %5006 = vmatpush1.bf16.msra.mxu0 %v4871
    %5007 = vmatprep.subr.bf16.mxu0 %v4876
    %5008 = vmatpush1.bf16.msra.mxu0 %v4875
    %5009 = vmatprep.subr.bf16.mxu0 0
    %5010 = vmatpush1.bf16.msra.mxu0 0
    %5011 = vmatprep.subr.bf16.mxu0 0
    %5012 = vmatpush1.bf16.msra.mxu0 0
    %5013 = vmatprep.subr.bf16.mxu0 0
    %5014 = vmatpush1.bf16.msra.mxu0 0
    %5015 = vmatprep.subr.bf16.mxu0 0
    %5016 = vmatpush1.bf16.msra.mxu0 0
    %5017 = vmatprep.subr.bf16.mxu0 0
    %5018 = vmatpush1.bf16.msra.mxu0 0
    %5019 = vmatprep.subr.bf16.mxu0 0
    %5020 = vmatpush1.bf16.msra.mxu0 0
    %5021 = vmatprep.subr.bf16.mxu0 0
    %5022 = vmatpush1.bf16.msra.mxu0 0
    %5023 = vmatprep.subr.bf16.mxu0 0
    %5024 = vmatpush1.bf16.msra.mxu0 0
    %5025 = vmatprep.mubr.bf16.mxu0 0
    %5026 = vmatmul.mubr.bf16.gmra.mrb[0].mxu0 %v4444
    %v5027 = vpop.f32.mrb[0].mxu0
    %v5028 = vadd.f32 0.0, %v5027
    %v5029 = vpop.f32.mrb[0].mxu0
    %v5030 = vadd.f32 0.0, %v5029
    %v5031 = vpop.f32.mrb[0].mxu0
    %v5032 = vpop.f32.mrb[0].mxu0
    %5033 = vdwg.mxu0
    %5034 = vmatprep.subr.bf16.mxu0 %v4850
    %5035 = vmatpush1.bf16.msra.mxu0 %v4849
    %5036 = vmatprep.subr.bf16.mxu0 %v4854
    %5037 = vmatpush1.bf16.msra.mxu0 %v4853
    %5038 = vmatprep.subr.bf16.mxu0 %v4858
    %5039 = vmatpush1.bf16.msra.mxu0 %v4857
    %5040 = vmatprep.subr.bf16.mxu0 %v4862
    %5041 = vmatpush1.bf16.msra.mxu0 %v4861
    %5042 = vmatprep.subr.bf16.mxu0 %v4866
    %5043 = vmatpush1.bf16.msra.mxu0 %v4865
    %5044 = vmatprep.subr.bf16.mxu0 %v4870
    %5045 = vmatpush1.bf16.msra.mxu0 %v4869
    %5046 = vmatprep.subr.bf16.mxu0 %v4874
    %5047 = vmatpush1.bf16.msra.mxu0 %v4873
    %5048 = vmatprep.subr.bf16.mxu0 %v4878
    %5049 = vmatpush1.bf16.msra.mxu0 %v4877
    %5050 = vmatprep.subr.bf16.mxu0 0
    %5051 = vmatpush1.bf16.msra.mxu0 0
    %5052 = vmatprep.subr.bf16.mxu0 0
    %5053 = vmatpush1.bf16.msra.mxu0 0
    %5054 = vmatprep.subr.bf16.mxu0 0
    %5055 = vmatpush1.bf16.msra.mxu0 0
    %5056 = vmatprep.subr.bf16.mxu0 0
    %5057 = vmatpush1.bf16.msra.mxu0 0
    %5058 = vmatprep.subr.bf16.mxu0 0
    %5059 = vmatpush1.bf16.msra.mxu0 0
    %5060 = vmatprep.subr.bf16.mxu0 0
    %5061 = vmatpush1.bf16.msra.mxu0 0
    %5062 = vmatprep.subr.bf16.mxu0 0
    %5063 = vmatpush1.bf16.msra.mxu0 0
    %5064 = vmatprep.subr.bf16.mxu0 0
    %5065 = vmatpush1.bf16.msra.mxu0 0
    %5066 = vmatprep.mubr.bf16.mxu0 0
    %5067 = vmatmul.mubr.bf16.gmra.mrb[0].mxu0 %v4444
    %v5068 = vpop.f32.mrb[0].mxu0
    %v5069 = vadd.f32 0.0, %v5068
    %v5070 = vpop.f32.mrb[0].mxu0
    %v5071 = vadd.f32 0.0, %v5070
    %v5072 = vpop.f32.mrb[0].mxu0
    %v5073 = vpop.f32.mrb[0].mxu0
    %5074 = vdwg.mxu0
    %v5075 = vadd.f32 %v4946, %v5028
    %v5076 = vadd.f32 %v4948, %v5030
    %v5077 = vadd.f32 %v4987, %v5069
    %v5078 = vadd.f32 %v4989, %v5071
    %s5079 = scalar_lea.vmem [#allocation2], 6
    %v5080 = vld [vmem:[%s5079] ss:$8 sm:$0xf]
    %v5085 = vcombine.low %v5075, %v5076
    %v5086 = vcombine.low %v5077, %v5078
    %v5088 = vunpack.c.l.s4 1966171168
    %v5089 = vunpack.c.0.s8 %v5088
    %v5090 = vlaneseq
    %v5091 = vshrl.u32 %v5090, 7
    %v5092 = vsub.s32 %v5089, %v5091
    %v5093 = vrot.slane %v5085, %v5092
    %v5095 = vunpack.c.l.s4 1966171168
    %v5096 = vunpack.c.0.s8 %v5095
    %v5097 = vlaneseq
    %v5098 = vshrl.u32 %v5097, 7
    %v5099 = vsub.s32 %v5096, %v5098
    %v5100 = vrot.slane %v5086, %v5099
    %v5101 = vcombine.low %v5093, %v5100
    %v5103 = vunpack.c.l.s4 1966171168
    %v5104 = vunpack.c.0.s8 %v5103
    %v5105 = vlaneseq
    %v5106 = vshrl.u32 %v5105, 7
    %v5107 = vsub.s32 %v5104, %v5106
    %v5108 = vrot.slane %v5101, %v5107
    %v5110 = vadd.f32 %v5080, %v5108
    %v5111 = vxor.u32 %v5110, 2147483648
    %v5112 = vmul.f32 %v5111, 1.442695
    %v5113 = vpow.pop %v5112
    %v5114 = vadd.f32 %v5113, 1.0
    %v5115 = vrcp.pop %v5114
    %v5116 = vmul.f32 1.0, %v5115
    %v5118 = vrot.slane %v5110, 3
    %v5120 = vtanh.pop %v5118
    %v5122 = vrot.slane %v5116, 1
    %v5124 = vmul.f32 %v5122, %v4435
    %v5125 = vmul.f32 %v5116, %v5120
    %v5126 = vadd.f32 %v5124, %v5125
    %v5127 = vtanh.pop %v5126
    %v5128 = vrot.slane %v5116, 2
    %v5130 = vmul.f32 %v5128, %v5127
    %5131 = vst [vmem:[#allocation3 + $0x6] sm:$0x1] %v5130
    %v5132 = vpack.c.bf16 %v5130, %v5130
    %v5133 = vunpack.c.l.bf16 %v5132
    %v5134 = vsub.f32 %v5130, %v5133
    %v5135 = vpack.c.bf16 %v5134, %v5134
    %v5136 = vld [vmem:[#allocation4] sm:$0xff]
    %v5137 = vld [vmem:[#allocation4 + $0x8] sm:$0xff]
    %v5138 = vld [vmem:[#allocation4 + $0x10] sm:$0xff]
    %v5139 = vld [vmem:[#allocation4 + $0x18] sm:$0xff]
    %v5140 = vld [vmem:[#allocation4 + $0x20] sm:$0xff]
    %v5141 = vld [vmem:[#allocation4 + $0x28] sm:$0xff]
    %v5142 = vld [vmem:[#allocation4 + $0x30] sm:$0xff]
    %v5143 = vld [vmem:[#allocation4 + $0x38] sm:$0xff]
    %v5144 = vld [vmem:[#allocation4 + $0x40] sm:$0xff]
    %v5145 = vld [vmem:[#allocation4 + $0x48] sm:$0xff]
    %v5146 = vld [vmem:[#allocation4 + $0x50] sm:$0xff]
    %v5147 = vld [vmem:[#allocation4 + $0x58] sm:$0xff]
    %v5148 = vld [vmem:[#allocation4 + $0x60] sm:$0xff]
    %v5149 = vld [vmem:[#allocation4 + $0x68] sm:$0xff]
    %v5150 = vld [vmem:[#allocation4 + $0x70] sm:$0xff]
    %v5151 = vld [vmem:[#allocation4 + $0x78] sm:$0xff]
    %v5152 = vld [vmem:[#allocation4 + $0x80] sm:$0xff]
    %v5153 = vld [vmem:[#allocation4 + $0x88] sm:$0xff]
    %v5154 = vld [vmem:[#allocation4 + $0x90] sm:$0xff]
    %v5155 = vld [vmem:[#allocation4 + $0x98] sm:$0xff]
    %v5156 = vld [vmem:[#allocation4 + $0xa0] sm:$0xff]
    %v5157 = vld [vmem:[#allocation4 + $0xa8] sm:$0xff]
    %v5158 = vld [vmem:[#allocation4 + $0xb0] sm:$0xff]
    %v5159 = vld [vmem:[#allocation4 + $0xb8] sm:$0xff]
    %v5160 = vld [vmem:[#allocation4 + $0xc0] sm:$0xff]
    %v5161 = vld [vmem:[#allocation4 + $0xc8] sm:$0xff]
    %v5162 = vld [vmem:[#allocation4 + $0xd0] sm:$0xff]
    %v5163 = vld [vmem:[#allocation4 + $0xd8] sm:$0xff]
    %v5164 = vld [vmem:[#allocation4 + $0xe0] sm:$0xff]
    %v5165 = vld [vmem:[#allocation4 + $0xe8] sm:$0xff]
    %v5166 = vld [vmem:[#allocation4 + $0xf0] sm:$0xff]
    %v5167 = vld [vmem:[#allocation4 + $0xf8] sm:$0xff]
    %v5168 = vld [vmem:[#allocation7] sm:$0xff]
    %v5169 = vld [vmem:[#allocation7 + $0x8] sm:$0xff]
    %v5170 = vld [vmem:[#allocation7 + $0x10] sm:$0xff]
    %v5171 = vld [vmem:[#allocation7 + $0x18] sm:$0xff]
    %v5172 = vld [vmem:[#allocation7 + $0x20] sm:$0xff]
    %v5173 = vld [vmem:[#allocation7 + $0x28] sm:$0xff]
    %v5174 = vld [vmem:[#allocation7 + $0x30] sm:$0xff]
    %v5175 = vld [vmem:[#allocation7 + $0x38] sm:$0xff]
    %v5176 = vld [vmem:[#allocation7 + $0x40] sm:$0xff]
    %v5177 = vld [vmem:[#allocation7 + $0x48] sm:$0xff]
    %v5178 = vld [vmem:[#allocation7 + $0x50] sm:$0xff]
    %v5179 = vld [vmem:[#allocation7 + $0x58] sm:$0xff]
    %v5180 = vld [vmem:[#allocation7 + $0x60] sm:$0xff]
    %v5181 = vld [vmem:[#allocation7 + $0x68] sm:$0xff]
    %v5182 = vld [vmem:[#allocation7 + $0x70] sm:$0xff]
    %v5183 = vld [vmem:[#allocation7 + $0x78] sm:$0xff]
    %v5184 = vld [vmem:[#allocation7 + $0x80] sm:$0xff]
    %v5185 = vld [vmem:[#allocation7 + $0x88] sm:$0xff]
    %v5186 = vld [vmem:[#allocation7 + $0x90] sm:$0xff]
    %v5187 = vld [vmem:[#allocation7 + $0x98] sm:$0xff]
    %v5188 = vld [vmem:[#allocation7 + $0xa0] sm:$0xff]
    %v5189 = vld [vmem:[#allocation7 + $0xa8] sm:$0xff]
    %v5190 = vld [vmem:[#allocation7 + $0xb0] sm:$0xff]
    %v5191 = vld [vmem:[#allocation7 + $0xb8] sm:$0xff]
    %v5192 = vld [vmem:[#allocation7 + $0xc0] sm:$0xff]
    %v5193 = vld [vmem:[#allocation7 + $0xc8] sm:$0xff]
    %v5194 = vld [vmem:[#allocation7 + $0xd0] sm:$0xff]
    %v5195 = vld [vmem:[#allocation7 + $0xd8] sm:$0xff]
    %v5196 = vld [vmem:[#allocation7 + $0xe0] sm:$0xff]
    %v5197 = vld [vmem:[#allocation7 + $0xe8] sm:$0xff]
    %v5198 = vld [vmem:[#allocation7 + $0xf0] sm:$0xff]
    %v5199 = vld [vmem:[#allocation7 + $0xf8] sm:$0xff]
    %v5232 = vunpack.c.l.b16 %v5168
    %v5233 = vunpack.c.h.b16 %v5168
    %v5234 = vunpack.c.l.b16 %v5169
    %v5235 = vunpack.c.h.b16 %v5169
    %v5236 = vunpack.c.l.b16 %v5170
    %v5237 = vunpack.c.h.b16 %v5170
    %v5238 = vunpack.c.l.b16 %v5171
    %v5239 = vunpack.c.h.b16 %v5171
    %v5240 = vunpack.c.l.b16 %v5172
    %v5241 = vunpack.c.h.b16 %v5172
    %v5242 = vunpack.c.l.b16 %v5173
    %v5243 = vunpack.c.h.b16 %v5173
    %v5244 = vunpack.c.l.b16 %v5174
    %v5245 = vunpack.c.h.b16 %v5174
    %v5246 = vunpack.c.l.b16 %v5175
    %v5247 = vunpack.c.h.b16 %v5175
    %v5248 = vunpack.c.l.b16 %v5176
    %v5249 = vunpack.c.h.b16 %v5176
    %v5250 = vunpack.c.l.b16 %v5177
    %v5251 = vunpack.c.h.b16 %v5177
    %v5252 = vunpack.c.l.b16 %v5178
    %v5253 = vunpack.c.h.b16 %v5178
    %v5254 = vunpack.c.l.b16 %v5179
    %v5255 = vunpack.c.h.b16 %v5179
    %v5256 = vunpack.c.l.b16 %v5180
    %v5257 = vunpack.c.h.b16 %v5180
    %v5258 = vunpack.c.l.b16 %v5181
    %v5259 = vunpack.c.h.b16 %v5181
    %v5260 = vunpack.c.l.b16 %v5182
    %v5261 = vunpack.c.h.b16 %v5182
    %v5262 = vunpack.c.l.b16 %v5183
    %v5263 = vunpack.c.h.b16 %v5183
    %v5264 = vunpack.c.l.b16 %v5184
    %v5265 = vunpack.c.h.b16 %v5184
    %v5266 = vunpack.c.l.b16 %v5185
    %v5267 = vunpack.c.h.b16 %v5185
    %v5268 = vunpack.c.l.b16 %v5186
    %v5269 = vunpack.c.h.b16 %v5186
    %v5270 = vunpack.c.l.b16 %v5187
    %v5271 = vunpack.c.h.b16 %v5187
    %v5272 = vunpack.c.l.b16 %v5188
    %v5273 = vunpack.c.h.b16 %v5188
    %v5274 = vunpack.c.l.b16 %v5189
    %v5275 = vunpack.c.h.b16 %v5189
    %v5276 = vunpack.c.l.b16 %v5190
    %v5277 = vunpack.c.h.b16 %v5190
    %v5278 = vunpack.c.l.b16 %v5191
    %v5279 = vunpack.c.h.b16 %v5191
    %v5280 = vunpack.c.l.b16 %v5192
    %v5281 = vunpack.c.h.b16 %v5192
    %v5282 = vunpack.c.l.b16 %v5193
    %v5283 = vunpack.c.h.b16 %v5193
    %v5284 = vunpack.c.l.b16 %v5194
    %v5285 = vunpack.c.h.b16 %v5194
    %v5286 = vunpack.c.l.b16 %v5195
    %v5287 = vunpack.c.h.b16 %v5195
    %v5288 = vunpack.c.l.b16 %v5196
    %v5289 = vunpack.c.h.b16 %v5196
    %v5290 = vunpack.c.l.b16 %v5197
    %v5291 = vunpack.c.h.b16 %v5197
    %v5292 = vunpack.c.l.b16 %v5198
    %v5293 = vunpack.c.h.b16 %v5198
    %v5294 = vunpack.c.l.b16 %v5199
    %v5295 = vunpack.c.h.b16 %v5199
    %v5296 = vpack.c.b16 %v5236, %v5232
    %v5297 = vpack.c.b16 %v5237, %v5233
    %v5298 = vpack.c.b16 %v5238, %v5234
    %v5299 = vpack.c.b16 %v5239, %v5235
    %v5300 = vpack.c.b16 %v5244, %v5240
    %v5301 = vpack.c.b16 %v5245, %v5241
    %v5302 = vpack.c.b16 %v5246, %v5242
    %v5303 = vpack.c.b16 %v5247, %v5243
    %v5304 = vpack.c.b16 %v5252, %v5248
    %v5305 = vpack.c.b16 %v5253, %v5249
    %v5306 = vpack.c.b16 %v5254, %v5250
    %v5307 = vpack.c.b16 %v5255, %v5251
    %v5308 = vpack.c.b16 %v5260, %v5256
    %v5309 = vpack.c.b16 %v5261, %v5257
    %v5310 = vpack.c.b16 %v5262, %v5258
    %v5311 = vpack.c.b16 %v5263, %v5259
    %v5312 = vpack.c.b16 %v5268, %v5264
    %v5313 = vpack.c.b16 %v5269, %v5265
    %v5314 = vpack.c.b16 %v5270, %v5266
    %v5315 = vpack.c.b16 %v5271, %v5267
    %v5316 = vpack.c.b16 %v5276, %v5272
    %v5317 = vpack.c.b16 %v5277, %v5273
    %v5318 = vpack.c.b16 %v5278, %v5274
    %v5319 = vpack.c.b16 %v5279, %v5275
    %v5320 = vpack.c.b16 %v5284, %v5280
    %v5321 = vpack.c.b16 %v5285, %v5281
    %v5322 = vpack.c.b16 %v5286, %v5282
    %v5323 = vpack.c.b16 %v5287, %v5283
    %v5324 = vpack.c.b16 %v5292, %v5288
    %v5325 = vpack.c.b16 %v5293, %v5289
    %v5326 = vpack.c.b16 %v5294, %v5290
    %v5327 = vpack.c.b16 %v5295, %v5291
    %5360 = vmatprep.subr.bf16.mxu0 %v5297
    %5361 = vmatpush1.bf16.msra.mxu0 %v5296
    %5362 = vmatprep.subr.bf16.mxu0 %v5301
    %5363 = vmatpush1.bf16.msra.mxu0 %v5300
    %5364 = vmatprep.subr.bf16.mxu0 %v5305
    %5365 = vmatpush1.bf16.msra.mxu0 %v5304
    %5366 = vmatprep.subr.bf16.mxu0 %v5309
    %5367 = vmatpush1.bf16.msra.mxu0 %v5308
    %5368 = vmatprep.subr.bf16.mxu0 %v5313
    %5369 = vmatpush1.bf16.msra.mxu0 %v5312
    %5370 = vmatprep.subr.bf16.mxu0 %v5317
    %5371 = vmatpush1.bf16.msra.mxu0 %v5316
    %5372 = vmatprep.subr.bf16.mxu0 %v5321
    %5373 = vmatpush1.bf16.msra.mxu0 %v5320
    %5374 = vmatprep.subr.bf16.mxu0 %v5325
    %5375 = vmatpush1.bf16.msra.mxu0 %v5324
    %5376 = vmatprep.subr.bf16.mxu0 0
    %5377 = vmatpush1.bf16.msra.mxu0 0
    %5378 = vmatprep.subr.bf16.mxu0 0
    %5379 = vmatpush1.bf16.msra.mxu0 0
    %5380 = vmatprep.subr.bf16.mxu0 0
    %5381 = vmatpush1.bf16.msra.mxu0 0
    %5382 = vmatprep.subr.bf16.mxu0 0
    %5383 = vmatpush1.bf16.msra.mxu0 0
    %5384 = vmatprep.subr.bf16.mxu0 0
    %5385 = vmatpush1.bf16.msra.mxu0 0
    %5386 = vmatprep.subr.bf16.mxu0 0
    %5387 = vmatpush1.bf16.msra.mxu0 0
    %5388 = vmatprep.subr.bf16.mxu0 0
    %5389 = vmatpush1.bf16.msra.mxu0 0
    %5390 = vmatprep.subr.bf16.mxu0 0
    %5391 = vmatpush1.bf16.msra.mxu0 0
    %5392 = vmatprep.mubr.bf16.mxu0 0
    %5393 = vmatmul.mubr.bf16.gmra.mrb[0].mxu0 %v5132
    %v5394 = vpop.f32.mrb[0].mxu0
    %v5395 = vadd.f32 0.0, %v5394
    %v5396 = vpop.f32.mrb[0].mxu0
    %v5397 = vadd.f32 0.0, %v5396
    %v5398 = vpop.f32.mrb[0].mxu0
    %v5399 = vpop.f32.mrb[0].mxu0
    %5400 = vdwg.mxu0
    %5401 = vmatprep.subr.bf16.mxu0 %v5299
    %5402 = vmatpush1.bf16.msra.mxu0 %v5298
    %5403 = vmatprep.subr.bf16.mxu0 %v5303
    %5404 = vmatpush1.bf16.msra.mxu0 %v5302
    %5405 = vmatprep.subr.bf16.mxu0 %v5307
    %5406 = vmatpush1.bf16.msra.mxu0 %v5306
    %5407 = vmatprep.subr.bf16.mxu0 %v5311
    %5408 = vmatpush1.bf16.msra.mxu0 %v5310
    %5409 = vmatprep.subr.bf16.mxu0 %v5315
    %5410 = vmatpush1.bf16.msra.mxu0 %v5314
    %5411 = vmatprep.subr.bf16.mxu0 %v5319
    %5412 = vmatpush1.bf16.msra.mxu0 %v5318
    %5413 = vmatprep.subr.bf16.mxu0 %v5323
    %5414 = vmatpush1.bf16.msra.mxu0 %v5322
    %5415 = vmatprep.subr.bf16.mxu0 %v5327
    %5416 = vmatpush1.bf16.msra.mxu0 %v5326
    %5417 = vmatprep.subr.bf16.mxu0 0
    %5418 = vmatpush1.bf16.msra.mxu0 0
    %5419 = vmatprep.subr.bf16.mxu0 0
    %5420 = vmatpush1.bf16.msra.mxu0 0
    %5421 = vmatprep.subr.bf16.mxu0 0
    %5422 = vmatpush1.bf16.msra.mxu0 0
    %5423 = vmatprep.subr.bf16.mxu0 0
    %5424 = vmatpush1.bf16.msra.mxu0 0
    %5425 = vmatprep.subr.bf16.mxu0 0
    %5426 = vmatpush1.bf16.msra.mxu0 0
    %5427 = vmatprep.subr.bf16.mxu0 0
    %5428 = vmatpush1.bf16.msra.mxu0 0
    %5429 = vmatprep.subr.bf16.mxu0 0
    %5430 = vmatpush1.bf16.msra.mxu0 0
    %5431 = vmatprep.subr.bf16.mxu0 0
    %5432 = vmatpush1.bf16.msra.mxu0 0
    %5433 = vmatprep.mubr.bf16.mxu0 0
    %5434 = vmatmul.mubr.bf16.gmra.mrb[0].mxu0 %v5132
    %v5435 = vpop.f32.mrb[0].mxu0
    %v5436 = vadd.f32 0.0, %v5435
    %v5437 = vpop.f32.mrb[0].mxu0
    %v5438 = vadd.f32 0.0, %v5437
    %v5439 = vpop.f32.mrb[0].mxu0
    %v5440 = vpop.f32.mrb[0].mxu0
    %5441 = vdwg.mxu0
    %v5474 = vunpack.c.l.b16 %v5136
    %v5475 = vunpack.c.h.b16 %v5136
    %v5476 = vunpack.c.l.b16 %v5137
    %v5477 = vunpack.c.h.b16 %v5137
    %v5478 = vunpack.c.l.b16 %v5138
    %v5479 = vunpack.c.h.b16 %v5138
    %v5480 = vunpack.c.l.b16 %v5139
    %v5481 = vunpack.c.h.b16 %v5139
    %v5482 = vunpack.c.l.b16 %v5140
    %v5483 = vunpack.c.h.b16 %v5140
    %v5484 = vunpack.c.l.b16 %v5141
    %v5485 = vunpack.c.h.b16 %v5141
    %v5486 = vunpack.c.l.b16 %v5142
    %v5487 = vunpack.c.h.b16 %v5142
    %v5488 = vunpack.c.l.b16 %v5143
    %v5489 = vunpack.c.h.b16 %v5143
    %v5490 = vunpack.c.l.b16 %v5144
    %v5491 = vunpack.c.h.b16 %v5144
    %v5492 = vunpack.c.l.b16 %v5145
    %v5493 = vunpack.c.h.b16 %v5145
    %v5494 = vunpack.c.l.b16 %v5146
    %v5495 = vunpack.c.h.b16 %v5146
    %v5496 = vunpack.c.l.b16 %v5147
    %v5497 = vunpack.c.h.b16 %v5147
    %v5498 = vunpack.c.l.b16 %v5148
    %v5499 = vunpack.c.h.b16 %v5148
    %v5500 = vunpack.c.l.b16 %v5149
    %v5501 = vunpack.c.h.b16 %v5149
    %v5502 = vunpack.c.l.b16 %v5150
    %v5503 = vunpack.c.h.b16 %v5150
    %v5504 = vunpack.c.l.b16 %v5151
    %v5505 = vunpack.c.h.b16 %v5151
    %v5506 = vunpack.c.l.b16 %v5152
    %v5507 = vunpack.c.h.b16 %v5152
    %v5508 = vunpack.c.l.b16 %v5153
    %v5509 = vunpack.c.h.b16 %v5153
    %v5510 = vunpack.c.l.b16 %v5154
    %v5511 = vunpack.c.h.b16 %v5154
    %v5512 = vunpack.c.l.b16 %v5155
    %v5513 = vunpack.c.h.b16 %v5155
    %v5514 = vunpack.c.l.b16 %v5156
    %v5515 = vunpack.c.h.b16 %v5156
    %v5516 = vunpack.c.l.b16 %v5157
    %v5517 = vunpack.c.h.b16 %v5157
    %v5518 = vunpack.c.l.b16 %v5158
    %v5519 = vunpack.c.h.b16 %v5158
    %v5520 = vunpack.c.l.b16 %v5159
    %v5521 = vunpack.c.h.b16 %v5159
    %v5522 = vunpack.c.l.b16 %v5160
    %v5523 = vunpack.c.h.b16 %v5160
    %v5524 = vunpack.c.l.b16 %v5161
    %v5525 = vunpack.c.h.b16 %v5161
    %v5526 = vunpack.c.l.b16 %v5162
    %v5527 = vunpack.c.h.b16 %v5162
    %v5528 = vunpack.c.l.b16 %v5163
    %v5529 = vunpack.c.h.b16 %v5163
    %v5530 = vunpack.c.l.b16 %v5164
    %v5531 = vunpack.c.h.b16 %v5164
    %v5532 = vunpack.c.l.b16 %v5165
    %v5533 = vunpack.c.h.b16 %v5165
    %v5534 = vunpack.c.l.b16 %v5166
    %v5535 = vunpack.c.h.b16 %v5166
    %v5536 = vunpack.c.l.b16 %v5167
    %v5537 = vunpack.c.h.b16 %v5167
    %v5538 = vpack.c.b16 %v5478, %v5474
    %v5539 = vpack.c.b16 %v5479, %v5475
    %v5540 = vpack.c.b16 %v5480, %v5476
    %v5541 = vpack.c.b16 %v5481, %v5477
    %v5542 = vpack.c.b16 %v5486, %v5482
    %v5543 = vpack.c.b16 %v5487, %v5483
    %v5544 = vpack.c.b16 %v5488, %v5484
    %v5545 = vpack.c.b16 %v5489, %v5485
    %v5546 = vpack.c.b16 %v5494, %v5490
    %v5547 = vpack.c.b16 %v5495, %v5491
    %v5548 = vpack.c.b16 %v5496, %v5492
    %v5549 = vpack.c.b16 %v5497, %v5493
    %v5550 = vpack.c.b16 %v5502, %v5498
    %v5551 = vpack.c.b16 %v5503, %v5499
    %v5552 = vpack.c.b16 %v5504, %v5500
    %v5553 = vpack.c.b16 %v5505, %v5501
    %v5554 = vpack.c.b16 %v5510, %v5506
    %v5555 = vpack.c.b16 %v5511, %v5507
    %v5556 = vpack.c.b16 %v5512, %v5508
    %v5557 = vpack.c.b16 %v5513, %v5509
    %v5558 = vpack.c.b16 %v5518, %v5514
    %v5559 = vpack.c.b16 %v5519, %v5515
    %v5560 = vpack.c.b16 %v5520, %v5516
    %v5561 = vpack.c.b16 %v5521, %v5517
    %v5562 = vpack.c.b16 %v5526, %v5522
    %v5563 = vpack.c.b16 %v5527, %v5523
    %v5564 = vpack.c.b16 %v5528, %v5524
    %v5565 = vpack.c.b16 %v5529, %v5525
    %v5566 = vpack.c.b16 %v5534, %v5530
    %v5567 = vpack.c.b16 %v5535, %v5531
    %v5568 = vpack.c.b16 %v5536, %v5532
    %v5569 = vpack.c.b16 %v5537, %v5533
    %5602 = vmatprep.subr.bf16.mxu0 %v5539
    %5603 = vmatpush1.bf16.msra.mxu0 %v5538
    %5604 = vmatprep.subr.bf16.mxu0 %v5543
    %5605 = vmatpush1.bf16.msra.mxu0 %v5542
    %5606 = vmatprep.subr.bf16.mxu0 %v5547
    %5607 = vmatpush1.bf16.msra.mxu0 %v5546
    %5608 = vmatprep.subr.bf16.mxu0 %v5551
    %5609 = vmatpush1.bf16.msra.mxu0 %v5550
    %5610 = vmatprep.subr.bf16.mxu0 %v5555
    %5611 = vmatpush1.bf16.msra.mxu0 %v5554
    %5612 = vmatprep.subr.bf16.mxu0 %v5559
    %5613 = vmatpush1.bf16.msra.mxu0 %v5558
    %5614 = vmatprep.subr.bf16.mxu0 %v5563
    %5615 = vmatpush1.bf16.msra.mxu0 %v5562
    %5616 = vmatprep.subr.bf16.mxu0 %v5567
    %5617 = vmatpush1.bf16.msra.mxu0 %v5566
    %5618 = vmatprep.subr.bf16.mxu0 0
    %5619 = vmatpush1.bf16.msra.mxu0 0
    %5620 = vmatprep.subr.bf16.mxu0 0
    %5621 = vmatpush1.bf16.msra.mxu0 0
    %5622 = vmatprep.subr.bf16.mxu0 0
    %5623 = vmatpush1.bf16.msra.mxu0 0
    %5624 = vmatprep.subr.bf16.mxu0 0
    %5625 = vmatpush1.bf16.msra.mxu0 0
    %5626 = vmatprep.subr.bf16.mxu0 0
    %5627 = vmatpush1.bf16.msra.mxu0 0
    %5628 = vmatprep.subr.bf16.mxu0 0
    %5629 = vmatpush1.bf16.msra.mxu0 0
    %5630 = vmatprep.subr.bf16.mxu0 0
    %5631 = vmatpush1.bf16.msra.mxu0 0
    %5632 = vmatprep.subr.bf16.mxu0 0
    %5633 = vmatpush1.bf16.msra.mxu0 0
    %5634 = vmatprep.mubr.bf16.mxu0 0
    %5635 = vmatmul.mubr.bf16.gmra.mrb[0].mxu0 %v5132
    %v5636 = vpop.f32.mrb[0].mxu0
    %v5637 = vadd.f32 %v5395, %v5636
    %v5638 = vpop.f32.mrb[0].mxu0
    %v5639 = vadd.f32 %v5397, %v5638
    %v5640 = vpop.f32.mrb[0].mxu0
    %v5641 = vpop.f32.mrb[0].mxu0
    %5642 = vdwg.mxu0
    %5643 = vmatprep.subr.bf16.mxu0 %v5541
    %5644 = vmatpush1.bf16.msra.mxu0 %v5540
    %5645 = vmatprep.subr.bf16.mxu0 %v5545
    %5646 = vmatpush1.bf16.msra.mxu0 %v5544
    %5647 = vmatprep.subr.bf16.mxu0 %v5549
    %5648 = vmatpush1.bf16.msra.mxu0 %v5548
    %5649 = vmatprep.subr.bf16.mxu0 %v5553
    %5650 = vmatpush1.bf16.msra.mxu0 %v5552
    %5651 = vmatprep.subr.bf16.mxu0 %v5557
    %5652 = vmatpush1.bf16.msra.mxu0 %v5556
    %5653 = vmatprep.subr.bf16.mxu0 %v5561
    %5654 = vmatpush1.bf16.msra.mxu0 %v5560
    %5655 = vmatprep.subr.bf16.mxu0 %v5565
    %5656 = vmatpush1.bf16.msra.mxu0 %v5564
    %5657 = vmatprep.subr.bf16.mxu0 %v5569
    %5658 = vmatpush1.bf16.msra.mxu0 %v5568
    %5659 = vmatprep.subr.bf16.mxu0 0
    %5660 = vmatpush1.bf16.msra.mxu0 0
    %5661 = vmatprep.subr.bf16.mxu0 0
    %5662 = vmatpush1.bf16.msra.mxu0 0
    %5663 = vmatprep.subr.bf16.mxu0 0
    %5664 = vmatpush1.bf16.msra.mxu0 0
    %5665 = vmatprep.subr.bf16.mxu0 0
    %5666 = vmatpush1.bf16.msra.mxu0 0
    %5667 = vmatprep.subr.bf16.mxu0 0
    %5668 = vmatpush1.bf16.msra.mxu0 0
    %5669 = vmatprep.subr.bf16.mxu0 0
    %5670 = vmatpush1.bf16.msra.mxu0 0
    %5671 = vmatprep.subr.bf16.mxu0 0
    %5672 = vmatpush1.bf16.msra.mxu0 0
    %5673 = vmatprep.subr.bf16.mxu0 0
    %5674 = vmatpush1.bf16.msra.mxu0 0
    %5675 = vmatprep.mubr.bf16.mxu0 0
    %5676 = vmatmul.mubr.bf16.gmra.mrb[0].mxu0 %v5132
    %v5677 = vpop.f32.mrb[0].mxu0
    %v5678 = vadd.f32 %v5436, %v5677
    %v5679 = vpop.f32.mrb[0].mxu0
    %v5680 = vadd.f32 %v5438, %v5679
    %v5681 = vpop.f32.mrb[0].mxu0
    %v5682 = vpop.f32.mrb[0].mxu0
    %5683 = vdwg.mxu0
    %5684 = vmatprep.subr.bf16.mxu0 %v5539
    %5685 = vmatpush1.bf16.msra.mxu0 %v5538
    %5686 = vmatprep.subr.bf16.mxu0 %v5543
    %5687 = vmatpush1.bf16.msra.mxu0 %v5542
    %5688 = vmatprep.subr.bf16.mxu0 %v5547
    %5689 = vmatpush1.bf16.msra.mxu0 %v5546
    %5690 = vmatprep.subr.bf16.mxu0 %v5551
    %5691 = vmatpush1.bf16.msra.mxu0 %v5550
    %5692 = vmatprep.subr.bf16.mxu0 %v5555
    %5693 = vmatpush1.bf16.msra.mxu0 %v5554
    %5694 = vmatprep.subr.bf16.mxu0 %v5559
    %5695 = vmatpush1.bf16.msra.mxu0 %v5558
    %5696 = vmatprep.subr.bf16.mxu0 %v5563
    %5697 = vmatpush1.bf16.msra.mxu0 %v5562
    %5698 = vmatprep.subr.bf16.mxu0 %v5567
    %5699 = vmatpush1.bf16.msra.mxu0 %v5566
    %5700 = vmatprep.subr.bf16.mxu0 0
    %5701 = vmatpush1.bf16.msra.mxu0 0
    %5702 = vmatprep.subr.bf16.mxu0 0
    %5703 = vmatpush1.bf16.msra.mxu0 0
    %5704 = vmatprep.subr.bf16.mxu0 0
    %5705 = vmatpush1.bf16.msra.mxu0 0
    %5706 = vmatprep.subr.bf16.mxu0 0
    %5707 = vmatpush1.bf16.msra.mxu0 0
    %5708 = vmatprep.subr.bf16.mxu0 0
    %5709 = vmatpush1.bf16.msra.mxu0 0
    %5710 = vmatprep.subr.bf16.mxu0 0
    %5711 = vmatpush1.bf16.msra.mxu0 0
    %5712 = vmatprep.subr.bf16.mxu0 0
    %5713 = vmatpush1.bf16.msra.mxu0 0
    %5714 = vmatprep.subr.bf16.mxu0 0
    %5715 = vmatpush1.bf16.msra.mxu0 0
    %5716 = vmatprep.mubr.bf16.mxu0 0
    %5717 = vmatmul.mubr.bf16.gmra.mrb[0].mxu0 %v5135
    %v5718 = vpop.f32.mrb[0].mxu0
    %v5719 = vadd.f32 0.0, %v5718
    %v5720 = vpop.f32.mrb[0].mxu0
    %v5721 = vadd.f32 0.0, %v5720
    %v5722 = vpop.f32.mrb[0].mxu0
    %v5723 = vpop.f32.mrb[0].mxu0
    %5724 = vdwg.mxu0
    %5725 = vmatprep.subr.bf16.mxu0 %v5541
    %5726 = vmatpush1.bf16.msra.mxu0 %v5540
    %5727 = vmatprep.subr.bf16.mxu0 %v5545
    %5728 = vmatpush1.bf16.msra.mxu0 %v5544
    %5729 = vmatprep.subr.bf16.mxu0 %v5549
    %5730 = vmatpush1.bf16.msra.mxu0 %v5548
    %5731 = vmatprep.subr.bf16.mxu0 %v5553
    %5732 = vmatpush1.bf16.msra.mxu0 %v5552
    %5733 = vmatprep.subr.bf16.mxu0 %v5557
    %5734 = vmatpush1.bf16.msra.mxu0 %v5556
    %5735 = vmatprep.subr.bf16.mxu0 %v5561
    %5736 = vmatpush1.bf16.msra.mxu0 %v5560
    %5737 = vmatprep.subr.bf16.mxu0 %v5565
    %5738 = vmatpush1.bf16.msra.mxu0 %v5564
    %5739 = vmatprep.subr.bf16.mxu0 %v5569
    %5740 = vmatpush1.bf16.msra.mxu0 %v5568
    %5741 = vmatprep.subr.bf16.mxu0 0
    %5742 = vmatpush1.bf16.msra.mxu0 0
    %5743 = vmatprep.subr.bf16.mxu0 0
    %5744 = vmatpush1.bf16.msra.mxu0 0
    %5745 = vmatprep.subr.bf16.mxu0 0
    %5746 = vmatpush1.bf16.msra.mxu0 0
    %5747 = vmatprep.subr.bf16.mxu0 0
    %5748 = vmatpush1.bf16.msra.mxu0 0
    %5749 = vmatprep.subr.bf16.mxu0 0
    %5750 = vmatpush1.bf16.msra.mxu0 0
    %5751 = vmatprep.subr.bf16.mxu0 0
    %5752 = vmatpush1.bf16.msra.mxu0 0
    %5753 = vmatprep.subr.bf16.mxu0 0
    %5754 = vmatpush1.bf16.msra.mxu0 0
    %5755 = vmatprep.subr.bf16.mxu0 0
    %5756 = vmatpush1.bf16.msra.mxu0 0
    %5757 = vmatprep.mubr.bf16.mxu0 0
    %5758 = vmatmul.mubr.bf16.gmra.mrb[0].mxu0 %v5135
    %v5759 = vpop.f32.mrb[0].mxu0
    %v5760 = vadd.f32 0.0, %v5759
    %v5761 = vpop.f32.mrb[0].mxu0
    %v5762 = vadd.f32 0.0, %v5761
    %v5763 = vpop.f32.mrb[0].mxu0
    %v5764 = vpop.f32.mrb[0].mxu0
    %5765 = vdwg.mxu0
    %v5766 = vadd.f32 %v5637, %v5719
    %v5767 = vadd.f32 %v5639, %v5721
    %v5768 = vadd.f32 %v5678, %v5760
    %v5769 = vadd.f32 %v5680, %v5762
    %s5770 = scalar_lea.vmem [#allocation2], 7
    %v5771 = vld [vmem:[%s5770] ss:$8 sm:$0xf]
    %v5776 = vcombine.low %v5766, %v5767
    %v5777 = vcombine.low %v5768, %v5769
    %v5779 = vunpack.c.l.s4 1966171168
    %v5780 = vunpack.c.0.s8 %v5779
    %v5781 = vlaneseq
    %v5782 = vshrl.u32 %v5781, 7
    %v5783 = vsub.s32 %v5780, %v5782
    %v5784 = vrot.slane %v5776, %v5783
    %v5786 = vunpack.c.l.s4 1966171168
    %v5787 = vunpack.c.0.s8 %v5786
    %v5788 = vlaneseq
    %v5789 = vshrl.u32 %v5788, 7
    %v5790 = vsub.s32 %v5787, %v5789
    %v5791 = vrot.slane %v5777, %v5790
    %v5792 = vcombine.low %v5784, %v5791
    %v5794 = vunpack.c.l.s4 1966171168
    %v5795 = vunpack.c.0.s8 %v5794
    %v5796 = vlaneseq
    %v5797 = vshrl.u32 %v5796, 7
    %v5798 = vsub.s32 %v5795, %v5797
    %v5799 = vrot.slane %v5792, %v5798
    %v5801 = vadd.f32 %v5771, %v5799
    %v5802 = vxor.u32 %v5801, 2147483648
    %v5803 = vmul.f32 %v5802, 1.442695
    %v5804 = vpow.pop %v5803
    %v5805 = vadd.f32 %v5804, 1.0
    %v5806 = vrcp.pop %v5805
    %v5807 = vmul.f32 1.0, %v5806
    %v5809 = vrot.slane %v5801, 3
    %v5811 = vtanh.pop %v5809
    %v5813 = vrot.slane %v5807, 1
    %v5815 = vmul.f32 %v5813, %v5126
    %v5816 = vmul.f32 %v5807, %v5811
    %v5817 = vadd.f32 %v5815, %v5816
    %v5818 = vtanh.pop %v5817
    %v5819 = vrot.slane %v5807, 2
    %v5821 = vmul.f32 %v5819, %v5818
    %5822 = vst [vmem:[#allocation3 + $0x7] sm:$0x1] %v5821
    %v5823 = vld [vmem:[#allocation3] sm:$0xff]
    %v5824 = vmax.f32 %v5823, 0.0
    %v5825 = vld [vmem:[%s7] sm:$0x1]
    %v5826 = vld [vmem:[%s8] sm:$0x1]
    %v5827 = vrot.slane %v5824, 4
    %v5828 = vadd.f32 %v5824, %v5827
    %v5829 = vrot.slane %v5828, 2
    %v5830 = vadd.f32 %v5828, %v5829
    %v5831 = vrot.slane %v5830, 1
    %v5832 = vadd.f32 %v5830, %v5831
    %v5833 = vmul.f32 %v5832, %v92
    %v5834 = vsub.f32 %v5824, %v5833
    %v5835 = vmul.f32 %v5834, %v5834
    %v5836 = vrot.slane %v5835, 4
    %v5837 = vadd.f32 %v5835, %v5836
    %v5838 = vrot.slane %v5837, 2
    %v5839 = vadd.f32 %v5837, %v5838
    %v5840 = vrot.slane %v5839, 1
    %v5841 = vadd.f32 %v5839, %v5840
    %v5842 = vmul.f32 %v5841, %v92
    %v5843 = vadd.f32 %v5842, 1e-05
    %v5844 = vrsqrt.pop %v5843
    %v5845 = vmul.f32 %v5834, %v5844
    %v5847 = vlaneseq
    %v5848 = vshrl.u32 %v5847, 7
    %v5849 = vsub.s32 0, %v5848
    %v5850 = vrot.slane %v5825, %v5849
    %v5852 = vmul.f32 %v5845, %v5850
    %v5854 = vlaneseq
    %v5855 = vshrl.u32 %v5854, 7
    %v5856 = vsub.s32 0, %v5855
    %v5857 = vrot.slane %v5826, %v5856
    %v5859 = vadd.f32 %v5852, %v5857
    %v5860 = vld [vmem:[#allocation9] sm:$0xff]
    %v5861 = vld [vmem:[#allocation9 + $0x8] sm:$0xff]
    %v5862 = vld [vmem:[#allocation9 + $0x10] sm:$0xff]
    %v5863 = vld [vmem:[#allocation9 + $0x18] sm:$0xff]
    %v5864 = vld [vmem:[#allocation9 + $0x20] sm:$0xff]
    %v5865 = vld [vmem:[#allocation9 + $0x28] sm:$0xff]
    %v5866 = vld [vmem:[#allocation9 + $0x30] sm:$0xff]
    %v5867 = vld [vmem:[#allocation9 + $0x38] sm:$0xff]
    %v5868 = vld [vmem:[#allocation9 + $0x40] sm:$0xff]
    %v5869 = vld [vmem:[#allocation9 + $0x48] sm:$0xff]
    %v5870 = vld [vmem:[#allocation9 + $0x50] sm:$0xff]
    %v5871 = vld [vmem:[#allocation9 + $0x58] sm:$0xff]
    %v5872 = vld [vmem:[#allocation9 + $0x60] sm:$0xff]
    %v5873 = vld [vmem:[#allocation9 + $0x68] sm:$0xff]
    %v5874 = vld [vmem:[#allocation9 + $0x70] sm:$0xff]
    %v5875 = vld [vmem:[#allocation9 + $0x78] sm:$0xff]
    %v5876 = vld [vmem:[%s10] sm:$0x1]
    %v5878 = vlaneseq
    %v5879 = vshrl.u32 %v5878, 7
    %v5880 = vsub.s32 0, %v5879
    %v5881 = vrot.slane %v5876, %v5880
    %5883 = vmatprep.subr.mxu0 0.0
    %5884 = vmatpush1.msra.mxu0 %v5860
    %5885 = vmatprep.subr.mxu0 0.0
    %5886 = vmatpush1.msra.mxu0 %v5861
    %5887 = vmatprep.subr.mxu0 0.0
    %5888 = vmatpush1.msra.mxu0 %v5862
    %5889 = vmatprep.subr.mxu0 0.0
    %5890 = vmatpush1.msra.mxu0 %v5863
    %5891 = vmatprep.subr.mxu0 0.0
    %5892 = vmatpush1.msra.mxu0 %v5864
    %5893 = vmatprep.subr.mxu0 0.0
    %5894 = vmatpush1.msra.mxu0 %v5865
    %5895 = vmatprep.subr.mxu0 0.0
    %5896 = vmatpush1.msra.mxu0 %v5866
    %5897 = vmatprep.subr.mxu0 0.0
    %5898 = vmatpush1.msra.mxu0 %v5867
    %5899 = vmatprep.subr.mxu0 0.0
    %5900 = vmatpush1.msra.mxu0 %v5868
    %5901 = vmatprep.subr.mxu0 0.0
    %5902 = vmatpush1.msra.mxu0 %v5869
    %5903 = vmatprep.subr.mxu0 0.0
    %5904 = vmatpush1.msra.mxu0 %v5870
    %5905 = vmatprep.subr.mxu0 0.0
    %5906 = vmatpush1.msra.mxu0 %v5871
    %5907 = vmatprep.subr.mxu0 0.0
    %5908 = vmatpush1.msra.mxu0 %v5872
    %5909 = vmatprep.subr.mxu0 0.0
    %5910 = vmatpush1.msra.mxu0 %v5873
    %5911 = vmatprep.subr.mxu0 0.0
    %5912 = vmatpush1.msra.mxu0 %v5874
    %5913 = vmatprep.subr.mxu0 0.0
    %5914 = vmatpush1.msra.mxu0 %v5875
    %5915 = vmatprep.subr.mxu0 0.0
    %5916 = vmatpush1.msra.mxu0 0.0
    %5917 = vmatprep.subr.mxu0 0.0
    %5918 = vmatpush1.msra.mxu0 0.0
    %5919 = vmatprep.subr.mxu0 0.0
    %5920 = vmatpush1.msra.mxu0 0.0
    %5921 = vmatprep.subr.mxu0 0.0
    %5922 = vmatpush1.msra.mxu0 0.0
    %5923 = vmatprep.subr.mxu0 0.0
    %5924 = vmatpush1.msra.mxu0 0.0
    %5925 = vmatprep.subr.mxu0 0.0
    %5926 = vmatpush1.msra.mxu0 0.0
    %5927 = vmatprep.subr.mxu0 0.0
    %5928 = vmatpush1.msra.mxu0 0.0
    %5929 = vmatprep.subr.mxu0 0.0
    %5930 = vmatpush1.msra.mxu0 0.0
    %5931 = vmatprep.subr.mxu0 0.0
    %5932 = vmatpush1.msra.mxu0 0.0
    %5933 = vmatprep.subr.mxu0 0.0
    %5934 = vmatpush1.msra.mxu0 0.0
    %5935 = vmatprep.subr.mxu0 0.0
    %5936 = vmatpush1.msra.mxu0 0.0
    %5937 = vmatprep.subr.mxu0 0.0
    %5938 = vmatpush1.msra.mxu0 0.0
    %5939 = vmatprep.subr.mxu0 0.0
    %5940 = vmatpush1.msra.mxu0 0.0
    %5941 = vmatprep.subr.mxu0 0.0
    %5942 = vmatpush1.msra.mxu0 0.0
    %5943 = vmatprep.subr.mxu0 0.0
    %5944 = vmatpush1.msra.mxu0 0.0
    %5945 = vmatprep.subr.mxu0 0.0
    %5946 = vmatpush1.msra.mxu0 0.0
    %5947 = vmatprep.mubr.f32.mxu0 0.0
    %5948 = vmatmul.mubr.f32.gmra.mrb[0].mxu0 %v5859
    %v5949 = vpop.f32.mrb[0].mxu0
    %v5950 = vadd.f32 %v5881, %v5949
    %v5951 = vpop.f32.mrb[0].mxu0
    %5952 = vdwg.mxu0
    %5953 = vmax.xlane.f32.xlu0 %v5950
    %v5954 = vpop.xlane.xlu0 %5953
    %v5955 = vsub.f32 %v5950, %v5954
    %v5956 = vmul.f32 %v5955, 1.442695
    %v5957 = vpow.pop %v5956
    %5958 = vadd.xlane.f32.xlu0 %v5957
    %v5959 = vpop.xlane.xlu0 %5958
    %v5960 = vlog2.pop %v5959
    %v5961 = vmul.f32 %v5960, 0.6931472
    %v5962 = vsub.f32 %v5955, %v5961
    %5963 = vst [vmem:[#allocation10] sm:$0xff] %v5962
    // Predicated region
    $region58: #{net_forward.1} parent=1 // pred_check
      _
    $region59: #{net_forward.1} parent=1 // pred_check_branch
      %5965 = sbr.rel (0) target = $region61
    $region60: #{net_forward.1} parent=1 // pred_region
      %s5967 = ssub.s32 128, 128
      %5968 = vsyncadd [#allocation6], %s5967
      %s5970 = sshll.u32 [#allocation10], 4
      %s5971 = int_to_ptr.vmem [resolvable:$true] %s5970
      %5973 = dma.vmem_to_hbm [thread:$0]  %s5971, 128, %s11, [#allocation6]
    $region61: #{net_forward.1} parent=1 // pred_fallthru
      _
    // Predicated region
    $region62: #{net_forward.1} parent=1 // pred_check
      _
    $region63: #{net_forward.1} parent=1 // pred_check_branch
      %5975 = sbr.rel (0) target = $region65
    $region64: #{net_forward.1} parent=1 // pred_region
      %5976 = dma.done [#allocation6], 128
    $region65: #{net_forward.1} parent=1 // pred_fallthru
      _
    %5977 = vsyncpa [#allocation5], 1
    %5978 = vsyncpa [#allocation8], 1
    %5979 = vsyncpa [#allocation6], 1

</llo_original>
